<compile_context>
chip_gen: v7x
topology: tpu7x:2x2x1
jax: 0.10.0
libtpu: 0.0.40
codegen_flags: <defaults>
</compile_context>

<pallas_src>
import math

import jax
import jax.numpy as jnp
from jax.experimental import pallas as pl
from jax.experimental.pallas import tpu as pltpu

EPS = 1e-5
LANE = 128


def _round_up(x, m):
    return -(-x // m) * m


# ----------------------------- Pallas kernels ------------------------------ #

def _make_conv_kernel(width, tile, pre_affine):
    """3x3 valid conv (9 shifted MXU matmuls) + bias, plus masked per-channel sum/sum-of-squares
    accumulation for BatchNorm batch statistics.

    Inputs are flattened NHWC strips (row p = h*width + w, channels on lanes).  `cur` is this
    tile's rows, `nxt` the following tile (2-row halo; clamped at the end).  If `pre_affine`,
    the previous stage's folded BatchNorm scale/shift + ReLU is applied before the conv.
    """

    def kernel(cur_ref, nxt_ref, *rest):
        if pre_affine:
            sc_ref, sh_ref, w_ref, b_ref, m_ref, y_ref, st_ref = rest
        else:
            w_ref, b_ref, m_ref, y_ref, st_ref = rest

        cur = cur_ref[0].astype(jnp.float32)
        nxt = nxt_ref[0].astype(jnp.float32)
        if pre_affine:  # fused BN-apply + ReLU of the previous conv stage
            sc = sc_ref[...]
            sh = sh_ref[...]
            cur = jnp.maximum(cur * sc + sh, 0.0)
            nxt = jnp.maximum(nxt * sc + sh, 0.0)

        x = jnp.concatenate([cur, nxt], axis=0)            # (2*tile, Cin) f32

        acc = None
        for kh in range(3):
            for kw in range(3):
                s = kh * width + kw
                a = x[s:s + tile, :].astype(jnp.bfloat16)  # bf16 MXU operand, f32 accumulate
                d = jnp.dot(a, w_ref[kh * 3 + kw], preferred_element_type=jnp.float32)
                acc = d if acc is None else acc + d

        y = acc + b_ref[...]                               # pre-BN conv output (f32)
        y_ref[0] = y

        m = m_ref[...]                                     # (tile, 1) validity mask (0/1)
        ym = y * m
        st = jnp.concatenate([jnp.sum(ym, axis=0, keepdims=True),
                              jnp.sum(ym * y, axis=0, keepdims=True)], axis=0)

        @pl.when(pl.program_id(1) == 0)
        def _init():
            st_ref[0] = st

        @pl.when(pl.program_id(1) != 0)
        def _accum():
            st_ref[0] = st_ref[0] + st

    return kernel


def _bn_relu_kernel(y_ref, sc_ref, sh_ref, o_ref):
    # Folded BatchNorm affine (scale/shift already include mean/var/gamma/beta) + ReLU.
    o_ref[0] = jnp.maximum(y_ref[0] * sc_ref[...] + sh_ref[...], 0.0)


# ------------------------------ pallas_call wrappers ------------------------ #

def _conv_stage(x_flat, w_mat, bias, mask, *, width, tile, n_h, c_out,
                pre_scale=None, pre_shift=None):
    """One conv stage: [optional folded-BN+ReLU of the input] -> conv3x3(valid) + bias.
    Returns (pre-BN output, per-batch-element per-channel [sum, sum_sq] stats)."""
    n, rows, c_in = x_flat.shape
    grid = (n, n_h)

    cur_map = lambda i, j: (i, j, 0)
    nxt_map = lambda i, j: (i, jnp.minimum(j + 1, n_h - 1), 0)   # 2-row halo via second read
    resident2 = lambda i, j: (0, 0)
    resident3 = lambda i, j: (0, 0, 0)

    in_specs = [pl.BlockSpec((1, tile, c_in), cur_map),
                pl.BlockSpec((1, tile, c_in), nxt_map)]
    args = [x_flat, x_flat]
    if pre_scale is not None:
        in_specs += [pl.BlockSpec((1, c_in), resident2),
                     pl.BlockSpec((1, c_in), resident2)]
        args += [pre_scale, pre_shift]
    in_specs += [pl.BlockSpec(w_mat.shape, resident3),          # (9, Cin, Cout) resident
                 pl.BlockSpec((1, c_out), resident2),           # bias resident
                 pl.BlockSpec((tile, 1), lambda i, j: (j, 0))]  # validity mask
    args += [w_mat, bias, mask]

    out_shape = (jax.ShapeDtypeStruct((n, rows, c_out), jnp.float32),
                 jax.ShapeDtypeStruct((n, 2, c_out), jnp.float32))
    out_specs = (pl.BlockSpec((1, tile, c_out), cur_map),
                 pl.BlockSpec((1, 2, c_out), lambda i, j: (i, 0, 0)))  # revisited across j

    return pl.pallas_call(
        _make_conv_kernel(width, tile, pre_scale is not None),
        grid=grid,
        in_specs=in_specs,
        out_specs=out_specs,
        out_shape=out_shape,
        compiler_params=pltpu.CompilerParams(
            dimension_semantics=("parallel", "arbitrary"),
            vmem_limit_bytes=48 * 1024 * 1024),
    )(*args)


def _bn_relu_apply(y_pre, scale, shift, *, tile, n_h):
    n, rows, c = y_pre.shape
    return pl.pallas_call(
        _bn_relu_kernel,
        grid=(n, n_h),
        in_specs=[pl.BlockSpec((1, tile, c), lambda i, j: (i, j, 0)),
                  pl.BlockSpec((1, c), lambda i, j: (0, 0)),
                  pl.BlockSpec((1, c), lambda i, j: (0, 0))],
        out_specs=pl.BlockSpec((1, tile, c), lambda i, j: (i, j, 0)),
        out_shape=jax.ShapeDtypeStruct((n, rows, c), jnp.float32),
        compiler_params=pltpu.CompilerParams(
            dimension_semantics=("parallel", "parallel"),
            vmem_limit_bytes=48 * 1024 * 1024),
    )(y_pre, scale, shift)


# ------------------------------- JAX glue ----------------------------------- #

def _w_mat(w_oihw, c_in_p, c_out_p):
    """PyTorch (O, I, 3, 3) conv weight -> (9, I_pad, O_pad) bf16 per-tap GEMM matrices."""
    o, i, kh, kw = w_oihw.shape
    wm = jnp.transpose(w_oihw, (2, 3, 1, 0)).reshape(kh * kw, i, o)
    wm = jnp.pad(wm, ((0, 0), (0, c_in_p - i), (0, c_out_p - o)))
    return wm.astype(jnp.bfloat16)


def _pad_vec(v, c_p):
    return jnp.pad(v.astype(jnp.float32), (0, c_p - v.shape[0])).reshape(1, c_p)


def _bn_fold(stats, gamma_p, beta_p, count):
    """(N, 2, C) tile-accumulated [sum, sum_sq] -> folded per-channel scale/shift (O(C) glue)."""
    s = jnp.sum(stats, axis=0)
    mean = s[0] / count
    var = jnp.maximum(s[1] / count - mean * mean, 0.0)   # biased variance (PyTorch train mode)
    scale = gamma_p * jax.lax.rsqrt(var + EPS)
    shift = beta_p - mean * scale
    return scale, shift


def _choose_tile_h(hp, wp, c_max):
    # Target a few hundred to a few thousand rows per tile, capped so the per-step f32 blocks
    # (cur + nxt + output, double-buffered) stay well inside v7x's 64 MiB VMEM; v6e/v5e have
    # more headroom and simply take the same (or the full-image) tile.
    target_rows = max(256, min(4096, (4 * 1024 * 1024) // (4 * max(c_max, 1))))
    th = max(1, min(hp, target_rows // max(wp, 1)))
    step = 8 // math.gcd(wp, 8)          # smallest th granularity with th*wp % 8 == 0
    th = max(step * (th // step), step)
    while th < 3:                        # 3x3 halo needs at least 3 rows per tile
        th += step
    return th


@jax.jit
def unet_down_block(x_nchw, params):
    """Forward of UNetDownBlock(in_ch, out_ch, padding=0, norm_layer=None) (training-mode BN)."""
    (w1, b1, g1, bt1, w2, b2, g2, bt2) = params
    n, cin, h, w = x_nchw.shape
    cmid, cout = w1.shape[0], w2.shape[0]
    hp, wp = h // 2, w // 2                      # after MaxPool2d(2); assumes even H, W
    h1, w1v = hp - 2, wp - 2                     # after conv1 (valid)
    h2, w2v = hp - 4, wp - 4                     # after conv2 (valid)
    cmid_p = _round_up(cmid, LANE)               # lane-dense outputs / MXU-native N dim
    cout_p = _round_up(cout, LANE)

    # Glue: 2x2 max-pool (3 elementwise maxes) fused by XLA with the single NCHW->NHWC relayout.
    xp = jnp.max(x_nchw.reshape(n, cin, hp, 2, wp, 2), axis=(3, 5))
    xp = jnp.transpose(xp, (0, 2, 3, 1))         # (n, hp, wp, cin)

    th = _choose_tile_h(hp, wp, max(cin, cmid_p, cout_p))
    n_h = -(-hp // th)
    hp_pad = n_h * th
    tile = th * wp                               # rows per grid step (multiple of 8)
    rows = hp_pad * wp

    xp = jnp.pad(xp, ((0, 0), (0, hp_pad - hp), (0, 0), (0, 0)))
    xp_flat = xp.reshape(n, rows, cin).astype(jnp.bfloat16)   # flatten is free; bf16 halves DMA

    # Validity masks for BN statistics (exclude W-wrap columns and padded/garbage H rows).
    hh = jnp.arange(hp_pad, dtype=jnp.int32)[:, None]
    ww = jnp.arange(wp, dtype=jnp.int32)[None, :]
    mask1 = ((hh < h1) & (ww < w1v)).astype(jnp.float32).reshape(rows, 1)
    mask2 = ((hh < h2) & (ww < w2v)).astype(jnp.float32).reshape(rows, 1)
    cnt1 = float(n * h1 * w1v)
    cnt2 = float(n * h2 * w2v)

    # Stage 1: conv1 + bias, per-channel batch stats.
    y1_pre, st1 = _conv_stage(xp_flat, _w_mat(w1, cin, cmid_p), _pad_vec(b1, cmid_p),
                              mask1, width=wp, tile=tile, n_h=n_h, c_out=cmid_p)
    scale1, shift1 = _bn_fold(st1, _pad_vec(g1, cmid_p), _pad_vec(bt1, cmid_p), cnt1)

    # Stage 2: (BN1-apply + ReLU) fused with conv2 + bias, per-channel batch stats.
    y2_pre, st2 = _conv_stage(y1_pre, _w_mat(w2, cmid_p, cout_p), _pad_vec(b2, cout_p),
                              mask2, width=wp, tile=tile, n_h=n_h, c_out=cout_p,
                              pre_scale=scale1, pre_shift=shift1)
    scale2, shift2 = _bn_fold(st2, _pad_vec(g2, cout_p), _pad_vec(bt2, cout_p), cnt2)

    # Stage 3: BN2-apply + ReLU.
    out_full = _bn_relu_apply(y2_pre, scale2, shift2, tile=tile, n_h=n_h)

    out = out_full.reshape(n, hp_pad, wp, cout_p)[:, :h2, :w2v, :cout]
    return jnp.transpose(out, (0, 3, 1, 2))      # back to NCHW for PyTorch parity


# --------------------------- pure-JAX references ----------------------------- #

def unet_down_block_ref(x, params, gemm_dtype=jnp.float32):
    (w1, b1, g1, bt1, w2, b2, g2, bt2) = params
    n, c, h, w = x.shape
    xp = jnp.max(x.reshape(n, c, h // 2, 2, w // 2, 2), axis=(3, 5))

    def cbr(a, wt, b, g, bt):
        y = jax.lax.conv_general_dilated(
            a.astype(gemm_dtype), wt.astype(gemm_dtype),
            window_strides=(1, 1), padding='VALID',
            dimension_numbers=('NCHW', 'OIHW', 'NCHW'),
            preferred_element_type=jnp.float32) + b[None, :, None, None]
        mu = jnp.mean(y, axis=(0, 2, 3), keepdims=True)
        var = jnp.mean(jnp.square(y - mu), axis=(0, 2, 3), keepdims=True)
        yh = (y - mu) / jnp.sqrt(var + EPS)
        return jnp.maximum(yh * g[None, :, None, None] + bt[None, :, None, None], 0.0)

    return cbr(cbr(xp, w1, b1, g1, bt1), w2, b2, g2, bt2)


# ---------------------------------- main ------------------------------------- #

if __name__ == "__main__":
    key = jax.random.PRNGKey(0)
    kx, k1, k2, k3, k4, k5, k6, k7, k8 = jax.random.split(key, 9)

    N, Cin, H, W = 2, 4, 16, 16
    Cout = 8  # mid_channels == out_channels

    x = jax.random.normal(kx, (N, Cin, H, W), dtype=jnp.float32)
    params = (
        0.2 * jax.random.normal(k1, (Cout, Cin, 3, 3), jnp.float32),   # conv1 weight (O,I,3,3)
        0.1 * jax.random.normal(k2, (Cout,), jnp.float32),             # conv1 bias
        1.0 + 0.1 * jax.random.normal(k3, (Cout,), jnp.float32),       # bn1 gamma
        0.1 * jax.random.normal(k4, (Cout,), jnp.float32),             # bn1 beta
        0.2 * jax.random.normal(k5, (Cout, Cout, 3, 3), jnp.float32),  # conv2 weight
        0.1 * jax.random.normal(k6, (Cout,), jnp.float32),             # conv2 bias
        1.0 + 0.1 * jax.random.normal(k7, (Cout,), jnp.float32),       # bn2 gamma
        0.1 * jax.random.normal(k8, (Cout,), jnp.float32),             # bn2 beta
    )

    out = jax.block_until_ready(unet_down_block(x, params))

    # maxpool: 16->8 ; conv1 (pad=0): 8->6 ; conv2 (pad=0): 6->4
    assert out.shape == (N, Cout, 4, 4), out.shape

    # Tight check against a reference using the same precision choice (bf16 GEMM operands,
    # f32 accumulation / BN math) -- isolates kernel correctness from the bf16 MXU rounding.
    ref_bf16 = jax.block_until_ready(unet_down_block_ref(x, params, jnp.bfloat16))
    err_bf = float(jnp.max(jnp.abs(out - ref_bf16)))
    assert err_bf < 2e-3, f"max abs error vs bf16-GEMM reference: {err_bf}"

    # Sanity check against the full-f32 reference; tolerance covers bf16 operand rounding only.
    ref_f32 = jax.block_until_ready(unet_down_block_ref(x, params, jnp.float32))
    err_32 = float(jnp.max(jnp.abs(out - ref_f32)))
    assert err_32 < 5e-2, f"max abs error vs f32 reference: {err_32}"

    print("KERNEL_OK")
</pallas_src>

<mosaic_0001>
module attributes {stable_mosaic.version = 11 : i64} {
  func.func @kernel(%arg0: i32, %arg1: i32, %arg2: memref<1x64x4xbf16, #tpu.memory_space<vmem>>, %arg3: memref<1x64x4xbf16, #tpu.memory_space<vmem>>, %arg4: memref<9x4x128xbf16, #tpu.memory_space<vmem>>, %arg5: memref<1x128xf32, #tpu.memory_space<vmem>>, %arg6: memref<64x1xf32, #tpu.memory_space<vmem>>, %arg7: memref<1x64x128xf32, #tpu.memory_space<vmem>>, %arg8: memref<1x2x128xf32, #tpu.memory_space<vmem>>) attributes {dimension_semantics = [#tpu.dimension_semantics<parallel>, #tpu.dimension_semantics<arbitrary>], iteration_bounds = array<i64: 2, 1>, scalar_prefetch = 0 : i64, scratch_operands = 0 : i64, tpu.core_type = #tpu.core_type<tc>, window_params = [{transform_indices = @transform_0, window_bounds = array<i64: 1, 64, 4>}, {transform_indices = @transform_1, window_bounds = array<i64: 1, 64, 4>}, {pipeline_mode = #tpu.pipeline_mode<synchronous>, transform_indices = @transform_2, window_bounds = array<i64: 9, 4, 128>}, {pipeline_mode = #tpu.pipeline_mode<synchronous>, transform_indices = @transform_3, window_bounds = array<i64: 1, 128>}, {transform_indices = @transform_4, window_bounds = array<i64: 64, 1>}, {transform_indices = @transform_5, window_bounds = array<i64: 1, 64, 128>}, {transform_indices = @transform_6, window_bounds = array<i64: 1, 2, 128>}]} {
    %c0 = arith.constant 0 : index
    %c0_0 = arith.constant 0 : index
    %c0_1 = arith.constant 0 : index
    %0 = vector.load %arg2[%c0, %c0_0, %c0_1] : memref<1x64x4xbf16, #tpu.memory_space<vmem>>, vector<1x64x4xbf16>
    %1 = vector.shape_cast %0 : vector<1x64x4xbf16> to vector<64x4xbf16>
    %2 = arith.extf %1 : vector<64x4xbf16> to vector<64x4xf32>
    %c0_2 = arith.constant 0 : index
    %c0_3 = arith.constant 0 : index
    %c0_4 = arith.constant 0 : index
    %3 = vector.load %arg3[%c0_2, %c0_3, %c0_4] : memref<1x64x4xbf16, #tpu.memory_space<vmem>>, vector<1x64x4xbf16>
    %4 = vector.shape_cast %3 : vector<1x64x4xbf16> to vector<64x4xbf16>
    %5 = arith.extf %4 : vector<64x4xbf16> to vector<64x4xf32>
    %6 = tpu.concatenate %2, %5 in 0 : vector<64x4xf32>, vector<64x4xf32> -> vector<128x4xf32>
    %7 = vector.extract_strided_slice %6 {offsets = [0, 0], sizes = [64, 4], strides = [1, 1]} : vector<128x4xf32> to vector<64x4xf32>
    %8 = arith.truncf %7 : vector<64x4xf32> to vector<64x4xbf16>
    %c0_5 = arith.constant 0 : index
    %c0_6 = arith.constant 0 : index
    %c0_7 = arith.constant 0 : index
    %9 = vector.load %arg4[%c0_5, %c0_6, %c0_7] : memref<9x4x128xbf16, #tpu.memory_space<vmem>>, vector<1x4x128xbf16>
    %10 = vector.shape_cast %9 : vector<1x4x128xbf16> to vector<4x128xbf16>
    %cst = arith.constant dense<0.000000e+00> : vector<64x128xf32>
    %11 = tpu.matmul %8, %10, %cst {dimension_numbers = #tpu.dot_dimension_numbers<[1], [0], [0], [1], [0, 0, 1, 1], [], []>} : vector<64x4xbf16>, vector<4x128xbf16>, vector<64x128xf32> -> vector<64x128xf32>
    %12 = vector.extract_strided_slice %6 {offsets = [1, 0], sizes = [64, 4], strides = [1, 1]} : vector<128x4xf32> to vector<64x4xf32>
    %13 = arith.truncf %12 : vector<64x4xf32> to vector<64x4xbf16>
    %c1 = arith.constant 1 : index
    %c0_8 = arith.constant 0 : index
    %c0_9 = arith.constant 0 : index
    %14 = vector.load %arg4[%c1, %c0_8, %c0_9] : memref<9x4x128xbf16, #tpu.memory_space<vmem>>, vector<1x4x128xbf16>
    %15 = vector.shape_cast %14 : vector<1x4x128xbf16> to vector<4x128xbf16>
    %cst_10 = arith.constant dense<0.000000e+00> : vector<64x128xf32>
    %16 = tpu.matmul %13, %15, %cst_10 {dimension_numbers = #tpu.dot_dimension_numbers<[1], [0], [0], [1], [0, 0, 1, 1], [], []>} : vector<64x4xbf16>, vector<4x128xbf16>, vector<64x128xf32> -> vector<64x128xf32>
    %17 = arith.addf %11, %16 : vector<64x128xf32>
    %18 = vector.extract_strided_slice %6 {offsets = [2, 0], sizes = [64, 4], strides = [1, 1]} : vector<128x4xf32> to vector<64x4xf32>
    %19 = arith.truncf %18 : vector<64x4xf32> to vector<64x4xbf16>
    %c2 = arith.constant 2 : index
    %c0_11 = arith.constant 0 : index
    %c0_12 = arith.constant 0 : index
    %20 = vector.load %arg4[%c2, %c0_11, %c0_12] : memref<9x4x128xbf16, #tpu.memory_space<vmem>>, vector<1x4x128xbf16>
    %21 = vector.shape_cast %20 : vector<1x4x128xbf16> to vector<4x128xbf16>
    %cst_13 = arith.constant dense<0.000000e+00> : vector<64x128xf32>
    %22 = tpu.matmul %19, %21, %cst_13 {dimension_numbers = #tpu.dot_dimension_numbers<[1], [0], [0], [1], [0, 0, 1, 1], [], []>} : vector<64x4xbf16>, vector<4x128xbf16>, vector<64x128xf32> -> vector<64x128xf32>
    %23 = arith.addf %17, %22 : vector<64x128xf32>
    %24 = vector.extract_strided_slice %6 {offsets = [8, 0], sizes = [64, 4], strides = [1, 1]} : vector<128x4xf32> to vector<64x4xf32>
    %25 = arith.truncf %24 : vector<64x4xf32> to vector<64x4xbf16>
    %c3 = arith.constant 3 : index
    %c0_14 = arith.constant 0 : index
    %c0_15 = arith.constant 0 : index
    %26 = vector.load %arg4[%c3, %c0_14, %c0_15] : memref<9x4x128xbf16, #tpu.memory_space<vmem>>, vector<1x4x128xbf16>
    %27 = vector.shape_cast %26 : vector<1x4x128xbf16> to vector<4x128xbf16>
    %cst_16 = arith.constant dense<0.000000e+00> : vector<64x128xf32>
    %28 = tpu.matmul %25, %27, %cst_16 {dimension_numbers = #tpu.dot_dimension_numbers<[1], [0], [0], [1], [0, 0, 1, 1], [], []>} : vector<64x4xbf16>, vector<4x128xbf16>, vector<64x128xf32> -> vector<64x128xf32>
    %29 = arith.addf %23, %28 : vector<64x128xf32>
    %30 = vector.extract_strided_slice %6 {offsets = [9, 0], sizes = [64, 4], strides = [1, 1]} : vector<128x4xf32> to vector<64x4xf32>
    %31 = arith.truncf %30 : vector<64x4xf32> to vector<64x4xbf16>
    %c4 = arith.constant 4 : index
    %c0_17 = arith.constant 0 : index
    %c0_18 = arith.constant 0 : index
    %32 = vector.load %arg4[%c4, %c0_17, %c0_18] : memref<9x4x128xbf16, #tpu.memory_space<vmem>>, vector<1x4x128xbf16>
    %33 = vector.shape_cast %32 : vector<1x4x128xbf16> to vector<4x128xbf16>
    %cst_19 = arith.constant dense<0.000000e+00> : vector<64x128xf32>
    %34 = tpu.matmul %31, %33, %cst_19 {dimension_numbers = #tpu.dot_dimension_numbers<[1], [0], [0], [1], [0, 0, 1, 1], [], []>} : vector<64x4xbf16>, vector<4x128xbf16>, vector<64x128xf32> -> vector<64x128xf32>
    %35 = arith.addf %29, %34 : vector<64x128xf32>
    %36 = vector.extract_strided_slice %6 {offsets = [10, 0], sizes = [64, 4], strides = [1, 1]} : vector<128x4xf32> to vector<64x4xf32>
    %37 = arith.truncf %36 : vector<64x4xf32> to vector<64x4xbf16>
    %c5 = arith.constant 5 : index
    %c0_20 = arith.constant 0 : index
    %c0_21 = arith.constant 0 : index
    %38 = vector.load %arg4[%c5, %c0_20, %c0_21] : memref<9x4x128xbf16, #tpu.memory_space<vmem>>, vector<1x4x128xbf16>
    %39 = vector.shape_cast %38 : vector<1x4x128xbf16> to vector<4x128xbf16>
    %cst_22 = arith.constant dense<0.000000e+00> : vector<64x128xf32>
    %40 = tpu.matmul %37, %39, %cst_22 {dimension_numbers = #tpu.dot_dimension_numbers<[1], [0], [0], [1], [0, 0, 1, 1], [], []>} : vector<64x4xbf16>, vector<4x128xbf16>, vector<64x128xf32> -> vector<64x128xf32>
    %41 = arith.addf %35, %40 : vector<64x128xf32>
    %42 = vector.extract_strided_slice %6 {offsets = [16, 0], sizes = [64, 4], strides = [1, 1]} : vector<128x4xf32> to vector<64x4xf32>
    %43 = arith.truncf %42 : vector<64x4xf32> to vector<64x4xbf16>
    %c6 = arith.constant 6 : index
    %c0_23 = arith.constant 0 : index
    %c0_24 = arith.constant 0 : index
    %44 = vector.load %arg4[%c6, %c0_23, %c0_24] : memref<9x4x128xbf16, #tpu.memory_space<vmem>>, vector<1x4x128xbf16>
    %45 = vector.shape_cast %44 : vector<1x4x128xbf16> to vector<4x128xbf16>
    %cst_25 = arith.constant dense<0.000000e+00> : vector<64x128xf32>
    %46 = tpu.matmul %43, %45, %cst_25 {dimension_numbers = #tpu.dot_dimension_numbers<[1], [0], [0], [1], [0, 0, 1, 1], [], []>} : vector<64x4xbf16>, vector<4x128xbf16>, vector<64x128xf32> -> vector<64x128xf32>
    %47 = arith.addf %41, %46 : vector<64x128xf32>
    %48 = vector.extract_strided_slice %6 {offsets = [17, 0], sizes = [64, 4], strides = [1, 1]} : vector<128x4xf32> to vector<64x4xf32>
    %49 = arith.truncf %48 : vector<64x4xf32> to vector<64x4xbf16>
    %c7 = arith.constant 7 : index
    %c0_26 = arith.constant 0 : index
    %c0_27 = arith.constant 0 : index
    %50 = vector.load %arg4[%c7, %c0_26, %c0_27] : memref<9x4x128xbf16, #tpu.memory_space<vmem>>, vector<1x4x128xbf16>
    %51 = vector.shape_cast %50 : vector<1x4x128xbf16> to vector<4x128xbf16>
    %cst_28 = arith.constant dense<0.000000e+00> : vector<64x128xf32>
    %52 = tpu.matmul %49, %51, %cst_28 {dimension_numbers = #tpu.dot_dimension_numbers<[1], [0], [0], [1], [0, 0, 1, 1], [], []>} : vector<64x4xbf16>, vector<4x128xbf16>, vector<64x128xf32> -> vector<64x128xf32>
    %53 = arith.addf %47, %52 : vector<64x128xf32>
    %54 = vector.extract_strided_slice %6 {offsets = [18, 0], sizes = [64, 4], strides = [1, 1]} : vector<128x4xf32> to vector<64x4xf32>
    %55 = arith.truncf %54 : vector<64x4xf32> to vector<64x4xbf16>
    %c8 = arith.constant 8 : index
    %c0_29 = arith.constant 0 : index
    %c0_30 = arith.constant 0 : index
    %56 = vector.load %arg4[%c8, %c0_29, %c0_30] : memref<9x4x128xbf16, #tpu.memory_space<vmem>>, vector<1x4x128xbf16>
    %57 = vector.shape_cast %56 : vector<1x4x128xbf16> to vector<4x128xbf16>
    %cst_31 = arith.constant dense<0.000000e+00> : vector<64x128xf32>
    %58 = tpu.matmul %55, %57, %cst_31 {dimension_numbers = #tpu.dot_dimension_numbers<[1], [0], [0], [1], [0, 0, 1, 1], [], []>} : vector<64x4xbf16>, vector<4x128xbf16>, vector<64x128xf32> -> vector<64x128xf32>
    %59 = arith.addf %53, %58 : vector<64x128xf32>
    %c0_32 = arith.constant 0 : index
    %c0_33 = arith.constant 0 : index
    %60 = vector.load %arg5[%c0_32, %c0_33] : memref<1x128xf32, #tpu.memory_space<vmem>>, vector<1x128xf32>
    %61 = vector.broadcast %60 : vector<1x128xf32> to vector<64x128xf32>
    %62 = arith.addf %59, %61 : vector<64x128xf32>
    %c0_34 = arith.constant 0 : index
    %c0_35 = arith.constant 0 : index
    %c0_36 = arith.constant 0 : index
    %63 = vector.load %arg7[%c0_34, %c0_35, %c0_36] : memref<1x64x128xf32, #tpu.memory_space<vmem>>, vector<1x64x128xf32>
    %64 = vector.shape_cast %63 : vector<1x64x128xf32> to vector<64x128xf32>
    %65 = vector.shape_cast %62 : vector<64x128xf32> to vector<1x64x128xf32>
    tpu.vector_store %arg7[%c0_34, %c0_35, %c0_36], %65 {strides = array<i32>} : memref<1x64x128xf32, #tpu.memory_space<vmem>>, vector<1x64x128xf32>,
    %c0_37 = arith.constant 0 : index
    %c0_38 = arith.constant 0 : index
    %66 = vector.load %arg6[%c0_37, %c0_38] : memref<64x1xf32, #tpu.memory_space<vmem>>, vector<64x1xf32>
    %67 = vector.broadcast %66 : vector<64x1xf32> to vector<64x128xf32>
    %68 = arith.mulf %62, %67 : vector<64x128xf32>
    %cst_39 = arith.constant dense<0.000000e+00> : vector<128xf32>
    %69 = vector.multi_reduction <add>, %68, %cst_39 [0] : vector<64x128xf32> to vector<128xf32>
    %70 = vector.shape_cast %69 : vector<128xf32> to vector<1x128xf32>
    %71 = arith.mulf %68, %62 : vector<64x128xf32>
    %cst_40 = arith.constant dense<0.000000e+00> : vector<128xf32>
    %72 = vector.multi_reduction <add>, %71, %cst_40 [0] : vector<64x128xf32> to vector<128xf32>
    %73 = vector.shape_cast %72 : vector<128xf32> to vector<1x128xf32>
    %74 = tpu.concatenate %70, %73 in 0 : vector<1x128xf32>, vector<1x128xf32> -> vector<2x128xf32>
    %c0_i32 = arith.constant 0 : i32
    %75 = arith.cmpi eq, %arg1, %c0_i32 : i32
    %76 = arith.extui %75 : i1 to i32
    %c0_i32_41 = arith.constant 0 : i32
    %77 = arith.cmpi ne, %76, %c0_i32_41 : i32
    scf.if %77 {
      %c0_44 = arith.constant 0 : index
      %c0_45 = arith.constant 0 : index
      %c0_46 = arith.constant 0 : index
      %81 = vector.load %arg8[%c0_44, %c0_45, %c0_46] : memref<1x2x128xf32, #tpu.memory_space<vmem>>, vector<1x2x128xf32>
      %82 = vector.shape_cast %81 : vector<1x2x128xf32> to vector<2x128xf32>
      %83 = vector.shape_cast %74 : vector<2x128xf32> to vector<1x2x128xf32>
      tpu.vector_store %arg8[%c0_44, %c0_45, %c0_46], %83 {strides = array<i32>} : memref<1x2x128xf32, #tpu.memory_space<vmem>>, vector<1x2x128xf32>,
    } else {
    }
    %c0_i32_42 = arith.constant 0 : i32
    %78 = arith.cmpi ne, %arg1, %c0_i32_42 : i32
    %79 = arith.extui %78 : i1 to i32
    %c0_i32_43 = arith.constant 0 : i32
    %80 = arith.cmpi ne, %79, %c0_i32_43 : i32
    scf.if %80 {
      %c0_44 = arith.constant 0 : index
      %c0_45 = arith.constant 0 : index
      %c0_46 = arith.constant 0 : index
      %81 = vector.load %arg8[%c0_44, %c0_45, %c0_46] : memref<1x2x128xf32, #tpu.memory_space<vmem>>, vector<1x2x128xf32>
      %82 = vector.shape_cast %81 : vector<1x2x128xf32> to vector<2x128xf32>
      %83 = arith.addf %82, %74 : vector<2x128xf32>
      %c0_47 = arith.constant 0 : index
      %c0_48 = arith.constant 0 : index
      %c0_49 = arith.constant 0 : index
      %84 = vector.load %arg8[%c0_47, %c0_48, %c0_49] : memref<1x2x128xf32, #tpu.memory_space<vmem>>, vector<1x2x128xf32>
      %85 = vector.shape_cast %84 : vector<1x2x128xf32> to vector<2x128xf32>
      %86 = vector.shape_cast %83 : vector<2x128xf32> to vector<1x2x128xf32>
      tpu.vector_store %arg8[%c0_47, %c0_48, %c0_49], %86 {strides = array<i32>} : memref<1x2x128xf32, #tpu.memory_space<vmem>>, vector<1x2x128xf32>,
    } else {
    }
    return
  }
  func.func @transform_0(%arg0: i32, %arg1: i32) -> (i32, i32, i32) {
    %c0_i32 = arith.constant 0 : i32
    %c0_i32_0 = arith.constant 0 : i32
    return %arg0, %arg1, %c0_i32 : i32, i32, i32
  }
  func.func @transform_1(%arg0: i32, %arg1: i32) -> (i32, i32, i32) {
    %c1_i32 = arith.constant 1 : i32
    %0 = arith.addi %arg1, %c1_i32 : i32
    %c0_i32 = arith.constant 0 : i32
    %1 = arith.minsi %0, %c0_i32 : i32
    %c0_i32_0 = arith.constant 0 : i32
    %c0_i32_1 = arith.constant 0 : i32
    return %arg0, %1, %c0_i32_0 : i32, i32, i32
  }
  func.func @transform_2(%arg0: i32, %arg1: i32) -> (i32, i32, i32) {
    %c0_i32 = arith.constant 0 : i32
    %c0_i32_0 = arith.constant 0 : i32
    %c0_i32_1 = arith.constant 0 : i32
    %c0_i32_2 = arith.constant 0 : i32
    return %c0_i32, %c0_i32_0, %c0_i32_1 : i32, i32, i32
  }
  func.func @transform_3(%arg0: i32, %arg1: i32) -> (i32, i32) {
    %c0_i32 = arith.constant 0 : i32
    %c0_i32_0 = arith.constant 0 : i32
    %c0_i32_1 = arith.constant 0 : i32
    return %c0_i32, %c0_i32_0 : i32, i32
  }
  func.func @transform_4(%arg0: i32, %arg1: i32) -> (i32, i32) {
    %c0_i32 = arith.constant 0 : i32
    %c0_i32_0 = arith.constant 0 : i32
    return %arg1, %c0_i32 : i32, i32
  }
  func.func @transform_5(%arg0: i32, %arg1: i32) -> (i32, i32, i32) {
    %c0_i32 = arith.constant 0 : i32
    %c0_i32_0 = arith.constant 0 : i32
    return %arg0, %arg1, %c0_i32 : i32, i32, i32
  }
  func.func @transform_6(%arg0: i32, %arg1: i32) -> (i32, i32, i32) {
    %c0_i32 = arith.constant 0 : i32
    %c0_i32_0 = arith.constant 0 : i32
    %c0_i32_1 = arith.constant 0 : i32
    return %arg0, %c0_i32, %c0_i32_0 : i32, i32, i32
  }
}

module attributes {stable_mosaic.version = 11 : i64} {
  func.func @kernel(%arg0: i32, %arg1: i32, %arg2: memref<1x64x128xf32, #tpu.memory_space<vmem>>, %arg3: memref<1x64x128xf32, #tpu.memory_space<vmem>>, %arg4: memref<1x128xf32, #tpu.memory_space<vmem>>, %arg5: memref<1x128xf32, #tpu.memory_space<vmem>>, %arg6: memref<9x128x128xbf16, #tpu.memory_space<vmem>>, %arg7: memref<1x128xf32, #tpu.memory_space<vmem>>, %arg8: memref<64x1xf32, #tpu.memory_space<vmem>>, %arg9: memref<1x64x128xf32, #tpu.memory_space<vmem>>, %arg10: memref<1x2x128xf32, #tpu.memory_space<vmem>>) attributes {dimension_semantics = [#tpu.dimension_semantics<parallel>, #tpu.dimension_semantics<arbitrary>], iteration_bounds = array<i64: 2, 1>, scalar_prefetch = 0 : i64, scratch_operands = 0 : i64, tpu.core_type = #tpu.core_type<tc>, window_params = [{transform_indices = @transform_0, window_bounds = array<i64: 1, 64, 128>}, {transform_indices = @transform_1, window_bounds = array<i64: 1, 64, 128>}, {pipeline_mode = #tpu.pipeline_mode<synchronous>, transform_indices = @transform_2, window_bounds = array<i64: 1, 128>}, {pipeline_mode = #tpu.pipeline_mode<synchronous>, transform_indices = @transform_3, window_bounds = array<i64: 1, 128>}, {pipeline_mode = #tpu.pipeline_mode<synchronous>, transform_indices = @transform_4, window_bounds = array<i64: 9, 128, 128>}, {pipeline_mode = #tpu.pipeline_mode<synchronous>, transform_indices = @transform_5, window_bounds = array<i64: 1, 128>}, {transform_indices = @transform_6, window_bounds = array<i64: 64, 1>}, {transform_indices = @transform_7, window_bounds = array<i64: 1, 64, 128>}, {transform_indices = @transform_8, window_bounds = array<i64: 1, 2, 128>}]} {
    %c0 = arith.constant 0 : index
    %c0_0 = arith.constant 0 : index
    %c0_1 = arith.constant 0 : index
    %0 = vector.load %arg2[%c0, %c0_0, %c0_1] : memref<1x64x128xf32, #tpu.memory_space<vmem>>, vector<1x64x128xf32>
    %1 = vector.shape_cast %0 : vector<1x64x128xf32> to vector<64x128xf32>
    %c0_2 = arith.constant 0 : index
    %c0_3 = arith.constant 0 : index
    %c0_4 = arith.constant 0 : index
    %2 = vector.load %arg3[%c0_2, %c0_3, %c0_4] : memref<1x64x128xf32, #tpu.memory_space<vmem>>, vector<1x64x128xf32>
    %3 = vector.shape_cast %2 : vector<1x64x128xf32> to vector<64x128xf32>
    %c0_5 = arith.constant 0 : index
    %c0_6 = arith.constant 0 : index
    %4 = vector.load %arg4[%c0_5, %c0_6] : memref<1x128xf32, #tpu.memory_space<vmem>>, vector<1x128xf32>
    %c0_7 = arith.constant 0 : index
    %c0_8 = arith.constant 0 : index
    %5 = vector.load %arg5[%c0_7, %c0_8] : memref<1x128xf32, #tpu.memory_space<vmem>>, vector<1x128xf32>
    %6 = vector.broadcast %4 : vector<1x128xf32> to vector<64x128xf32>
    %7 = arith.mulf %1, %6 : vector<64x128xf32>
    %8 = vector.broadcast %5 : vector<1x128xf32> to vector<64x128xf32>
    %9 = arith.addf %7, %8 : vector<64x128xf32>
    %cst = arith.constant 0.000000e+00 : f32
    %10 = vector.broadcast %cst : f32 to vector<64x128xf32>
    %11 = arith.maximumf %9, %10 : vector<64x128xf32>
    %12 = vector.broadcast %4 : vector<1x128xf32> to vector<64x128xf32>
    %13 = arith.mulf %3, %12 : vector<64x128xf32>
    %14 = vector.broadcast %5 : vector<1x128xf32> to vector<64x128xf32>
    %15 = arith.addf %13, %14 : vector<64x128xf32>
    %cst_9 = arith.constant 0.000000e+00 : f32
    %16 = vector.broadcast %cst_9 : f32 to vector<64x128xf32>
    %17 = arith.maximumf %15, %16 : vector<64x128xf32>
    %18 = tpu.concatenate %11, %17 in 0 : vector<64x128xf32>, vector<64x128xf32> -> vector<128x128xf32>
    %19 = vector.extract_strided_slice %18 {offsets = [0, 0], sizes = [64, 128], strides = [1, 1]} : vector<128x128xf32> to vector<64x128xf32>
    %20 = arith.truncf %19 : vector<64x128xf32> to vector<64x128xbf16>
    %c0_10 = arith.constant 0 : index
    %c0_11 = arith.constant 0 : index
    %c0_12 = arith.constant 0 : index
    %21 = vector.load %arg6[%c0_10, %c0_11, %c0_12] : memref<9x128x128xbf16, #tpu.memory_space<vmem>>, vector<1x128x128xbf16>
    %22 = vector.shape_cast %21 : vector<1x128x128xbf16> to vector<128x128xbf16>
    %cst_13 = arith.constant dense<0.000000e+00> : vector<64x128xf32>
    %23 = tpu.matmul %20, %22, %cst_13 {dimension_numbers = #tpu.dot_dimension_numbers<[1], [0], [0], [1], [0, 0, 1, 1], [], []>} : vector<64x128xbf16>, vector<128x128xbf16>, vector<64x128xf32> -> vector<64x128xf32>
    %24 = vector.extract_strided_slice %18 {offsets = [1, 0], sizes = [64, 128], strides = [1, 1]} : vector<128x128xf32> to vector<64x128xf32>
    %25 = arith.truncf %24 : vector<64x128xf32> to vector<64x128xbf16>
    %c1 = arith.constant 1 : index
    %c0_14 = arith.constant 0 : index
    %c0_15 = arith.constant 0 : index
    %26 = vector.load %arg6[%c1, %c0_14, %c0_15] : memref<9x128x128xbf16, #tpu.memory_space<vmem>>, vector<1x128x128xbf16>
    %27 = vector.shape_cast %26 : vector<1x128x128xbf16> to vector<128x128xbf16>
    %cst_16 = arith.constant dense<0.000000e+00> : vector<64x128xf32>
    %28 = tpu.matmul %25, %27, %cst_16 {dimension_numbers = #tpu.dot_dimension_numbers<[1], [0], [0], [1], [0, 0, 1, 1], [], []>} : vector<64x128xbf16>, vector<128x128xbf16>, vector<64x128xf32> -> vector<64x128xf32>
    %29 = arith.addf %23, %28 : vector<64x128xf32>
    %30 = vector.extract_strided_slice %18 {offsets = [2, 0], sizes = [64, 128], strides = [1, 1]} : vector<128x128xf32> to vector<64x128xf32>
    %31 = arith.truncf %30 : vector<64x128xf32> to vector<64x128xbf16>
    %c2 = arith.constant 2 : index
    %c0_17 = arith.constant 0 : index
    %c0_18 = arith.constant 0 : index
    %32 = vector.load %arg6[%c2, %c0_17, %c0_18] : memref<9x128x128xbf16, #tpu.memory_space<vmem>>, vector<1x128x128xbf16>
    %33 = vector.shape_cast %32 : vector<1x128x128xbf16> to vector<128x128xbf16>
    %cst_19 = arith.constant dense<0.000000e+00> : vector<64x128xf32>
    %34 = tpu.matmul %31, %33, %cst_19 {dimension_numbers = #tpu.dot_dimension_numbers<[1], [0], [0], [1], [0, 0, 1, 1], [], []>} : vector<64x128xbf16>, vector<128x128xbf16>, vector<64x128xf32> -> vector<64x128xf32>
    %35 = arith.addf %29, %34 : vector<64x128xf32>
    %36 = vector.extract_strided_slice %18 {offsets = [8, 0], sizes = [64, 128], strides = [1, 1]} : vector<128x128xf32> to vector<64x128xf32>
    %37 = arith.truncf %36 : vector<64x128xf32> to vector<64x128xbf16>
    %c3 = arith.constant 3 : index
    %c0_20 = arith.constant 0 : index
    %c0_21 = arith.constant 0 : index
    %38 = vector.load %arg6[%c3, %c0_20, %c0_21] : memref<9x128x128xbf16, #tpu.memory_space<vmem>>, vector<1x128x128xbf16>
    %39 = vector.shape_cast %38 : vector<1x128x128xbf16> to vector<128x128xbf16>
    %cst_22 = arith.constant dense<0.000000e+00> : vector<64x128xf32>
    %40 = tpu.matmul %37, %39, %cst_22 {dimension_numbers = #tpu.dot_dimension_numbers<[1], [0], [0], [1], [0, 0, 1, 1], [], []>} : vector<64x128xbf16>, vector<128x128xbf16>, vector<64x128xf32> -> vector<64x128xf32>
    %41 = arith.addf %35, %40 : vector<64x128xf32>
    %42 = vector.extract_strided_slice %18 {offsets = [9, 0], sizes = [64, 128], strides = [1, 1]} : vector<128x128xf32> to vector<64x128xf32>
    %43 = arith.truncf %42 : vector<64x128xf32> to vector<64x128xbf16>
    %c4 = arith.constant 4 : index
    %c0_23 = arith.constant 0 : index
    %c0_24 = arith.constant 0 : index
    %44 = vector.load %arg6[%c4, %c0_23, %c0_24] : memref<9x128x128xbf16, #tpu.memory_space<vmem>>, vector<1x128x128xbf16>
    %45 = vector.shape_cast %44 : vector<1x128x128xbf16> to vector<128x128xbf16>
    %cst_25 = arith.constant dense<0.000000e+00> : vector<64x128xf32>
    %46 = tpu.matmul %43, %45, %cst_25 {dimension_numbers = #tpu.dot_dimension_numbers<[1], [0], [0], [1], [0, 0, 1, 1], [], []>} : vector<64x128xbf16>, vector<128x128xbf16>, vector<64x128xf32> -> vector<64x128xf32>
    %47 = arith.addf %41, %46 : vector<64x128xf32>
    %48 = vector.extract_strided_slice %18 {offsets = [10, 0], sizes = [64, 128], strides = [1, 1]} : vector<128x128xf32> to vector<64x128xf32>
    %49 = arith.truncf %48 : vector<64x128xf32> to vector<64x128xbf16>
    %c5 = arith.constant 5 : index
    %c0_26 = arith.constant 0 : index
    %c0_27 = arith.constant 0 : index
    %50 = vector.load %arg6[%c5, %c0_26, %c0_27] : memref<9x128x128xbf16, #tpu.memory_space<vmem>>, vector<1x128x128xbf16>
    %51 = vector.shape_cast %50 : vector<1x128x128xbf16> to vector<128x128xbf16>
    %cst_28 = arith.constant dense<0.000000e+00> : vector<64x128xf32>
    %52 = tpu.matmul %49, %51, %cst_28 {dimension_numbers = #tpu.dot_dimension_numbers<[1], [0], [0], [1], [0, 0, 1, 1], [], []>} : vector<64x128xbf16>, vector<128x128xbf16>, vector<64x128xf32> -> vector<64x128xf32>
    %53 = arith.addf %47, %52 : vector<64x128xf32>
    %54 = vector.extract_strided_slice %18 {offsets = [16, 0], sizes = [64, 128], strides = [1, 1]} : vector<128x128xf32> to vector<64x128xf32>
    %55 = arith.truncf %54 : vector<64x128xf32> to vector<64x128xbf16>
    %c6 = arith.constant 6 : index
    %c0_29 = arith.constant 0 : index
    %c0_30 = arith.constant 0 : index
    %56 = vector.load %arg6[%c6, %c0_29, %c0_30] : memref<9x128x128xbf16, #tpu.memory_space<vmem>>, vector<1x128x128xbf16>
    %57 = vector.shape_cast %56 : vector<1x128x128xbf16> to vector<128x128xbf16>
    %cst_31 = arith.constant dense<0.000000e+00> : vector<64x128xf32>
    %58 = tpu.matmul %55, %57, %cst_31 {dimension_numbers = #tpu.dot_dimension_numbers<[1], [0], [0], [1], [0, 0, 1, 1], [], []>} : vector<64x128xbf16>, vector<128x128xbf16>, vector<64x128xf32> -> vector<64x128xf32>
    %59 = arith.addf %53, %58 : vector<64x128xf32>
    %60 = vector.extract_strided_slice %18 {offsets = [17, 0], sizes = [64, 128], strides = [1, 1]} : vector<128x128xf32> to vector<64x128xf32>
    %61 = arith.truncf %60 : vector<64x128xf32> to vector<64x128xbf16>
    %c7 = arith.constant 7 : index
    %c0_32 = arith.constant 0 : index
    %c0_33 = arith.constant 0 : index
    %62 = vector.load %arg6[%c7, %c0_32, %c0_33] : memref<9x128x128xbf16, #tpu.memory_space<vmem>>, vector<1x128x128xbf16>
    %63 = vector.shape_cast %62 : vector<1x128x128xbf16> to vector<128x128xbf16>
    %cst_34 = arith.constant dense<0.000000e+00> : vector<64x128xf32>
    %64 = tpu.matmul %61, %63, %cst_34 {dimension_numbers = #tpu.dot_dimension_numbers<[1], [0], [0], [1], [0, 0, 1, 1], [], []>} : vector<64x128xbf16>, vector<128x128xbf16>, vector<64x128xf32> -> vector<64x128xf32>
    %65 = arith.addf %59, %64 : vector<64x128xf32>
    %66 = vector.extract_strided_slice %18 {offsets = [18, 0], sizes = [64, 128], strides = [1, 1]} : vector<128x128xf32> to vector<64x128xf32>
    %67 = arith.truncf %66 : vector<64x128xf32> to vector<64x128xbf16>
    %c8 = arith.constant 8 : index
    %c0_35 = arith.constant 0 : index
    %c0_36 = arith.constant 0 : index
    %68 = vector.load %arg6[%c8, %c0_35, %c0_36] : memref<9x128x128xbf16, #tpu.memory_space<vmem>>, vector<1x128x128xbf16>
    %69 = vector.shape_cast %68 : vector<1x128x128xbf16> to vector<128x128xbf16>
    %cst_37 = arith.constant dense<0.000000e+00> : vector<64x128xf32>
    %70 = tpu.matmul %67, %69, %cst_37 {dimension_numbers = #tpu.dot_dimension_numbers<[1], [0], [0], [1], [0, 0, 1, 1], [], []>} : vector<64x128xbf16>, vector<128x128xbf16>, vector<64x128xf32> -> vector<64x128xf32>
    %71 = arith.addf %65, %70 : vector<64x128xf32>
    %c0_38 = arith.constant 0 : index
    %c0_39 = arith.constant 0 : index
    %72 = vector.load %arg7[%c0_38, %c0_39] : memref<1x128xf32, #tpu.memory_space<vmem>>, vector<1x128xf32>
    %73 = vector.broadcast %72 : vector<1x128xf32> to vector<64x128xf32>
    %74 = arith.addf %71, %73 : vector<64x128xf32>
    %c0_40 = arith.constant 0 : index
    %c0_41 = arith.constant 0 : index
    %c0_42 = arith.constant 0 : index
    %75 = vector.load %arg9[%c0_40, %c0_41, %c0_42] : memref<1x64x128xf32, #tpu.memory_space<vmem>>, vector<1x64x128xf32>
    %76 = vector.shape_cast %75 : vector<1x64x128xf32> to vector<64x128xf32>
    %77 = vector.shape_cast %74 : vector<64x128xf32> to vector<1x64x128xf32>
    tpu.vector_store %arg9[%c0_40, %c0_41, %c0_42], %77 {strides = array<i32>} : memref<1x64x128xf32, #tpu.memory_space<vmem>>, vector<1x64x128xf32>,
    %c0_43 = arith.constant 0 : index
    %c0_44 = arith.constant 0 : index
    %78 = vector.load %arg8[%c0_43, %c0_44] : memref<64x1xf32, #tpu.memory_space<vmem>>, vector<64x1xf32>
    %79 = vector.broadcast %78 : vector<64x1xf32> to vector<64x128xf32>
    %80 = arith.mulf %74, %79 : vector<64x128xf32>
    %cst_45 = arith.constant dense<0.000000e+00> : vector<128xf32>
    %81 = vector.multi_reduction <add>, %80, %cst_45 [0] : vector<64x128xf32> to vector<128xf32>
    %82 = vector.shape_cast %81 : vector<128xf32> to vector<1x128xf32>
    %83 = arith.mulf %80, %74 : vector<64x128xf32>
    %cst_46 = arith.constant dense<0.000000e+00> : vector<128xf32>
    %84 = vector.multi_reduction <add>, %83, %cst_46 [0] : vector<64x128xf32> to vector<128xf32>
    %85 = vector.shape_cast %84 : vector<128xf32> to vector<1x128xf32>
    %86 = tpu.concatenate %82, %85 in 0 : vector<1x128xf32>, vector<1x128xf32> -> vector<2x128xf32>
    %c0_i32 = arith.constant 0 : i32
    %87 = arith.cmpi eq, %arg1, %c0_i32 : i32
    %88 = arith.extui %87 : i1 to i32
    %c0_i32_47 = arith.constant 0 : i32
    %89 = arith.cmpi ne, %88, %c0_i32_47 : i32
    scf.if %89 {
      %c0_50 = arith.constant 0 : index
      %c0_51 = arith.constant 0 : index
      %c0_52 = arith.constant 0 : index
      %93 = vector.load %arg10[%c0_50, %c0_51, %c0_52] : memref<1x2x128xf32, #tpu.memory_space<vmem>>, vector<1x2x128xf32>
      %94 = vector.shape_cast %93 : vector<1x2x128xf32> to vector<2x128xf32>
      %95 = vector.shape_cast %86 : vector<2x128xf32> to vector<1x2x128xf32>
      tpu.vector_store %arg10[%c0_50, %c0_51, %c0_52], %95 {strides = array<i32>} : memref<1x2x128xf32, #tpu.memory_space<vmem>>, vector<1x2x128xf32>,
    } else {
    }
    %c0_i32_48 = arith.constant 0 : i32
    %90 = arith.cmpi ne, %arg1, %c0_i32_48 : i32
    %91 = arith.extui %90 : i1 to i32
    %c0_i32_49 = arith.constant 0 : i32
    %92 = arith.cmpi ne, %91, %c0_i32_49 : i32
    scf.if %92 {
      %c0_50 = arith.constant 0 : index
      %c0_51 = arith.constant 0 : index
      %c0_52 = arith.constant 0 : index
      %93 = vector.load %arg10[%c0_50, %c0_51, %c0_52] : memref<1x2x128xf32, #tpu.memory_space<vmem>>, vector<1x2x128xf32>
      %94 = vector.shape_cast %93 : vector<1x2x128xf32> to vector<2x128xf32>
      %95 = arith.addf %94, %86 : vector<2x128xf32>
      %c0_53 = arith.constant 0 : index
      %c0_54 = arith.constant 0 : index
      %c0_55 = arith.constant 0 : index
      %96 = vector.load %arg10[%c0_53, %c0_54, %c0_55] : memref<1x2x128xf32, #tpu.memory_space<vmem>>, vector<1x2x128xf32>
      %97 = vector.shape_cast %96 : vector<1x2x128xf32> to vector<2x128xf32>
      %98 = vector.shape_cast %95 : vector<2x128xf32> to vector<1x2x128xf32>
      tpu.vector_store %arg10[%c0_53, %c0_54, %c0_55], %98 {strides = array<i32>} : memref<1x2x128xf32, #tpu.memory_space<vmem>>, vector<1x2x128xf32>,
    } else {
    }
    return
  }
  func.func @transform_0(%arg0: i32, %arg1: i32) -> (i32, i32, i32) {
    %c0_i32 = arith.constant 0 : i32
    %c0_i32_0 = arith.constant 0 : i32
    return %arg0, %arg1, %c0_i32 : i32, i32, i32
  }
  func.func @transform_1(%arg0: i32, %arg1: i32) -> (i32, i32, i32) {
    %c1_i32 = arith.constant 1 : i32
    %0 = arith.addi %arg1, %c1_i32 : i32
    %c0_i32 = arith.constant 0 : i32
    %1 = arith.minsi %0, %c0_i32 : i32
    %c0_i32_0 = arith.constant 0 : i32
    %c0_i32_1 = arith.constant 0 : i32
    return %arg0, %1, %c0_i32_0 : i32, i32, i32
  }
  func.func @transform_2(%arg0: i32, %arg1: i32) -> (i32, i32) {
    %c0_i32 = arith.constant 0 : i32
    %c0_i32_0 = arith.constant 0 : i32
    %c0_i32_1 = arith.constant 0 : i32
    return %c0_i32, %c0_i32_0 : i32, i32
  }
  func.func @transform_3(%arg0: i32, %arg1: i32) -> (i32, i32) {
    %c0_i32 = arith.constant 0 : i32
    %c0_i32_0 = arith.constant 0 : i32
    %c0_i32_1 = arith.constant 0 : i32
    return %c0_i32, %c0_i32_0 : i32, i32
  }
  func.func @transform_4(%arg0: i32, %arg1: i32) -> (i32, i32, i32) {
    %c0_i32 = arith.constant 0 : i32
    %c0_i32_0 = arith.constant 0 : i32
    %c0_i32_1 = arith.constant 0 : i32
    %c0_i32_2 = arith.constant 0 : i32
    return %c0_i32, %c0_i32_0, %c0_i32_1 : i32, i32, i32
  }
  func.func @transform_5(%arg0: i32, %arg1: i32) -> (i32, i32) {
    %c0_i32 = arith.constant 0 : i32
    %c0_i32_0 = arith.constant 0 : i32
    %c0_i32_1 = arith.constant 0 : i32
    return %c0_i32, %c0_i32_0 : i32, i32
  }
  func.func @transform_6(%arg0: i32, %arg1: i32) -> (i32, i32) {
    %c0_i32 = arith.constant 0 : i32
    %c0_i32_0 = arith.constant 0 : i32
    return %arg1, %c0_i32 : i32, i32
  }
  func.func @transform_7(%arg0: i32, %arg1: i32) -> (i32, i32, i32) {
    %c0_i32 = arith.constant 0 : i32
    %c0_i32_0 = arith.constant 0 : i32
    return %arg0, %arg1, %c0_i32 : i32, i32, i32
  }
  func.func @transform_8(%arg0: i32, %arg1: i32) -> (i32, i32, i32) {
    %c0_i32 = arith.constant 0 : i32
    %c0_i32_0 = arith.constant 0 : i32
    %c0_i32_1 = arith.constant 0 : i32
    return %arg0, %c0_i32, %c0_i32_0 : i32, i32, i32
  }
}

module attributes {stable_mosaic.version = 11 : i64} {
  func.func @_bn_relu_kernel(%arg0: i32, %arg1: i32, %arg2: memref<1x64x128xf32, #tpu.memory_space<vmem>>, %arg3: memref<1x128xf32, #tpu.memory_space<vmem>>, %arg4: memref<1x128xf32, #tpu.memory_space<vmem>>, %arg5: memref<1x64x128xf32, #tpu.memory_space<vmem>>) attributes {dimension_semantics = [#tpu.dimension_semantics<parallel>, #tpu.dimension_semantics<parallel>], iteration_bounds = array<i64: 2, 1>, scalar_prefetch = 0 : i64, scratch_operands = 0 : i64, tpu.core_type = #tpu.core_type<tc>, window_params = [{transform_indices = @transform_0, window_bounds = array<i64: 1, 64, 128>}, {pipeline_mode = #tpu.pipeline_mode<synchronous>, transform_indices = @transform_1, window_bounds = array<i64: 1, 128>}, {pipeline_mode = #tpu.pipeline_mode<synchronous>, transform_indices = @transform_2, window_bounds = array<i64: 1, 128>}, {transform_indices = @transform_3, window_bounds = array<i64: 1, 64, 128>}]} {
    %c0 = arith.constant 0 : index
    %c0_0 = arith.constant 0 : index
    %c0_1 = arith.constant 0 : index
    %0 = vector.load %arg2[%c0, %c0_0, %c0_1] : memref<1x64x128xf32, #tpu.memory_space<vmem>>, vector<1x64x128xf32>
    %1 = vector.shape_cast %0 : vector<1x64x128xf32> to vector<64x128xf32>
    %c0_2 = arith.constant 0 : index
    %c0_3 = arith.constant 0 : index
    %2 = vector.load %arg3[%c0_2, %c0_3] : memref<1x128xf32, #tpu.memory_space<vmem>>, vector<1x128xf32>
    %3 = vector.broadcast %2 : vector<1x128xf32> to vector<64x128xf32>
    %4 = arith.mulf %1, %3 : vector<64x128xf32>
    %c0_4 = arith.constant 0 : index
    %c0_5 = arith.constant 0 : index
    %5 = vector.load %arg4[%c0_4, %c0_5] : memref<1x128xf32, #tpu.memory_space<vmem>>, vector<1x128xf32>
    %6 = vector.broadcast %5 : vector<1x128xf32> to vector<64x128xf32>
    %7 = arith.addf %4, %6 : vector<64x128xf32>
    %cst = arith.constant 0.000000e+00 : f32
    %8 = vector.broadcast %cst : f32 to vector<64x128xf32>
    %9 = arith.maximumf %7, %8 : vector<64x128xf32>
    %c0_6 = arith.constant 0 : index
    %c0_7 = arith.constant 0 : index
    %c0_8 = arith.constant 0 : index
    %10 = vector.load %arg5[%c0_6, %c0_7, %c0_8] : memref<1x64x128xf32, #tpu.memory_space<vmem>>, vector<1x64x128xf32>
    %11 = vector.shape_cast %10 : vector<1x64x128xf32> to vector<64x128xf32>
    %12 = vector.shape_cast %9 : vector<64x128xf32> to vector<1x64x128xf32>
    tpu.vector_store %arg5[%c0_6, %c0_7, %c0_8], %12 {strides = array<i32>} : memref<1x64x128xf32, #tpu.memory_space<vmem>>, vector<1x64x128xf32>,
    return
  }
  func.func @transform_0(%arg0: i32, %arg1: i32) -> (i32, i32, i32) {
    %c0_i32 = arith.constant 0 : i32
    %c0_i32_0 = arith.constant 0 : i32
    return %arg0, %arg1, %c0_i32 : i32, i32, i32
  }
  func.func @transform_1(%arg0: i32, %arg1: i32) -> (i32, i32) {
    %c0_i32 = arith.constant 0 : i32
    %c0_i32_0 = arith.constant 0 : i32
    %c0_i32_1 = arith.constant 0 : i32
    return %c0_i32, %c0_i32_0 : i32, i32
  }
  func.func @transform_2(%arg0: i32, %arg1: i32) -> (i32, i32) {
    %c0_i32 = arith.constant 0 : i32
    %c0_i32_0 = arith.constant 0 : i32
    %c0_i32_1 = arith.constant 0 : i32
    return %c0_i32, %c0_i32_0 : i32, i32
  }
  func.func @transform_3(%arg0: i32, %arg1: i32) -> (i32, i32, i32) {
    %c0_i32 = arith.constant 0 : i32
    %c0_i32_0 = arith.constant 0 : i32
    return %arg0, %arg1, %c0_i32 : i32, i32, i32
  }
}

</mosaic_0001>

<llo_original>
// kernel: unet_down_block.5
$region0: #{unet_down_block.5}
  #allocation0 [shape = 'u32[]', space=smem, size = 0x4, offset = 0x4, fixed_abs, tag = 'smem constant byte address 0x4 - core index']
  #allocation1 [shape = 'u32[144,128]{1,0:T(1,128)}', space=vmem, size = 0x12000, scoped, tag = 'internal scratch']
  %s0 = inlined_call_operand.vmem [shape: f32[2,64,128], index: 0, kind: input, shape index: {}]
  %s1 = inlined_call_operand.vmem [shape: f32[1,128], index: 1, kind: input, shape index: {}]
  %s2 = inlined_call_operand.vmem [shape: f32[1,128], index: 2, kind: input, shape index: {}]
  %s3 = inlined_call_operand.vmem [shape: f32[2,64,128], index: 3, kind: output, shape index: {}]
  %s4 = sld [smem:[#allocation0]]
  $region45: #{unet_down_block.5} parent=0
    _
  %s6 = ssub.s32 1, %s4
  %s7 = scalar_select 0, %s6, %s4
  loop: start=0, step=1, limit=4
  $region2: #{unet_down_block.5} parent=0 // loop_pre_header
    _
  $region3: #{unet_down_block.5} parent=0 // loop_header
    %s9 = sphi 0, %s13
    %p10 = scmp.ge.s32.totalorder %s9, 4
    %s16 = sphi 0, %s28
    %s17 = sphi 0, %s24
    %s18 = sphi 0, %s16
    %s19 = sphi 0, %s17
    %s20 = sphi 0, %s18
    %s21 = sphi 0, %s19
    %s33 = sphi 0, %s35
    %s36 = sphi 0, %s33
    %s37 = sphi 0, %s36
    %s53 = sphi 0, %s37
    %s57 = sphi 0, %s57
    %s59 = sphi 0, %s57
    %s60 = sphi 0, %s59
    %s74 = sphi 0, %s60
    %s78 = sphi 0, %s78
    %s80 = sphi 0, %s78
    %s81 = sphi 0, %s80
    %s95 = sphi 0, %s81
    %s103 = sphi 0, %s105
    %s106 = sphi 0, %s103
    %s107 = sphi 0, %s106
    %s123 = sphi 0, %s107
  $region4: #{unet_down_block.5} parent=0 // loop_header_branch
    %12 = sbr.rel (%p10) target = $region8
  $region5: #{unet_down_block.5} parent=0 // loop_body
    %s14 = ssub.s32 %s9, 1
    %s15 = ssub.s32 %s9, 2
    %s22 = sadd.s32 1, %s17
    %p23 = scmp.ge.s32.totalorder %s22, 1
    %s24 = scalar_select %p23, 0, %s22
    %s25 = sadd.s32 1, %s16
    %s26 = scalar_select %p23, %s25, %s16
    %p27 = scmp.ge.s32.totalorder %s26, 2
    %s28 = scalar_select %p27, 0, %s26
    %s29 = ssub.s32 %s16, %s28
    %s30 = ssub.s32 %s17, %s24
    %s31 = sor.u32 %s29, %s30
    %p32 = scmp.eq.s32.totalorder %s31, 0
    %s34 = sadd.s32 %s33, 1
    %s35 = scalar_select %p32, %s33, %s34
    %p38 = pneg %p32
    %p39 = scmp.eq.s32.totalorder %s9, 1
    %p40 = por %p38, %p39
    %p41 = scmp.ne.s32.totalorder %s33, %s36
    %p42 = scmp.eq.s32.totalorder %s9, 0
    %p43 = por %p41, %p42
    %p44 = scmp.ne.s32.totalorder %s33, %s36
    %p45 = scmp.eq.s32.totalorder %s14, 1
    %p46 = por %p44, %p45
    %p47 = scmp.ne.s32.totalorder %s36, %s37
    %p48 = scmp.eq.s32.totalorder %s14, 0
    %p49 = por %p47, %p48
    %p50 = scmp.ne.s32.totalorder %s36, %s37
    %p51 = scmp.eq.s32.totalorder %s15, 1
    %p52 = por %p50, %p51
    %p54 = scmp.ne.s32.totalorder %s37, %s53
    %p55 = scmp.eq.s32.totalorder %s15, 0
    %p56 = por %p54, %p55
    %s58 = sadd.s32 %s57, 1
    %p61 = scmp.eq.s32.totalorder %s9, 1
    %p62 = scmp.ne.s32.totalorder %s57, %s59
    %p63 = scmp.eq.s32.totalorder %s9, 0
    %p64 = por %p62, %p63
    %p65 = scmp.ne.s32.totalorder %s57, %s59
    %p66 = scmp.eq.s32.totalorder %s14, 1
    %p67 = por %p65, %p66
    %p68 = scmp.ne.s32.totalorder %s59, %s60
    %p69 = scmp.eq.s32.totalorder %s14, 0
    %p70 = por %p68, %p69
    %p71 = scmp.ne.s32.totalorder %s59, %s60
    %p72 = scmp.eq.s32.totalorder %s15, 1
    %p73 = por %p71, %p72
    %p75 = scmp.ne.s32.totalorder %s60, %s74
    %p76 = scmp.eq.s32.totalorder %s15, 0
    %p77 = por %p75, %p76
    %s79 = sadd.s32 %s78, 1
    %p82 = scmp.eq.s32.totalorder %s9, 1
    %p83 = scmp.ne.s32.totalorder %s78, %s80
    %p84 = scmp.eq.s32.totalorder %s9, 0
    %p85 = por %p83, %p84
    %p86 = scmp.ne.s32.totalorder %s78, %s80
    %p87 = scmp.eq.s32.totalorder %s14, 1
    %p88 = por %p86, %p87
    %p89 = scmp.ne.s32.totalorder %s80, %s81
    %p90 = scmp.eq.s32.totalorder %s14, 0
    %p91 = por %p89, %p90
    %p92 = scmp.ne.s32.totalorder %s80, %s81
    %p93 = scmp.eq.s32.totalorder %s15, 1
    %p94 = por %p92, %p93
    %p96 = scmp.ne.s32.totalorder %s81, %s95
    %p97 = scmp.eq.s32.totalorder %s15, 0
    %p98 = por %p96, %p97
    %s99 = ssub.s32 %s16, %s28
    %s100 = ssub.s32 %s17, %s24
    %s101 = sor.u32 %s99, %s100
    %p102 = scmp.eq.s32.totalorder %s101, 0
    %s104 = sadd.s32 %s103, 1
    %s105 = scalar_select %p102, %s103, %s104
    %p108 = pneg %p102
    %p109 = scmp.eq.s32.totalorder %s9, 1
    %p110 = por %p108, %p109
    %p111 = scmp.ne.s32.totalorder %s103, %s106
    %p112 = scmp.eq.s32.totalorder %s9, 0
    %p113 = por %p111, %p112
    %p114 = scmp.ne.s32.totalorder %s103, %s106
    %p115 = scmp.eq.s32.totalorder %s14, 1
    %p116 = por %p114, %p115
    %p117 = scmp.ne.s32.totalorder %s106, %s107
    %p118 = scmp.eq.s32.totalorder %s14, 0
    %p119 = por %p117, %p118
    %p120 = scmp.ne.s32.totalorder %s106, %s107
    %p121 = scmp.eq.s32.totalorder %s15, 1
    %p122 = por %p120, %p121
    %p124 = scmp.ne.s32.totalorder %s107, %s123
    %p125 = scmp.eq.s32.totalorder %s15, 0
    %p126 = por %p124, %p125
    %p127 = scmp.le.s32.totalorder 1, %s9
    %p128 = scmp.lt.s32.totalorder %s9, 3
    %p129 = pnand %p127, %p128
    %p130 = pneg %p129
    // Predicated region
    $region9: #{unet_down_block.5} parent=5 // pred_check
      _
    $region10: #{unet_down_block.5} parent=5 // pred_check_branch
      %132 = sbr.rel (%p129) target = $region12
    $region11: #{unet_down_block.5} parent=5 // pred_region
      %s133 = ssub.s32 %s9, 1
      // Predicated region
      $region13: #{unet_down_block.5} parent=11 // pred_check
        %p134 = pneg %p70
      $region14: #{unet_down_block.5} parent=11 // pred_check_branch
        %136 = sbr.rel (%p134) target = $region16
      $region15: #{unet_down_block.5} parent=11 // pred_region
        _
      $region16: #{unet_down_block.5} parent=11 // pred_fallthru
        _
      // Predicated region
      $region17: #{unet_down_block.5} parent=11 // pred_check
        %p137 = pneg %p91
      $region18: #{unet_down_block.5} parent=11 // pred_check_branch
        %139 = sbr.rel (%p137) target = $region20
      $region19: #{unet_down_block.5} parent=11 // pred_region
        _
      $region20: #{unet_down_block.5} parent=11 // pred_fallthru
        _
    $region12: #{unet_down_block.5} parent=5 // pred_fallthru
      _
    %p140 = scmp.lt.s32.totalorder %s9, 2
    // Predicated region
    $region21: #{unet_down_block.5} parent=5 // pred_check
      %p141 = pneg %p140
    $region22: #{unet_down_block.5} parent=5 // pred_check_branch
      %143 = sbr.rel (%p141) target = $region24
    $region23: #{unet_down_block.5} parent=5 // pred_region
      // Predicated region
      $region25: #{unet_down_block.5} parent=23 // pred_check
        %p144 = pneg %p43
      $region26: #{unet_down_block.5} parent=23 // pred_check_branch
        %146 = sbr.rel (%p144) target = $region28
      $region27: #{unet_down_block.5} parent=23 // pred_region
        %s147 = smul.u32 8, %s17
        %p148 = scmp.lt.s32.totalorder %s16, 1
        %s149 = scalar_select %p148, %s16, 1
        %p150 = scmp.lt.s32.totalorder %s147, 7
        %s151 = scalar_select %p150, %s147, 7
        %s152 = smul.addr %s149, 8
        %s153 = sadd.s32 %s151, %s152
        %s154 = smul.addr %s153, 8
        %s155 = scalar_lea.vmem %s0, %s154
        %s156 = smul.u32 8, %s17
      $region28: #{unet_down_block.5} parent=23 // pred_fallthru
        _
    $region24: #{unet_down_block.5} parent=5 // pred_fallthru
      _
    %p157 = scmp.le.s32.totalorder 1, %s9
    %p158 = scmp.lt.s32.totalorder %s9, 3
    %p159 = pnand %p157, %p158
    %p160 = pneg %p159
    // Predicated region
    $region29: #{unet_down_block.5} parent=5 // pred_check
      _
    $region30: #{unet_down_block.5} parent=5 // pred_check_branch
      %162 = sbr.rel (%p159) target = $region32
    $region31: #{unet_down_block.5} parent=5 // pred_region
      %s163 = ssub.s32 %s9, 1
      %s164 = smul.u32 8, %s19
      %p165 = scmp.lt.s32.totalorder %s18, 1
      %s166 = scalar_select %p165, %s18, 1
      %p167 = scmp.lt.s32.totalorder %s164, 7
      %s168 = scalar_select %p167, %s164, 7
      %s169 = smul.addr %s166, 8
      %s170 = sadd.s32 %s168, %s169
      %s171 = smul.addr %s170, 8
      %s172 = scalar_lea.vmem %s0, %s171
      %p173 = pneg %p49
      %p174 = pneg %p46
      %p175 = pneg %p70
      %p176 = pneg %p67
      %p177 = pneg %p91
      %p178 = pneg %p88
      %p179 = pneg %p119
      %p180 = pneg %p116
      %s181 = smul.u32 8, %s19
      %p182 = scmp.lt.s32.totalorder %s18, 1
      %s183 = scalar_select %p182, %s18, 1
      %p184 = scmp.lt.s32.totalorder %s181, 7
      %s185 = scalar_select %p184, %s181, 7
      %s186 = smul.addr %s183, 8
      %s187 = sadd.s32 %s185, %s186
      %s188 = smul.addr %s187, 8
      %s189 = scalar_lea.vmem %s3, %s188
      %s190 = smul.u32 8, %s19
      %p191 = scmp.lt.s32.totalorder %s18, 1
      %s192 = scalar_select %p191, %s18, 1
      %p193 = scmp.lt.s32.totalorder %s190, 7
      %s194 = scalar_select %p193, %s190, 7
      %s195 = smul.addr %s192, 8
      %s196 = sadd.s32 %s194, %s195
      %s197 = smul.addr %s196, 8
      %s198 = scalar_lea.vmem %s0, %s197
      %s199 = smul.u32 8, %s19
      %s200 = smul.u32 8, %s19
      %p201 = scmp.lt.s32.totalorder %s18, 1
      %s202 = scalar_select %p201, %s18, 1
      %p203 = scmp.lt.s32.totalorder %s200, 7
      %s204 = scalar_select %p203, %s200, 7
      %s205 = smul.addr %s202, 8
      %s206 = sadd.s32 %s204, %s205
      %s207 = smul.addr %s206, 8
      %s208 = scalar_lea.vmem %s3, %s207
      %s209 = smul.u32 8, %s19
      %v210 = vld [vmem:[%s198] sm:$0xff]
      %v211 = vld [vmem:[%s198 + $0x8] sm:$0xff]
      %v212 = vld [vmem:[%s198 + $0x10] sm:$0xff]
      %v213 = vld [vmem:[%s198 + $0x18] sm:$0xff]
      %v214 = vld [vmem:[%s198 + $0x20] sm:$0xff]
      %v215 = vld [vmem:[%s198 + $0x28] sm:$0xff]
      %v216 = vld [vmem:[%s198 + $0x30] sm:$0xff]
      %v217 = vld [vmem:[%s198 + $0x38] sm:$0xff]
      %v218 = vld [vmem:[%s1] sm:$0x1]
      %v220 = vlaneseq
      %v221 = vshrl.u32 %v220, 7
      %v222 = vsub.s32 0, %v221
      %v223 = vrot.slane %v218, %v222
      %v225 = vmul.f32 %v210, %v223
      %v226 = vmul.f32 %v211, %v223
      %v227 = vmul.f32 %v212, %v223
      %v228 = vmul.f32 %v213, %v223
      %v229 = vmul.f32 %v214, %v223
      %v230 = vmul.f32 %v215, %v223
      %v231 = vmul.f32 %v216, %v223
      %v232 = vmul.f32 %v217, %v223
      %v233 = vld [vmem:[%s2] sm:$0x1]
      %v235 = vlaneseq
      %v236 = vshrl.u32 %v235, 7
      %v237 = vsub.s32 0, %v236
      %v238 = vrot.slane %v233, %v237
      %v240 = vadd.f32 %v225, %v238
      %v241 = vadd.f32 %v226, %v238
      %v242 = vadd.f32 %v227, %v238
      %v243 = vadd.f32 %v228, %v238
      %v244 = vadd.f32 %v229, %v238
      %v245 = vadd.f32 %v230, %v238
      %v246 = vadd.f32 %v231, %v238
      %v247 = vadd.f32 %v232, %v238
      %v248 = vmax.f32 %v240, 0.0
      %v249 = vmax.f32 %v241, 0.0
      %v250 = vmax.f32 %v242, 0.0
      %v251 = vmax.f32 %v243, 0.0
      %v252 = vmax.f32 %v244, 0.0
      %v253 = vmax.f32 %v245, 0.0
      %v254 = vmax.f32 %v246, 0.0
      %v255 = vmax.f32 %v247, 0.0
      %256 = vst [vmem:[%s208] sm:$0xff] %v248
      %257 = vst [vmem:[%s208 + $0x8] sm:$0xff] %v249
      %258 = vst [vmem:[%s208 + $0x10] sm:$0xff] %v250
      %259 = vst [vmem:[%s208 + $0x18] sm:$0xff] %v251
      %260 = vst [vmem:[%s208 + $0x20] sm:$0xff] %v252
      %261 = vst [vmem:[%s208 + $0x28] sm:$0xff] %v253
      %262 = vst [vmem:[%s208 + $0x30] sm:$0xff] %v254
      %263 = vst [vmem:[%s208 + $0x38] sm:$0xff] %v255
      %s264 = smul.u32 8, %s19
      %p265 = scmp.lt.s32.totalorder %s18, 1
      %s266 = scalar_select %p265, %s18, 1
      %p267 = scmp.lt.s32.totalorder %s264, 7
      %s268 = scalar_select %p267, %s264, 7
      %s269 = smul.addr %s266, 8
      %s270 = sadd.s32 %s268, %s269
      %s271 = smul.addr %s270, 8
      %s272 = scalar_lea.vmem %s3, %s271
      // Predicated region
      $region33: #{unet_down_block.5} parent=31 // pred_check
        %p273 = pneg %p116
      $region34: #{unet_down_block.5} parent=31 // pred_check_branch
        %275 = sbr.rel (%p273) target = $region36
      $region35: #{unet_down_block.5} parent=31 // pred_region
        %s276 = smul.u32 8, %s19
      $region36: #{unet_down_block.5} parent=31 // pred_fallthru
        _
    $region32: #{unet_down_block.5} parent=5 // pred_fallthru
      _
    %p277 = scmp.le.s32.totalorder 2, %s9
    // Predicated region
    $region37: #{unet_down_block.5} parent=5 // pred_check
      %p278 = pneg %p277
    $region38: #{unet_down_block.5} parent=5 // pred_check_branch
      %280 = sbr.rel (%p278) target = $region40
    $region39: #{unet_down_block.5} parent=5 // pred_region
      %s281 = ssub.s32 %s9, 2
      // Predicated region
      $region41: #{unet_down_block.5} parent=39 // pred_check
        %p282 = pneg %p122
      $region42: #{unet_down_block.5} parent=39 // pred_check_branch
        %284 = sbr.rel (%p282) target = $region44
      $region43: #{unet_down_block.5} parent=39 // pred_region
        %s285 = smul.u32 8, %s21
        %p286 = scmp.lt.s32.totalorder %s20, 1
        %s287 = scalar_select %p286, %s20, 1
        %p288 = scmp.lt.s32.totalorder %s285, 7
        %s289 = scalar_select %p288, %s285, 7
        %s290 = smul.addr %s287, 8
        %s291 = sadd.s32 %s289, %s290
        %s292 = smul.addr %s291, 8
        %s293 = scalar_lea.vmem %s3, %s292
      $region44: #{unet_down_block.5} parent=39 // pred_fallthru
        _
    $region40: #{unet_down_block.5} parent=5 // pred_fallthru
      _
  $region6: #{unet_down_block.5} parent=0 // loop_footer
    %s13 = sadd.s32 1, %s9
  $region7: #{unet_down_block.5} parent=0 // loop_footer_branch
    %8 = sbr.rel target = $region3
  $region8: #{unet_down_block.5} parent=0 // loop_exit
    _

// kernel: unet_down_block.3
$region0: #{unet_down_block.3}
  #allocation0 [shape = 'u32[]', space=smem, size = 0x4, offset = 0x4, fixed_abs, tag = 'smem constant byte address 0x4 - core index']
  #allocation1 [shape = 'u32[144,128]{1,0:T(1,128)}', space=vmem, size = 0x12000, scoped, tag = 'internal scratch']
  %s0 = inlined_call_operand.vmem [shape: bf16[2,64,4], index: 0, kind: input, shape index: {}, may-alias: {0,1}]
  %s1 = inlined_call_operand.vmem [shape: bf16[2,64,4], index: 1, kind: input, shape index: {}, may-alias: {0,1}]
  %s2 = inlined_call_operand.vmem [shape: bf16[9,4,128], index: 2, kind: input, shape index: {}]
  %s3 = inlined_call_operand.vmem [shape: f32[1,128], index: 3, kind: input, shape index: {}]
  %s4 = inlined_call_operand.vmem [shape: f32[64,1], index: 4, kind: input, shape index: {}]
  %s5 = inlined_call_operand.vmem [shape: f32[2,64,128], index: 5, kind: output, shape index: {0}]
  %s6 = inlined_call_operand.vmem [shape: f32[2,2,128], index: 6, kind: output, shape index: {1}]
  %7 = xla_tuple %s5, %s6
  %s8 = sld [smem:[#allocation0]]
  $region69: #{unet_down_block.3} parent=0
    _
  %s10 = ssub.s32 1, %s8
  %s11 = scalar_select 0, %s10, %s8
  loop: start=0, step=1, limit=4
  $region2: #{unet_down_block.3} parent=0 // loop_pre_header
    _
  $region3: #{unet_down_block.3} parent=0 // loop_header
    %s13 = sphi 0, %s17
    %p14 = scmp.ge.s32.totalorder %s13, 4
    %s20 = sphi 0, %s32
    %s21 = sphi 0, %s28
    %s22 = sphi 0, %s20
    %s23 = sphi 0, %s21
    %s24 = sphi 0, %s22
    %s25 = sphi 0, %s23
    %s37 = sphi 0, %s39
    %s40 = sphi 0, %s37
    %s41 = sphi 0, %s40
    %s57 = sphi 0, %s41
    %s71 = sphi 0, %s73
    %s74 = sphi 0, %s71
    %s75 = sphi 0, %s74
    %s91 = sphi 0, %s75
    %s95 = sphi 0, %s95
    %s97 = sphi 0, %s95
    %s98 = sphi 0, %s97
    %s112 = sphi 0, %s98
    %s116 = sphi 0, %s116
    %s118 = sphi 0, %s116
    %s119 = sphi 0, %s118
    %s133 = sphi 0, %s119
    %s139 = sphi 0, %s141
    %s142 = sphi 0, %s139
    %s143 = sphi 0, %s142
    %s159 = sphi 0, %s143
    %s167 = sphi 0, %s169
    %s170 = sphi 0, %s167
    %s171 = sphi 0, %s170
    %s187 = sphi 0, %s171
    %s193 = sphi 0, %s195
    %s196 = sphi 0, %s193
    %s197 = sphi 0, %s196
    %s213 = sphi 0, %s197
  $region4: #{unet_down_block.3} parent=0 // loop_header_branch
    %16 = sbr.rel (%p14) target = $region8
  $region5: #{unet_down_block.3} parent=0 // loop_body
    %s18 = ssub.s32 %s13, 1
    %s19 = ssub.s32 %s13, 2
    %s26 = sadd.s32 1, %s21
    %p27 = scmp.ge.s32.totalorder %s26, 1
    %s28 = scalar_select %p27, 0, %s26
    %s29 = sadd.s32 1, %s20
    %s30 = scalar_select %p27, %s29, %s20
    %p31 = scmp.ge.s32.totalorder %s30, 2
    %s32 = scalar_select %p31, 0, %s30
    %s33 = ssub.s32 %s20, %s32
    %s34 = ssub.s32 %s21, %s28
    %s35 = sor.u32 %s33, %s34
    %p36 = scmp.eq.s32.totalorder %s35, 0
    %s38 = sadd.s32 %s37, 1
    %s39 = scalar_select %p36, %s37, %s38
    %p42 = pneg %p36
    %p43 = scmp.eq.s32.totalorder %s13, 1
    %p44 = por %p42, %p43
    %p45 = scmp.ne.s32.totalorder %s37, %s40
    %p46 = scmp.eq.s32.totalorder %s13, 0
    %p47 = por %p45, %p46
    %p48 = scmp.ne.s32.totalorder %s37, %s40
    %p49 = scmp.eq.s32.totalorder %s18, 1
    %p50 = por %p48, %p49
    %p51 = scmp.ne.s32.totalorder %s40, %s41
    %p52 = scmp.eq.s32.totalorder %s18, 0
    %p53 = por %p51, %p52
    %p54 = scmp.ne.s32.totalorder %s40, %s41
    %p55 = scmp.eq.s32.totalorder %s19, 1
    %p56 = por %p54, %p55
    %p58 = scmp.ne.s32.totalorder %s41, %s57
    %p59 = scmp.eq.s32.totalorder %s19, 0
    %p60 = por %p58, %p59
    %s61 = sadd.s32 %s21, 1
    %p62 = scmp.lt.s32.totalorder %s61, 0
    %s63 = scalar_select %p62, %s61, 0
    %s64 = sadd.s32 %s28, 1
    %p65 = scmp.lt.s32.totalorder %s64, 0
    %s66 = scalar_select %p65, %s64, 0
    %s67 = ssub.s32 %s20, %s32
    %s68 = ssub.s32 %s63, %s66
    %s69 = sor.u32 %s67, %s68
    %p70 = scmp.eq.s32.totalorder %s69, 0
    %s72 = sadd.s32 %s71, 1
    %s73 = scalar_select %p70, %s71, %s72
    %p76 = pneg %p70
    %p77 = scmp.eq.s32.totalorder %s13, 1
    %p78 = por %p76, %p77
    %p79 = scmp.ne.s32.totalorder %s71, %s74
    %p80 = scmp.eq.s32.totalorder %s13, 0
    %p81 = por %p79, %p80
    %p82 = scmp.ne.s32.totalorder %s71, %s74
    %p83 = scmp.eq.s32.totalorder %s18, 1
    %p84 = por %p82, %p83
    %p85 = scmp.ne.s32.totalorder %s74, %s75
    %p86 = scmp.eq.s32.totalorder %s18, 0
    %p87 = por %p85, %p86
    %p88 = scmp.ne.s32.totalorder %s74, %s75
    %p89 = scmp.eq.s32.totalorder %s19, 1
    %p90 = por %p88, %p89
    %p92 = scmp.ne.s32.totalorder %s75, %s91
    %p93 = scmp.eq.s32.totalorder %s19, 0
    %p94 = por %p92, %p93
    %s96 = sadd.s32 %s95, 1
    %p99 = scmp.eq.s32.totalorder %s13, 1
    %p100 = scmp.ne.s32.totalorder %s95, %s97
    %p101 = scmp.eq.s32.totalorder %s13, 0
    %p102 = por %p100, %p101
    %p103 = scmp.ne.s32.totalorder %s95, %s97
    %p104 = scmp.eq.s32.totalorder %s18, 1
    %p105 = por %p103, %p104
    %p106 = scmp.ne.s32.totalorder %s97, %s98
    %p107 = scmp.eq.s32.totalorder %s18, 0
    %p108 = por %p106, %p107
    %p109 = scmp.ne.s32.totalorder %s97, %s98
    %p110 = scmp.eq.s32.totalorder %s19, 1
    %p111 = por %p109, %p110
    %p113 = scmp.ne.s32.totalorder %s98, %s112
    %p114 = scmp.eq.s32.totalorder %s19, 0
    %p115 = por %p113, %p114
    %s117 = sadd.s32 %s116, 1
    %p120 = scmp.eq.s32.totalorder %s13, 1
    %p121 = scmp.ne.s32.totalorder %s116, %s118
    %p122 = scmp.eq.s32.totalorder %s13, 0
    %p123 = por %p121, %p122
    %p124 = scmp.ne.s32.totalorder %s116, %s118
    %p125 = scmp.eq.s32.totalorder %s18, 1
    %p126 = por %p124, %p125
    %p127 = scmp.ne.s32.totalorder %s118, %s119
    %p128 = scmp.eq.s32.totalorder %s18, 0
    %p129 = por %p127, %p128
    %p130 = scmp.ne.s32.totalorder %s118, %s119
    %p131 = scmp.eq.s32.totalorder %s19, 1
    %p132 = por %p130, %p131
    %p134 = scmp.ne.s32.totalorder %s119, %s133
    %p135 = scmp.eq.s32.totalorder %s19, 0
    %p136 = por %p134, %p135
    %s137 = ssub.s32 %s21, %s28
    %p138 = scmp.eq.s32.totalorder %s137, 0
    %s140 = sadd.s32 %s139, 1
    %s141 = scalar_select %p138, %s139, %s140
    %p144 = pneg %p138
    %p145 = scmp.eq.s32.totalorder %s13, 1
    %p146 = por %p144, %p145
    %p147 = scmp.ne.s32.totalorder %s139, %s142
    %p148 = scmp.eq.s32.totalorder %s13, 0
    %p149 = por %p147, %p148
    %p150 = scmp.ne.s32.totalorder %s139, %s142
    %p151 = scmp.eq.s32.totalorder %s18, 1
    %p152 = por %p150, %p151
    %p153 = scmp.ne.s32.totalorder %s142, %s143
    %p154 = scmp.eq.s32.totalorder %s18, 0
    %p155 = por %p153, %p154
    %p156 = scmp.ne.s32.totalorder %s142, %s143
    %p157 = scmp.eq.s32.totalorder %s19, 1
    %p158 = por %p156, %p157
    %p160 = scmp.ne.s32.totalorder %s143, %s159
    %p161 = scmp.eq.s32.totalorder %s19, 0
    %p162 = por %p160, %p161
    %s163 = ssub.s32 %s20, %s32
    %s164 = ssub.s32 %s21, %s28
    %s165 = sor.u32 %s163, %s164
    %p166 = scmp.eq.s32.totalorder %s165, 0
    %s168 = sadd.s32 %s167, 1
    %s169 = scalar_select %p166, %s167, %s168
    %p172 = pneg %p166
    %p173 = scmp.eq.s32.totalorder %s13, 1
    %p174 = por %p172, %p173
    %p175 = scmp.ne.s32.totalorder %s167, %s170
    %p176 = scmp.eq.s32.totalorder %s13, 0
    %p177 = por %p175, %p176
    %p178 = scmp.ne.s32.totalorder %s167, %s170
    %p179 = scmp.eq.s32.totalorder %s18, 1
    %p180 = por %p178, %p179
    %p181 = scmp.ne.s32.totalorder %s170, %s171
    %p182 = scmp.eq.s32.totalorder %s18, 0
    %p183 = por %p181, %p182
    %p184 = scmp.ne.s32.totalorder %s170, %s171
    %p185 = scmp.eq.s32.totalorder %s19, 1
    %p186 = por %p184, %p185
    %p188 = scmp.ne.s32.totalorder %s171, %s187
    %p189 = scmp.eq.s32.totalorder %s19, 0
    %p190 = por %p188, %p189
    %s191 = ssub.s32 %s20, %s32
    %p192 = scmp.eq.s32.totalorder %s191, 0
    %s194 = sadd.s32 %s193, 1
    %s195 = scalar_select %p192, %s193, %s194
    %p198 = pneg %p192
    %p199 = scmp.eq.s32.totalorder %s13, 1
    %p200 = por %p198, %p199
    %p201 = scmp.ne.s32.totalorder %s193, %s196
    %p202 = scmp.eq.s32.totalorder %s13, 0
    %p203 = por %p201, %p202
    %p204 = scmp.ne.s32.totalorder %s193, %s196
    %p205 = scmp.eq.s32.totalorder %s18, 1
    %p206 = por %p204, %p205
    %p207 = scmp.ne.s32.totalorder %s196, %s197
    %p208 = scmp.eq.s32.totalorder %s18, 0
    %p209 = por %p207, %p208
    %p210 = scmp.ne.s32.totalorder %s196, %s197
    %p211 = scmp.eq.s32.totalorder %s19, 1
    %p212 = por %p210, %p211
    %p214 = scmp.ne.s32.totalorder %s197, %s213
    %p215 = scmp.eq.s32.totalorder %s19, 0
    %p216 = por %p214, %p215
    %p217 = scmp.le.s32.totalorder 1, %s13
    %p218 = scmp.lt.s32.totalorder %s13, 3
    %p219 = pnand %p217, %p218
    %p220 = pneg %p219
    // Predicated region
    $region9: #{unet_down_block.3} parent=5 // pred_check
      _
    $region10: #{unet_down_block.3} parent=5 // pred_check_branch
      %222 = sbr.rel (%p219) target = $region12
    $region11: #{unet_down_block.3} parent=5 // pred_region
      %s223 = ssub.s32 %s13, 1
      // Predicated region
      $region13: #{unet_down_block.3} parent=11 // pred_check
        %p224 = pneg %p108
      $region14: #{unet_down_block.3} parent=11 // pred_check_branch
        %226 = sbr.rel (%p224) target = $region16
      $region15: #{unet_down_block.3} parent=11 // pred_region
        _
      $region16: #{unet_down_block.3} parent=11 // pred_fallthru
        _
      // Predicated region
      $region17: #{unet_down_block.3} parent=11 // pred_check
        %p227 = pneg %p129
      $region18: #{unet_down_block.3} parent=11 // pred_check_branch
        %229 = sbr.rel (%p227) target = $region20
      $region19: #{unet_down_block.3} parent=11 // pred_region
        _
      $region20: #{unet_down_block.3} parent=11 // pred_fallthru
        _
      // Predicated region
      $region21: #{unet_down_block.3} parent=11 // pred_check
        %p230 = pneg %p155
      $region22: #{unet_down_block.3} parent=11 // pred_check_branch
        %232 = sbr.rel (%p230) target = $region24
      $region23: #{unet_down_block.3} parent=11 // pred_region
        %s233 = smul.u32 8, %s23
        %p234 = scmp.lt.s32.totalorder %s233, 7
        %s235 = scalar_select %p234, %s233, 7
        %s236 = smul.addr %s235, 8
        %s237 = scalar_lea.vmem %s4, %s236
        %s238 = smul.u32 8, %s23
      $region24: #{unet_down_block.3} parent=11 // pred_fallthru
        _
    $region12: #{unet_down_block.3} parent=5 // pred_fallthru
      _
    %p239 = scmp.lt.s32.totalorder %s13, 2
    // Predicated region
    $region25: #{unet_down_block.3} parent=5 // pred_check
      %p240 = pneg %p239
    $region26: #{unet_down_block.3} parent=5 // pred_check_branch
      %242 = sbr.rel (%p240) target = $region28
    $region27: #{unet_down_block.3} parent=5 // pred_region
      // Predicated region
      $region29: #{unet_down_block.3} parent=27 // pred_check
        %p243 = pneg %p47
      $region30: #{unet_down_block.3} parent=27 // pred_check_branch
        %245 = sbr.rel (%p243) target = $region32
      $region31: #{unet_down_block.3} parent=27 // pred_region
        %s246 = smul.u32 8, %s21
        %p247 = scmp.lt.s32.totalorder %s20, 1
        %s248 = scalar_select %p247, %s20, 1
        %p249 = scmp.lt.s32.totalorder %s246, 7
        %s250 = scalar_select %p249, %s246, 7
        %s251 = smul.addr %s248, 8
        %s252 = sadd.s32 %s250, %s251
        %s253 = smul.addr %s252, 4
        %s254 = scalar_lea.vmem %s0, %s253
        %s255 = smul.u32 8, %s21
      $region32: #{unet_down_block.3} parent=27 // pred_fallthru
        _
      // Predicated region
      $region33: #{unet_down_block.3} parent=27 // pred_check
        %p256 = pneg %p81
      $region34: #{unet_down_block.3} parent=27 // pred_check_branch
        %258 = sbr.rel (%p256) target = $region36
      $region35: #{unet_down_block.3} parent=27 // pred_region
        %s259 = sadd.s32 %s21, 1
        %p260 = scmp.lt.s32.totalorder %s259, 0
        %s261 = scalar_select %p260, %s259, 0
        %s262 = smul.u32 8, %s261
        %p263 = scmp.lt.s32.totalorder %s20, 1
        %s264 = scalar_select %p263, %s20, 1
        %p265 = scmp.lt.s32.totalorder %s262, 7
        %s266 = scalar_select %p265, %s262, 7
        %s267 = smul.addr %s264, 8
        %s268 = sadd.s32 %s266, %s267
        %s269 = smul.addr %s268, 4
        %s270 = scalar_lea.vmem %s1, %s269
        %s271 = sadd.s32 %s21, 1
        %p272 = scmp.lt.s32.totalorder %s271, 0
        %s273 = scalar_select %p272, %s271, 0
        %s274 = smul.u32 8, %s273
      $region36: #{unet_down_block.3} parent=27 // pred_fallthru
        _
    $region28: #{unet_down_block.3} parent=5 // pred_fallthru
      _
    %p275 = scmp.le.s32.totalorder 1, %s13
    %p276 = scmp.lt.s32.totalorder %s13, 3
    %p277 = pnand %p275, %p276
    %p278 = pneg %p277
    // Predicated region
    $region37: #{unet_down_block.3} parent=5 // pred_check
      _
    $region38: #{unet_down_block.3} parent=5 // pred_check_branch
      %280 = sbr.rel (%p277) target = $region40
    $region39: #{unet_down_block.3} parent=5 // pred_region
      %s281 = ssub.s32 %s13, 1
      %s282 = smul.u32 8, %s23
      %p283 = scmp.lt.s32.totalorder %s22, 1
      %s284 = scalar_select %p283, %s22, 1
      %p285 = scmp.lt.s32.totalorder %s282, 7
      %s286 = scalar_select %p285, %s282, 7
      %s287 = smul.addr %s284, 8
      %s288 = sadd.s32 %s286, %s287
      %s289 = smul.addr %s288, 4
      %s290 = scalar_lea.vmem %s0, %s289
      %p291 = pneg %p53
      %p292 = pneg %p50
      %s293 = sadd.s32 %s23, 1
      %p294 = scmp.lt.s32.totalorder %s293, 0
      %s295 = scalar_select %p294, %s293, 0
      %s296 = smul.u32 8, %s295
      %p297 = scmp.lt.s32.totalorder %s22, 1
      %s298 = scalar_select %p297, %s22, 1
      %p299 = scmp.lt.s32.totalorder %s296, 7
      %s300 = scalar_select %p299, %s296, 7
      %s301 = smul.addr %s298, 8
      %s302 = sadd.s32 %s300, %s301
      %s303 = smul.addr %s302, 4
      %s304 = scalar_lea.vmem %s1, %s303
      %p305 = pneg %p87
      %p306 = pneg %p84
      %p307 = pneg %p108
      %p308 = pneg %p105
      %p309 = pneg %p129
      %p310 = pneg %p126
      %s311 = smul.u32 8, %s23
      %p312 = scmp.lt.s32.totalorder %s311, 7
      %s313 = scalar_select %p312, %s311, 7
      %s314 = smul.addr %s313, 8
      %s315 = scalar_lea.vmem %s4, %s314
      %p316 = pneg %p155
      %p317 = pneg %p152
      %p318 = pneg %p183
      %p319 = pneg %p180
      %s320 = smul.u32 8, %s23
      %p321 = scmp.lt.s32.totalorder %s22, 1
      %s322 = scalar_select %p321, %s22, 1
      %p323 = scmp.lt.s32.totalorder %s320, 7
      %s324 = scalar_select %p323, %s320, 7
      %s325 = smul.addr %s322, 8
      %s326 = sadd.s32 %s324, %s325
      %s327 = smul.addr %s326, 8
      %s328 = scalar_lea.vmem %s5, %s327
      %p329 = pneg %p209
      %p330 = pneg %p206
      %p331 = scmp.lt.s32.totalorder %s22, 1
      %s332 = scalar_select %p331, %s22, 1
      %s333 = smul.addr %s332, 2
      %s334 = scalar_lea.vmem %s6, %s333
      %s335 = smul.u32 8, %s23
      %p336 = scmp.lt.s32.totalorder %s22, 1
      %s337 = scalar_select %p336, %s22, 1
      %p338 = scmp.lt.s32.totalorder %s335, 7
      %s339 = scalar_select %p338, %s335, 7
      %s340 = smul.addr %s337, 8
      %s341 = sadd.s32 %s339, %s340
      %s342 = smul.addr %s341, 4
      %s343 = scalar_lea.vmem %s0, %s342
      %s344 = smul.u32 8, %s23
      %s345 = sadd.s32 %s23, 1
      %p346 = scmp.lt.s32.totalorder %s345, 0
      %s347 = scalar_select %p346, %s345, 0
      %s348 = smul.u32 8, %s347
      %p349 = scmp.lt.s32.totalorder %s22, 1
      %s350 = scalar_select %p349, %s22, 1
      %p351 = scmp.lt.s32.totalorder %s348, 7
      %s352 = scalar_select %p351, %s348, 7
      %s353 = smul.addr %s350, 8
      %s354 = sadd.s32 %s352, %s353
      %s355 = smul.addr %s354, 4
      %s356 = scalar_lea.vmem %s1, %s355
      %s357 = sadd.s32 %s23, 1
      %p358 = scmp.lt.s32.totalorder %s357, 0
      %s359 = scalar_select %p358, %s357, 0
      %s360 = smul.u32 8, %s359
      %s361 = smul.u32 8, %s23
      %p362 = scmp.lt.s32.totalorder %s361, 7
      %s363 = scalar_select %p362, %s361, 7
      %s364 = smul.addr %s363, 8
      %s365 = scalar_lea.vmem %s4, %s364
      %s366 = smul.u32 8, %s23
      %s367 = smul.u32 8, %s23
      %p368 = scmp.lt.s32.totalorder %s22, 1
      %s369 = scalar_select %p368, %s22, 1
      %p370 = scmp.lt.s32.totalorder %s367, 7
      %s371 = scalar_select %p370, %s367, 7
      %s372 = smul.addr %s369, 8
      %s373 = sadd.s32 %s371, %s372
      %s374 = smul.addr %s373, 8
      %s375 = scalar_lea.vmem %s5, %s374
      %s376 = smul.u32 8, %s23
      %p377 = scmp.lt.s32.totalorder %s22, 1
      %s378 = scalar_select %p377, %s22, 1
      %s379 = smul.addr %s378, 2
      %s380 = scalar_lea.vmem %s6, %s379
      %v382 = vld [vmem:[%s343] sm:$0xf]
      %v383 = vld [vmem:[%s343 + $0x4] sm:$0xf]
      %v384 = vld [vmem:[%s343 + $0x8] sm:$0xf]
      %v385 = vld [vmem:[%s343 + $0xc] sm:$0xf]
      %v386 = vld [vmem:[%s343 + $0x10] sm:$0xf]
      %v387 = vld [vmem:[%s343 + $0x14] sm:$0xf]
      %v388 = vld [vmem:[%s343 + $0x18] sm:$0xf]
      %v389 = vld [vmem:[%s343 + $0x1c] sm:$0xf]
      %v390 = vunpack.c.l.bf16 %v382
      %v391 = vunpack.c.l.bf16 %v383
      %v392 = vunpack.c.l.bf16 %v384
      %v393 = vunpack.c.l.bf16 %v385
      %v394 = vunpack.c.l.bf16 %v386
      %v395 = vunpack.c.l.bf16 %v387
      %v396 = vunpack.c.l.bf16 %v388
      %v397 = vunpack.c.l.bf16 %v389
      %v398 = vld [vmem:[%s356] sm:$0xf]
      %v399 = vld [vmem:[%s356 + $0x4] sm:$0xf]
      %v400 = vld [vmem:[%s356 + $0x8] sm:$0xf]
      %v401 = vunpack.c.l.bf16 %v398
      %v402 = vunpack.c.l.bf16 %v399
      %v403 = vunpack.c.l.bf16 %v400
      %v404 = vpack.c.bf16 %v391, %v390
      %v405 = vpack.c.bf16 %v393, %v392
      %v406 = vpack.c.bf16 %v395, %v394
      %v407 = vpack.c.bf16 %v397, %v396
      %v408 = vld [vmem:[%s2] sm:$0x3]
      %v409 = vpack.c.bf16 %v401, %v401
      %s410 = scalar_lea.vmem %s2, 2
      %v411 = vld [vmem:[%s410] sm:$0x3]
      %vm412 = vsmask.f32 7424
      %v414 = vshrl.u32 %v404, 16
      %v416 = vshll.u32 %v404, 16
      %v418 = vrot.slane %v416, 1
      %v419 = vor.u32 %v414, %v418
      %v421 = vshll.u32 %v405, 16
      %v423 = vrot.slane %v421, 1
      %v424 = vsel %vm412, %v419, %v423
      %v425 = vshrl.u32 %v405, 16
      %v427 = vor.u32 %v425, %v423
      %v429 = vshll.u32 %v406, 16
      %v431 = vrot.slane %v429, 1
      %v432 = vsel %vm412, %v427, %v431
      %v433 = vshrl.u32 %v406, 16
      %v435 = vor.u32 %v433, %v431
      %v437 = vshll.u32 %v407, 16
      %v439 = vrot.slane %v437, 1
      %v440 = vsel %vm412, %v435, %v439
      %v441 = vshrl.u32 %v407, 16
      %v443 = vor.u32 %v441, %v439
      %v445 = vshll.u32 %v409, 16
      %v447 = vrot.slane %v445, 1
      %v448 = vsel %vm412, %v443, %v447
      %vm449 = vcmask 31744
      %v451 = vsel %vm449, %v424, 0
      %v454 = vsel %vm449, %v432, 0
      %v457 = vsel %vm449, %v440, 0
      %v460 = vsel %vm449, %v448, 0
      %vm462 = vcmask 1041408
      %v464 = vsel %vm462, %v411, 0
      %466 = vmatprep.subr.bf16.mxu0 0
      %467 = vmatpush1.bf16.msra.mxu0 %v464
      %468 = vmatprep.subr.bf16.mxu0 0
      %469 = vmatpush1.bf16.msra.mxu0 0
      %470 = vmatprep.subr.bf16.mxu0 0
      %471 = vmatpush1.bf16.msra.mxu0 0
      %472 = vmatprep.subr.bf16.mxu0 0
      %473 = vmatpush1.bf16.msra.mxu0 0
      %474 = vmatprep.subr.bf16.mxu0 0
      %475 = vmatpush1.bf16.msra.mxu0 0
      %476 = vmatprep.subr.bf16.mxu0 0
      %477 = vmatpush1.bf16.msra.mxu0 0
      %478 = vmatprep.subr.bf16.mxu0 0
      %479 = vmatpush1.bf16.msra.mxu0 0
      %480 = vmatprep.subr.bf16.mxu0 0
      %481 = vmatpush1.bf16.msra.mxu0 0
      %482 = vmatprep.subr.bf16.mxu0 0
      %483 = vmatpush1.bf16.msra.mxu0 0
      %484 = vmatprep.subr.bf16.mxu0 0
      %485 = vmatpush1.bf16.msra.mxu0 0
      %486 = vmatprep.subr.bf16.mxu0 0
      %487 = vmatpush1.bf16.msra.mxu0 0
      %488 = vmatprep.subr.bf16.mxu0 0
      %489 = vmatpush1.bf16.msra.mxu0 0
      %490 = vmatprep.subr.bf16.mxu0 0
      %491 = vmatpush1.bf16.msra.mxu0 0
      %492 = vmatprep.subr.bf16.mxu0 0
      %493 = vmatpush1.bf16.msra.mxu0 0
      %494 = vmatprep.subr.bf16.mxu0 0
      %495 = vmatpush1.bf16.msra.mxu0 0
      %496 = vmatprep.subr.bf16.mxu0 0
      %497 = vmatpush1.bf16.msra.mxu0 0
      %498 = vmatprep.mubr.bf16.mxu0 0
      %499 = vmatmul.mubr.bf16.gmra.mrb[0].mxu0 %v451
      %v500 = vpop.f32.mrb[0].mxu0
      %v501 = vadd.f32 0.0, %v500
      %v502 = vpop.f32.mrb[0].mxu0
      %v503 = vpop.f32.mrb[0].mxu0
      %v504 = vadd.f32 0.0, %v503
      %v505 = vpop.f32.mrb[0].mxu0
      %506 = vmatprep.mubr.bf16.mxu0 0
      %507 = vmatmul.mubr.bf16.gmra.mrb[0].mxu0 %v454
      %v508 = vpop.f32.mrb[0].mxu0
      %v509 = vadd.f32 0.0, %v508
      %v510 = vpop.f32.mrb[0].mxu0
      %v511 = vpop.f32.mrb[0].mxu0
      %v512 = vadd.f32 0.0, %v511
      %v513 = vpop.f32.mrb[0].mxu0
      %514 = vmatprep.mubr.bf16.mxu0 0
      %515 = vmatmul.mubr.bf16.gmra.mrb[0].mxu0 %v457
      %v516 = vpop.f32.mrb[0].mxu0
      %v517 = vadd.f32 0.0, %v516
      %v518 = vpop.f32.mrb[0].mxu0
      %v519 = vpop.f32.mrb[0].mxu0
      %v520 = vadd.f32 0.0, %v519
      %v521 = vpop.f32.mrb[0].mxu0
      %522 = vmatprep.mubr.bf16.mxu0 0
      %523 = vmatmul.mubr.bf16.gmra.mrb[0].mxu0 %v460
      %v524 = vpop.f32.mrb[0].mxu0
      %v525 = vadd.f32 0.0, %v524
      %v526 = vpop.f32.mrb[0].mxu0
      %v527 = vpop.f32.mrb[0].mxu0
      %v528 = vadd.f32 0.0, %v527
      %v529 = vpop.f32.mrb[0].mxu0
      %530 = vdwg.mxu0
      %v531 = vsel %vm449, %v404, 0
      %v533 = vsel %vm449, %v405, 0
      %v535 = vsel %vm449, %v406, 0
      %v537 = vsel %vm449, %v407, 0
      %v540 = vsel %vm462, %v408, 0
      %542 = vmatprep.subr.bf16.mxu0 0
      %543 = vmatpush1.bf16.msra.mxu0 %v540
      %544 = vmatprep.subr.bf16.mxu0 0
      %545 = vmatpush1.bf16.msra.mxu0 0
      %546 = vmatprep.subr.bf16.mxu0 0
      %547 = vmatpush1.bf16.msra.mxu0 0
      %548 = vmatprep.subr.bf16.mxu0 0
      %549 = vmatpush1.bf16.msra.mxu0 0
      %550 = vmatprep.subr.bf16.mxu0 0
      %551 = vmatpush1.bf16.msra.mxu0 0
      %552 = vmatprep.subr.bf16.mxu0 0
      %553 = vmatpush1.bf16.msra.mxu0 0
      %554 = vmatprep.subr.bf16.mxu0 0
      %555 = vmatpush1.bf16.msra.mxu0 0
      %556 = vmatprep.subr.bf16.mxu0 0
      %557 = vmatpush1.bf16.msra.mxu0 0
      %558 = vmatprep.subr.bf16.mxu0 0
      %559 = vmatpush1.bf16.msra.mxu0 0
      %560 = vmatprep.subr.bf16.mxu0 0
      %561 = vmatpush1.bf16.msra.mxu0 0
      %562 = vmatprep.subr.bf16.mxu0 0
      %563 = vmatpush1.bf16.msra.mxu0 0
      %564 = vmatprep.subr.bf16.mxu0 0
      %565 = vmatpush1.bf16.msra.mxu0 0
      %566 = vmatprep.subr.bf16.mxu0 0
      %567 = vmatpush1.bf16.msra.mxu0 0
      %568 = vmatprep.subr.bf16.mxu0 0
      %569 = vmatpush1.bf16.msra.mxu0 0
      %570 = vmatprep.subr.bf16.mxu0 0
      %571 = vmatpush1.bf16.msra.mxu0 0
      %572 = vmatprep.subr.bf16.mxu0 0
      %573 = vmatpush1.bf16.msra.mxu0 0
      %574 = vmatprep.mubr.bf16.mxu0 0
      %575 = vmatmul.mubr.bf16.gmra.mrb[0].mxu0 %v531
      %v576 = vpop.f32.mrb[0].mxu0
      %v577 = vadd.f32 %v501, %v576
      %v578 = vpop.f32.mrb[0].mxu0
      %v579 = vpop.f32.mrb[0].mxu0
      %v580 = vadd.f32 %v504, %v579
      %v581 = vpop.f32.mrb[0].mxu0
      %582 = vmatprep.mubr.bf16.mxu0 0
      %583 = vmatmul.mubr.bf16.gmra.mrb[0].mxu0 %v533
      %v584 = vpop.f32.mrb[0].mxu0
      %v585 = vadd.f32 %v509, %v584
      %v586 = vpop.f32.mrb[0].mxu0
      %v587 = vpop.f32.mrb[0].mxu0
      %v588 = vadd.f32 %v512, %v587
      %v589 = vpop.f32.mrb[0].mxu0
      %590 = vmatprep.mubr.bf16.mxu0 0
      %591 = vmatmul.mubr.bf16.gmra.mrb[0].mxu0 %v535
      %v592 = vpop.f32.mrb[0].mxu0
      %v593 = vadd.f32 %v517, %v592
      %v594 = vpop.f32.mrb[0].mxu0
      %v595 = vpop.f32.mrb[0].mxu0
      %v596 = vadd.f32 %v520, %v595
      %v597 = vpop.f32.mrb[0].mxu0
      %598 = vmatprep.mubr.bf16.mxu0 0
      %599 = vmatmul.mubr.bf16.gmra.mrb[0].mxu0 %v537
      %v600 = vpop.f32.mrb[0].mxu0
      %v601 = vadd.f32 %v525, %v600
      %v602 = vpop.f32.mrb[0].mxu0
      %v603 = vpop.f32.mrb[0].mxu0
      %v604 = vadd.f32 %v528, %v603
      %v605 = vpop.f32.mrb[0].mxu0
      %606 = vdwg.mxu0
      %s607 = scalar_lea.vmem %s2, 4
      %v608 = vld [vmem:[%s607] sm:$0x3]
      %vm614 = vcmask 1046528
      %v615 = vrot.slane %v404, 1
      %v616 = vrot.slane %v405, 1
      %v617 = vsel %vm614, %v615, %v616
      %v618 = vrot.slane %v406, 1
      %v619 = vsel %vm614, %v616, %v618
      %v620 = vrot.slane %v407, 1
      %v621 = vsel %vm614, %v618, %v620
      %v622 = vrot.slane %v409, 1
      %v623 = vsel %vm614, %v620, %v622
      %v625 = vsel %vm449, %v617, 0
      %v628 = vsel %vm449, %v619, 0
      %v631 = vsel %vm449, %v621, 0
      %v634 = vsel %vm449, %v623, 0
      %v637 = vsel %vm462, %v608, 0
      %639 = vmatprep.subr.bf16.mxu0 0
      %640 = vmatpush1.bf16.msra.mxu0 %v637
      %641 = vmatprep.subr.bf16.mxu0 0
      %642 = vmatpush1.bf16.msra.mxu0 0
      %643 = vmatprep.subr.bf16.mxu0 0
      %644 = vmatpush1.bf16.msra.mxu0 0
      %645 = vmatprep.subr.bf16.mxu0 0
      %646 = vmatpush1.bf16.msra.mxu0 0
      %647 = vmatprep.subr.bf16.mxu0 0
      %648 = vmatpush1.bf16.msra.mxu0 0
      %649 = vmatprep.subr.bf16.mxu0 0
      %650 = vmatpush1.bf16.msra.mxu0 0
      %651 = vmatprep.subr.bf16.mxu0 0
      %652 = vmatpush1.bf16.msra.mxu0 0
      %653 = vmatprep.subr.bf16.mxu0 0
      %654 = vmatpush1.bf16.msra.mxu0 0
      %655 = vmatprep.subr.bf16.mxu0 0
      %656 = vmatpush1.bf16.msra.mxu0 0
      %657 = vmatprep.subr.bf16.mxu0 0
      %658 = vmatpush1.bf16.msra.mxu0 0
      %659 = vmatprep.subr.bf16.mxu0 0
      %660 = vmatpush1.bf16.msra.mxu0 0
      %661 = vmatprep.subr.bf16.mxu0 0
      %662 = vmatpush1.bf16.msra.mxu0 0
      %663 = vmatprep.subr.bf16.mxu0 0
      %664 = vmatpush1.bf16.msra.mxu0 0
      %665 = vmatprep.subr.bf16.mxu0 0
      %666 = vmatpush1.bf16.msra.mxu0 0
      %667 = vmatprep.subr.bf16.mxu0 0
      %668 = vmatpush1.bf16.msra.mxu0 0
      %669 = vmatprep.subr.bf16.mxu0 0
      %670 = vmatpush1.bf16.msra.mxu0 0
      %671 = vmatprep.mubr.bf16.mxu0 0
      %672 = vmatmul.mubr.bf16.gmra.mrb[0].mxu0 %v625
      %v673 = vpop.f32.mrb[0].mxu0
      %v674 = vadd.f32 0.0, %v673
      %v675 = vpop.f32.mrb[0].mxu0
      %v676 = vpop.f32.mrb[0].mxu0
      %v677 = vadd.f32 0.0, %v676
      %v678 = vpop.f32.mrb[0].mxu0
      %679 = vmatprep.mubr.bf16.mxu0 0
      %680 = vmatmul.mubr.bf16.gmra.mrb[0].mxu0 %v628
      %v681 = vpop.f32.mrb[0].mxu0
      %v682 = vadd.f32 0.0, %v681
      %v683 = vpop.f32.mrb[0].mxu0
      %v684 = vpop.f32.mrb[0].mxu0
      %v685 = vadd.f32 0.0, %v684
      %v686 = vpop.f32.mrb[0].mxu0
      %687 = vmatprep.mubr.bf16.mxu0 0
      %688 = vmatmul.mubr.bf16.gmra.mrb[0].mxu0 %v631
      %v689 = vpop.f32.mrb[0].mxu0
      %v690 = vadd.f32 0.0, %v689
      %v691 = vpop.f32.mrb[0].mxu0
      %v692 = vpop.f32.mrb[0].mxu0
      %v693 = vadd.f32 0.0, %v692
      %v694 = vpop.f32.mrb[0].mxu0
      %695 = vmatprep.mubr.bf16.mxu0 0
      %696 = vmatmul.mubr.bf16.gmra.mrb[0].mxu0 %v634
      %v697 = vpop.f32.mrb[0].mxu0
      %v698 = vadd.f32 0.0, %v697
      %v699 = vpop.f32.mrb[0].mxu0
      %v700 = vpop.f32.mrb[0].mxu0
      %v701 = vadd.f32 0.0, %v700
      %v702 = vpop.f32.mrb[0].mxu0
      %703 = vdwg.mxu0
      %v704 = vadd.f32 %v577, %v674
      %v705 = vadd.f32 %v580, %v677
      %v706 = vadd.f32 %v585, %v682
      %v707 = vadd.f32 %v588, %v685
      %v708 = vadd.f32 %v593, %v690
      %v709 = vadd.f32 %v596, %v693
      %v710 = vadd.f32 %v601, %v698
      %v711 = vadd.f32 %v604, %v701
      %v712 = vpack.c.bf16 %v392, %v391
      %v713 = vpack.c.bf16 %v394, %v393
      %v714 = vpack.c.bf16 %v396, %v395
      %v715 = vpack.c.bf16 %v401, %v397
      %s716 = scalar_lea.vmem %s2, 6
      %v717 = vld [vmem:[%s716] sm:$0x3]
      %v719 = vsel %vm449, %v712, 0
      %v722 = vsel %vm449, %v713, 0
      %v725 = vsel %vm449, %v714, 0
      %v728 = vsel %vm449, %v715, 0
      %v731 = vsel %vm462, %v717, 0
      %733 = vmatprep.subr.bf16.mxu0 0
      %734 = vmatpush1.bf16.msra.mxu0 %v731
      %735 = vmatprep.subr.bf16.mxu0 0
      %736 = vmatpush1.bf16.msra.mxu0 0
      %737 = vmatprep.subr.bf16.mxu0 0
      %738 = vmatpush1.bf16.msra.mxu0 0
      %739 = vmatprep.subr.bf16.mxu0 0
      %740 = vmatpush1.bf16.msra.mxu0 0
      %741 = vmatprep.subr.bf16.mxu0 0
      %742 = vmatpush1.bf16.msra.mxu0 0
      %743 = vmatprep.subr.bf16.mxu0 0
      %744 = vmatpush1.bf16.msra.mxu0 0
      %745 = vmatprep.subr.bf16.mxu0 0
      %746 = vmatpush1.bf16.msra.mxu0 0
      %747 = vmatprep.subr.bf16.mxu0 0
      %748 = vmatpush1.bf16.msra.mxu0 0
      %749 = vmatprep.subr.bf16.mxu0 0
      %750 = vmatpush1.bf16.msra.mxu0 0
      %751 = vmatprep.subr.bf16.mxu0 0
      %752 = vmatpush1.bf16.msra.mxu0 0
      %753 = vmatprep.subr.bf16.mxu0 0
      %754 = vmatpush1.bf16.msra.mxu0 0
      %755 = vmatprep.subr.bf16.mxu0 0
      %756 = vmatpush1.bf16.msra.mxu0 0
      %757 = vmatprep.subr.bf16.mxu0 0
      %758 = vmatpush1.bf16.msra.mxu0 0
      %759 = vmatprep.subr.bf16.mxu0 0
      %760 = vmatpush1.bf16.msra.mxu0 0
      %761 = vmatprep.subr.bf16.mxu0 0
      %762 = vmatpush1.bf16.msra.mxu0 0
      %763 = vmatprep.subr.bf16.mxu0 0
      %764 = vmatpush1.bf16.msra.mxu0 0
      %765 = vmatprep.mubr.bf16.mxu0 0
      %766 = vmatmul.mubr.bf16.gmra.mrb[0].mxu0 %v719
      %v767 = vpop.f32.mrb[0].mxu0
      %v768 = vadd.f32 0.0, %v767
      %v769 = vpop.f32.mrb[0].mxu0
      %v770 = vpop.f32.mrb[0].mxu0
      %v771 = vadd.f32 0.0, %v770
      %v772 = vpop.f32.mrb[0].mxu0
      %773 = vmatprep.mubr.bf16.mxu0 0
      %774 = vmatmul.mubr.bf16.gmra.mrb[0].mxu0 %v722
      %v775 = vpop.f32.mrb[0].mxu0
      %v776 = vadd.f32 0.0, %v775
      %v777 = vpop.f32.mrb[0].mxu0
      %v778 = vpop.f32.mrb[0].mxu0
      %v779 = vadd.f32 0.0, %v778
      %v780 = vpop.f32.mrb[0].mxu0
      %781 = vmatprep.mubr.bf16.mxu0 0
      %782 = vmatmul.mubr.bf16.gmra.mrb[0].mxu0 %v725
      %v783 = vpop.f32.mrb[0].mxu0
      %v784 = vadd.f32 0.0, %v783
      %v785 = vpop.f32.mrb[0].mxu0
      %v786 = vpop.f32.mrb[0].mxu0
      %v787 = vadd.f32 0.0, %v786
      %v788 = vpop.f32.mrb[0].mxu0
      %789 = vmatprep.mubr.bf16.mxu0 0
      %790 = vmatmul.mubr.bf16.gmra.mrb[0].mxu0 %v728
      %v791 = vpop.f32.mrb[0].mxu0
      %v792 = vadd.f32 0.0, %v791
      %v793 = vpop.f32.mrb[0].mxu0
      %v794 = vpop.f32.mrb[0].mxu0
      %v795 = vadd.f32 0.0, %v794
      %v796 = vpop.f32.mrb[0].mxu0
      %797 = vdwg.mxu0
      %v798 = vadd.f32 %v704, %v768
      %v799 = vadd.f32 %v705, %v771
      %v800 = vadd.f32 %v706, %v776
      %v801 = vadd.f32 %v707, %v779
      %v802 = vadd.f32 %v708, %v784
      %v803 = vadd.f32 %v709, %v787
      %v804 = vadd.f32 %v710, %v792
      %v805 = vadd.f32 %v711, %v795
      %v806 = vpack.c.bf16 %v402, %v402
      %s807 = scalar_lea.vmem %s2, 8
      %v808 = vld [vmem:[%s807] sm:$0x3]
      %v809 = vshrl.u32 %v712, 16
      %v811 = vshll.u32 %v712, 16
      %v813 = vrot.slane %v811, 1
      %v814 = vor.u32 %v809, %v813
      %v815 = vshll.u32 %v713, 16
      %v817 = vrot.slane %v815, 1
      %v818 = vsel %vm412, %v814, %v817
      %v819 = vshrl.u32 %v713, 16
      %v821 = vor.u32 %v819, %v817
      %v822 = vshll.u32 %v714, 16
      %v824 = vrot.slane %v822, 1
      %v825 = vsel %vm412, %v821, %v824
      %v826 = vshrl.u32 %v714, 16
      %v828 = vor.u32 %v826, %v824
      %v829 = vshll.u32 %v715, 16
      %v831 = vrot.slane %v829, 1
      %v832 = vsel %vm412, %v828, %v831
      %v833 = vshrl.u32 %v715, 16
      %v835 = vor.u32 %v833, %v831
      %v837 = vshll.u32 %v806, 16
      %v839 = vrot.slane %v837, 1
      %v840 = vsel %vm412, %v835, %v839
      %v842 = vsel %vm449, %v818, 0
      %v845 = vsel %vm449, %v825, 0
      %v848 = vsel %vm449, %v832, 0
      %v851 = vsel %vm449, %v840, 0
      %v854 = vsel %vm462, %v808, 0
      %856 = vmatprep.subr.bf16.mxu0 0
      %857 = vmatpush1.bf16.msra.mxu0 %v854
      %858 = vmatprep.subr.bf16.mxu0 0
      %859 = vmatpush1.bf16.msra.mxu0 0
      %860 = vmatprep.subr.bf16.mxu0 0
      %861 = vmatpush1.bf16.msra.mxu0 0
      %862 = vmatprep.subr.bf16.mxu0 0
      %863 = vmatpush1.bf16.msra.mxu0 0
      %864 = vmatprep.subr.bf16.mxu0 0
      %865 = vmatpush1.bf16.msra.mxu0 0
      %866 = vmatprep.subr.bf16.mxu0 0
      %867 = vmatpush1.bf16.msra.mxu0 0
      %868 = vmatprep.subr.bf16.mxu0 0
      %869 = vmatpush1.bf16.msra.mxu0 0
      %870 = vmatprep.subr.bf16.mxu0 0
      %871 = vmatpush1.bf16.msra.mxu0 0
      %872 = vmatprep.subr.bf16.mxu0 0
      %873 = vmatpush1.bf16.msra.mxu0 0
      %874 = vmatprep.subr.bf16.mxu0 0
      %875 = vmatpush1.bf16.msra.mxu0 0
      %876 = vmatprep.subr.bf16.mxu0 0
      %877 = vmatpush1.bf16.msra.mxu0 0
      %878 = vmatprep.subr.bf16.mxu0 0
      %879 = vmatpush1.bf16.msra.mxu0 0
      %880 = vmatprep.subr.bf16.mxu0 0
      %881 = vmatpush1.bf16.msra.mxu0 0
      %882 = vmatprep.subr.bf16.mxu0 0
      %883 = vmatpush1.bf16.msra.mxu0 0
      %884 = vmatprep.subr.bf16.mxu0 0
      %885 = vmatpush1.bf16.msra.mxu0 0
      %886 = vmatprep.subr.bf16.mxu0 0
      %887 = vmatpush1.bf16.msra.mxu0 0
      %888 = vmatprep.mubr.bf16.mxu0 0
      %889 = vmatmul.mubr.bf16.gmra.mrb[0].mxu0 %v842
      %v890 = vpop.f32.mrb[0].mxu0
      %v891 = vadd.f32 0.0, %v890
      %v892 = vpop.f32.mrb[0].mxu0
      %v893 = vpop.f32.mrb[0].mxu0
      %v894 = vadd.f32 0.0, %v893
      %v895 = vpop.f32.mrb[0].mxu0
      %896 = vmatprep.mubr.bf16.mxu0 0
      %897 = vmatmul.mubr.bf16.gmra.mrb[0].mxu0 %v845
      %v898 = vpop.f32.mrb[0].mxu0
      %v899 = vadd.f32 0.0, %v898
      %v900 = vpop.f32.mrb[0].mxu0
      %v901 = vpop.f32.mrb[0].mxu0
      %v902 = vadd.f32 0.0, %v901
      %v903 = vpop.f32.mrb[0].mxu0
      %904 = vmatprep.mubr.bf16.mxu0 0
      %905 = vmatmul.mubr.bf16.gmra.mrb[0].mxu0 %v848
      %v906 = vpop.f32.mrb[0].mxu0
      %v907 = vadd.f32 0.0, %v906
      %v908 = vpop.f32.mrb[0].mxu0
      %v909 = vpop.f32.mrb[0].mxu0
      %v910 = vadd.f32 0.0, %v909
      %v911 = vpop.f32.mrb[0].mxu0
      %912 = vmatprep.mubr.bf16.mxu0 0
      %913 = vmatmul.mubr.bf16.gmra.mrb[0].mxu0 %v851
      %v914 = vpop.f32.mrb[0].mxu0
      %v915 = vadd.f32 0.0, %v914
      %v916 = vpop.f32.mrb[0].mxu0
      %v917 = vpop.f32.mrb[0].mxu0
      %v918 = vadd.f32 0.0, %v917
      %v919 = vpop.f32.mrb[0].mxu0
      %920 = vdwg.mxu0
      %v921 = vadd.f32 %v798, %v891
      %v922 = vadd.f32 %v799, %v894
      %v923 = vadd.f32 %v800, %v899
      %v924 = vadd.f32 %v801, %v902
      %v925 = vadd.f32 %v802, %v907
      %v926 = vadd.f32 %v803, %v910
      %v927 = vadd.f32 %v804, %v915
      %v928 = vadd.f32 %v805, %v918
      %s929 = scalar_lea.vmem %s2, 10
      %v930 = vld [vmem:[%s929] sm:$0x3]
      %v936 = vrot.slane %v712, 1
      %v937 = vrot.slane %v713, 1
      %v938 = vsel %vm614, %v936, %v937
      %v939 = vrot.slane %v714, 1
      %v940 = vsel %vm614, %v937, %v939
      %v941 = vrot.slane %v715, 1
      %v942 = vsel %vm614, %v939, %v941
      %v943 = vrot.slane %v806, 1
      %v944 = vsel %vm614, %v941, %v943
      %v946 = vsel %vm449, %v938, 0
      %v949 = vsel %vm449, %v940, 0
      %v952 = vsel %vm449, %v942, 0
      %v955 = vsel %vm449, %v944, 0
      %v958 = vsel %vm462, %v930, 0
      %960 = vmatprep.subr.bf16.mxu0 0
      %961 = vmatpush1.bf16.msra.mxu0 %v958
      %962 = vmatprep.subr.bf16.mxu0 0
      %963 = vmatpush1.bf16.msra.mxu0 0
      %964 = vmatprep.subr.bf16.mxu0 0
      %965 = vmatpush1.bf16.msra.mxu0 0
      %966 = vmatprep.subr.bf16.mxu0 0
      %967 = vmatpush1.bf16.msra.mxu0 0
      %968 = vmatprep.subr.bf16.mxu0 0
      %969 = vmatpush1.bf16.msra.mxu0 0
      %970 = vmatprep.subr.bf16.mxu0 0
      %971 = vmatpush1.bf16.msra.mxu0 0
      %972 = vmatprep.subr.bf16.mxu0 0
      %973 = vmatpush1.bf16.msra.mxu0 0
      %974 = vmatprep.subr.bf16.mxu0 0
      %975 = vmatpush1.bf16.msra.mxu0 0
      %976 = vmatprep.subr.bf16.mxu0 0
      %977 = vmatpush1.bf16.msra.mxu0 0
      %978 = vmatprep.subr.bf16.mxu0 0
      %979 = vmatpush1.bf16.msra.mxu0 0
      %980 = vmatprep.subr.bf16.mxu0 0
      %981 = vmatpush1.bf16.msra.mxu0 0
      %982 = vmatprep.subr.bf16.mxu0 0
      %983 = vmatpush1.bf16.msra.mxu0 0
      %984 = vmatprep.subr.bf16.mxu0 0
      %985 = vmatpush1.bf16.msra.mxu0 0
      %986 = vmatprep.subr.bf16.mxu0 0
      %987 = vmatpush1.bf16.msra.mxu0 0
      %988 = vmatprep.subr.bf16.mxu0 0
      %989 = vmatpush1.bf16.msra.mxu0 0
      %990 = vmatprep.subr.bf16.mxu0 0
      %991 = vmatpush1.bf16.msra.mxu0 0
      %992 = vmatprep.mubr.bf16.mxu0 0
      %993 = vmatmul.mubr.bf16.gmra.mrb[0].mxu0 %v946
      %v994 = vpop.f32.mrb[0].mxu0
      %v995 = vadd.f32 0.0, %v994
      %v996 = vpop.f32.mrb[0].mxu0
      %v997 = vpop.f32.mrb[0].mxu0
      %v998 = vadd.f32 0.0, %v997
      %v999 = vpop.f32.mrb[0].mxu0
      %1000 = vmatprep.mubr.bf16.mxu0 0
      %1001 = vmatmul.mubr.bf16.gmra.mrb[0].mxu0 %v949
      %v1002 = vpop.f32.mrb[0].mxu0
      %v1003 = vadd.f32 0.0, %v1002
      %v1004 = vpop.f32.mrb[0].mxu0
      %v1005 = vpop.f32.mrb[0].mxu0
      %v1006 = vadd.f32 0.0, %v1005
      %v1007 = vpop.f32.mrb[0].mxu0
      %1008 = vmatprep.mubr.bf16.mxu0 0
      %1009 = vmatmul.mubr.bf16.gmra.mrb[0].mxu0 %v952
      %v1010 = vpop.f32.mrb[0].mxu0
      %v1011 = vadd.f32 0.0, %v1010
      %v1012 = vpop.f32.mrb[0].mxu0
      %v1013 = vpop.f32.mrb[0].mxu0
      %v1014 = vadd.f32 0.0, %v1013
      %v1015 = vpop.f32.mrb[0].mxu0
      %1016 = vmatprep.mubr.bf16.mxu0 0
      %1017 = vmatmul.mubr.bf16.gmra.mrb[0].mxu0 %v955
      %v1018 = vpop.f32.mrb[0].mxu0
      %v1019 = vadd.f32 0.0, %v1018
      %v1020 = vpop.f32.mrb[0].mxu0
      %v1021 = vpop.f32.mrb[0].mxu0
      %v1022 = vadd.f32 0.0, %v1021
      %v1023 = vpop.f32.mrb[0].mxu0
      %1024 = vdwg.mxu0
      %v1025 = vadd.f32 %v921, %v995
      %v1026 = vadd.f32 %v922, %v998
      %v1027 = vadd.f32 %v923, %v1003
      %v1028 = vadd.f32 %v924, %v1006
      %v1029 = vadd.f32 %v925, %v1011
      %v1030 = vadd.f32 %v926, %v1014
      %v1031 = vadd.f32 %v927, %v1019
      %v1032 = vadd.f32 %v928, %v1022
      %v1033 = vpack.c.bf16 %v402, %v401
      %s1034 = scalar_lea.vmem %s2, 12
      %v1035 = vld [vmem:[%s1034] sm:$0x3]
      %v1037 = vsel %vm449, %v1033, 0
      %v1040 = vsel %vm462, %v1035, 0
      %1042 = vmatprep.subr.bf16.mxu0 0
      %1043 = vmatpush1.bf16.msra.mxu0 %v1040
      %1044 = vmatprep.subr.bf16.mxu0 0
      %1045 = vmatpush1.bf16.msra.mxu0 0
      %1046 = vmatprep.subr.bf16.mxu0 0
      %1047 = vmatpush1.bf16.msra.mxu0 0
      %1048 = vmatprep.subr.bf16.mxu0 0
      %1049 = vmatpush1.bf16.msra.mxu0 0
      %1050 = vmatprep.subr.bf16.mxu0 0
      %1051 = vmatpush1.bf16.msra.mxu0 0
      %1052 = vmatprep.subr.bf16.mxu0 0
      %1053 = vmatpush1.bf16.msra.mxu0 0
      %1054 = vmatprep.subr.bf16.mxu0 0
      %1055 = vmatpush1.bf16.msra.mxu0 0
      %1056 = vmatprep.subr.bf16.mxu0 0
      %1057 = vmatpush1.bf16.msra.mxu0 0
      %1058 = vmatprep.subr.bf16.mxu0 0
      %1059 = vmatpush1.bf16.msra.mxu0 0
      %1060 = vmatprep.subr.bf16.mxu0 0
      %1061 = vmatpush1.bf16.msra.mxu0 0
      %1062 = vmatprep.subr.bf16.mxu0 0
      %1063 = vmatpush1.bf16.msra.mxu0 0
      %1064 = vmatprep.subr.bf16.mxu0 0
      %1065 = vmatpush1.bf16.msra.mxu0 0
      %1066 = vmatprep.subr.bf16.mxu0 0
      %1067 = vmatpush1.bf16.msra.mxu0 0
      %1068 = vmatprep.subr.bf16.mxu0 0
      %1069 = vmatpush1.bf16.msra.mxu0 0
      %1070 = vmatprep.subr.bf16.mxu0 0
      %1071 = vmatpush1.bf16.msra.mxu0 0
      %1072 = vmatprep.subr.bf16.mxu0 0
      %1073 = vmatpush1.bf16.msra.mxu0 0
      %1074 = vmatprep.mubr.bf16.mxu0 0
      %1075 = vmatmul.mubr.bf16.gmra.mrb[0].mxu0 %v533
      %v1076 = vpop.f32.mrb[0].mxu0
      %v1077 = vadd.f32 0.0, %v1076
      %v1078 = vpop.f32.mrb[0].mxu0
      %v1079 = vpop.f32.mrb[0].mxu0
      %v1080 = vadd.f32 0.0, %v1079
      %v1081 = vpop.f32.mrb[0].mxu0
      %1082 = vmatprep.mubr.bf16.mxu0 0
      %1083 = vmatmul.mubr.bf16.gmra.mrb[0].mxu0 %v535
      %v1084 = vpop.f32.mrb[0].mxu0
      %v1085 = vadd.f32 0.0, %v1084
      %v1086 = vpop.f32.mrb[0].mxu0
      %v1087 = vpop.f32.mrb[0].mxu0
      %v1088 = vadd.f32 0.0, %v1087
      %v1089 = vpop.f32.mrb[0].mxu0
      %1090 = vmatprep.mubr.bf16.mxu0 0
      %1091 = vmatmul.mubr.bf16.gmra.mrb[0].mxu0 %v537
      %v1092 = vpop.f32.mrb[0].mxu0
      %v1093 = vadd.f32 0.0, %v1092
      %v1094 = vpop.f32.mrb[0].mxu0
      %v1095 = vpop.f32.mrb[0].mxu0
      %v1096 = vadd.f32 0.0, %v1095
      %v1097 = vpop.f32.mrb[0].mxu0
      %1098 = vmatprep.mubr.bf16.mxu0 0
      %1099 = vmatmul.mubr.bf16.gmra.mrb[0].mxu0 %v1037
      %v1100 = vpop.f32.mrb[0].mxu0
      %v1101 = vadd.f32 0.0, %v1100
      %v1102 = vpop.f32.mrb[0].mxu0
      %v1103 = vpop.f32.mrb[0].mxu0
      %v1104 = vadd.f32 0.0, %v1103
      %v1105 = vpop.f32.mrb[0].mxu0
      %1106 = vdwg.mxu0
      %v1107 = vadd.f32 %v1025, %v1077
      %v1108 = vadd.f32 %v1026, %v1080
      %v1109 = vadd.f32 %v1027, %v1085
      %v1110 = vadd.f32 %v1028, %v1088
      %v1111 = vadd.f32 %v1029, %v1093
      %v1112 = vadd.f32 %v1030, %v1096
      %v1113 = vadd.f32 %v1031, %v1101
      %v1114 = vadd.f32 %v1032, %v1104
      %v1115 = vpack.c.bf16 %v403, %v403
      %s1116 = scalar_lea.vmem %s2, 14
      %v1117 = vld [vmem:[%s1116] sm:$0x3]
      %v1118 = vshll.u32 %v1033, 16
      %v1120 = vrot.slane %v1118, 1
      %v1121 = vsel %vm412, %v443, %v1120
      %v1122 = vshrl.u32 %v1033, 16
      %v1124 = vor.u32 %v1122, %v1120
      %v1126 = vshll.u32 %v1115, 16
      %v1128 = vrot.slane %v1126, 1
      %v1129 = vsel %vm412, %v1124, %v1128
      %v1131 = vsel %vm449, %v1121, 0
      %v1134 = vsel %vm449, %v1129, 0
      %v1137 = vsel %vm462, %v1117, 0
      %1139 = vmatprep.subr.bf16.mxu0 0
      %1140 = vmatpush1.bf16.msra.mxu0 %v1137
      %1141 = vmatprep.subr.bf16.mxu0 0
      %1142 = vmatpush1.bf16.msra.mxu0 0
      %1143 = vmatprep.subr.bf16.mxu0 0
      %1144 = vmatpush1.bf16.msra.mxu0 0
      %1145 = vmatprep.subr.bf16.mxu0 0
      %1146 = vmatpush1.bf16.msra.mxu0 0
      %1147 = vmatprep.subr.bf16.mxu0 0
      %1148 = vmatpush1.bf16.msra.mxu0 0
      %1149 = vmatprep.subr.bf16.mxu0 0
      %1150 = vmatpush1.bf16.msra.mxu0 0
      %1151 = vmatprep.subr.bf16.mxu0 0
      %1152 = vmatpush1.bf16.msra.mxu0 0
      %1153 = vmatprep.subr.bf16.mxu0 0
      %1154 = vmatpush1.bf16.msra.mxu0 0
      %1155 = vmatprep.subr.bf16.mxu0 0
      %1156 = vmatpush1.bf16.msra.mxu0 0
      %1157 = vmatprep.subr.bf16.mxu0 0
      %1158 = vmatpush1.bf16.msra.mxu0 0
      %1159 = vmatprep.subr.bf16.mxu0 0
      %1160 = vmatpush1.bf16.msra.mxu0 0
      %1161 = vmatprep.subr.bf16.mxu0 0
      %1162 = vmatpush1.bf16.msra.mxu0 0
      %1163 = vmatprep.subr.bf16.mxu0 0
      %1164 = vmatpush1.bf16.msra.mxu0 0
      %1165 = vmatprep.subr.bf16.mxu0 0
      %1166 = vmatpush1.bf16.msra.mxu0 0
      %1167 = vmatprep.subr.bf16.mxu0 0
      %1168 = vmatpush1.bf16.msra.mxu0 0
      %1169 = vmatprep.subr.bf16.mxu0 0
      %1170 = vmatpush1.bf16.msra.mxu0 0
      %1171 = vmatprep.mubr.bf16.mxu0 0
      %1172 = vmatmul.mubr.bf16.gmra.mrb[0].mxu0 %v454
      %v1173 = vpop.f32.mrb[0].mxu0
      %v1174 = vadd.f32 0.0, %v1173
      %v1175 = vpop.f32.mrb[0].mxu0
      %v1176 = vpop.f32.mrb[0].mxu0
      %v1177 = vadd.f32 0.0, %v1176
      %v1178 = vpop.f32.mrb[0].mxu0
      %1179 = vmatprep.mubr.bf16.mxu0 0
      %1180 = vmatmul.mubr.bf16.gmra.mrb[0].mxu0 %v457
      %v1181 = vpop.f32.mrb[0].mxu0
      %v1182 = vadd.f32 0.0, %v1181
      %v1183 = vpop.f32.mrb[0].mxu0
      %v1184 = vpop.f32.mrb[0].mxu0
      %v1185 = vadd.f32 0.0, %v1184
      %v1186 = vpop.f32.mrb[0].mxu0
      %1187 = vmatprep.mubr.bf16.mxu0 0
      %1188 = vmatmul.mubr.bf16.gmra.mrb[0].mxu0 %v1131
      %v1189 = vpop.f32.mrb[0].mxu0
      %v1190 = vadd.f32 0.0, %v1189
      %v1191 = vpop.f32.mrb[0].mxu0
      %v1192 = vpop.f32.mrb[0].mxu0
      %v1193 = vadd.f32 0.0, %v1192
      %v1194 = vpop.f32.mrb[0].mxu0
      %1195 = vmatprep.mubr.bf16.mxu0 0
      %1196 = vmatmul.mubr.bf16.gmra.mrb[0].mxu0 %v1134
      %v1197 = vpop.f32.mrb[0].mxu0
      %v1198 = vadd.f32 0.0, %v1197
      %v1199 = vpop.f32.mrb[0].mxu0
      %v1200 = vpop.f32.mrb[0].mxu0
      %v1201 = vadd.f32 0.0, %v1200
      %v1202 = vpop.f32.mrb[0].mxu0
      %1203 = vdwg.mxu0
      %v1204 = vadd.f32 %v1107, %v1174
      %v1205 = vadd.f32 %v1108, %v1177
      %v1206 = vadd.f32 %v1109, %v1182
      %v1207 = vadd.f32 %v1110, %v1185
      %v1208 = vadd.f32 %v1111, %v1190
      %v1209 = vadd.f32 %v1112, %v1193
      %v1210 = vadd.f32 %v1113, %v1198
      %v1211 = vadd.f32 %v1114, %v1201
      %s1212 = scalar_lea.vmem %s2, 16
      %v1213 = vld [vmem:[%s1212] sm:$0x3]
      %v1216 = vrot.slane %v1033, 1
      %v1217 = vsel %vm614, %v620, %v1216
      %v1218 = vrot.slane %v1115, 1
      %v1219 = vsel %vm614, %v1216, %v1218
      %v1221 = vsel %vm449, %v1217, 0
      %v1224 = vsel %vm449, %v1219, 0
      %v1227 = vsel %vm462, %v1213, 0
      %1229 = vmatprep.subr.bf16.mxu0 0
      %1230 = vmatpush1.bf16.msra.mxu0 %v1227
      %1231 = vmatprep.subr.bf16.mxu0 0
      %1232 = vmatpush1.bf16.msra.mxu0 0
      %1233 = vmatprep.subr.bf16.mxu0 0
      %1234 = vmatpush1.bf16.msra.mxu0 0
      %1235 = vmatprep.subr.bf16.mxu0 0
      %1236 = vmatpush1.bf16.msra.mxu0 0
      %1237 = vmatprep.subr.bf16.mxu0 0
      %1238 = vmatpush1.bf16.msra.mxu0 0
      %1239 = vmatprep.subr.bf16.mxu0 0
      %1240 = vmatpush1.bf16.msra.mxu0 0
      %1241 = vmatprep.subr.bf16.mxu0 0
      %1242 = vmatpush1.bf16.msra.mxu0 0
      %1243 = vmatprep.subr.bf16.mxu0 0
      %1244 = vmatpush1.bf16.msra.mxu0 0
      %1245 = vmatprep.subr.bf16.mxu0 0
      %1246 = vmatpush1.bf16.msra.mxu0 0
      %1247 = vmatprep.subr.bf16.mxu0 0
      %1248 = vmatpush1.bf16.msra.mxu0 0
      %1249 = vmatprep.subr.bf16.mxu0 0
      %1250 = vmatpush1.bf16.msra.mxu0 0
      %1251 = vmatprep.subr.bf16.mxu0 0
      %1252 = vmatpush1.bf16.msra.mxu0 0
      %1253 = vmatprep.subr.bf16.mxu0 0
      %1254 = vmatpush1.bf16.msra.mxu0 0
      %1255 = vmatprep.subr.bf16.mxu0 0
      %1256 = vmatpush1.bf16.msra.mxu0 0
      %1257 = vmatprep.subr.bf16.mxu0 0
      %1258 = vmatpush1.bf16.msra.mxu0 0
      %1259 = vmatprep.subr.bf16.mxu0 0
      %1260 = vmatpush1.bf16.msra.mxu0 0
      %1261 = vmatprep.mubr.bf16.mxu0 0
      %1262 = vmatmul.mubr.bf16.gmra.mrb[0].mxu0 %v628
      %v1263 = vpop.f32.mrb[0].mxu0
      %v1264 = vadd.f32 0.0, %v1263
      %v1265 = vpop.f32.mrb[0].mxu0
      %v1266 = vpop.f32.mrb[0].mxu0
      %v1267 = vadd.f32 0.0, %v1266
      %v1268 = vpop.f32.mrb[0].mxu0
      %1269 = vmatprep.mubr.bf16.mxu0 0
      %1270 = vmatmul.mubr.bf16.gmra.mrb[0].mxu0 %v631
      %v1271 = vpop.f32.mrb[0].mxu0
      %v1272 = vadd.f32 0.0, %v1271
      %v1273 = vpop.f32.mrb[0].mxu0
      %v1274 = vpop.f32.mrb[0].mxu0
      %v1275 = vadd.f32 0.0, %v1274
      %v1276 = vpop.f32.mrb[0].mxu0
      %1277 = vmatprep.mubr.bf16.mxu0 0
      %1278 = vmatmul.mubr.bf16.gmra.mrb[0].mxu0 %v1221
      %v1279 = vpop.f32.mrb[0].mxu0
      %v1280 = vadd.f32 0.0, %v1279
      %v1281 = vpop.f32.mrb[0].mxu0
      %v1282 = vpop.f32.mrb[0].mxu0
      %v1283 = vadd.f32 0.0, %v1282
      %v1284 = vpop.f32.mrb[0].mxu0
      %1285 = vmatprep.mubr.bf16.mxu0 0
      %1286 = vmatmul.mubr.bf16.gmra.mrb[0].mxu0 %v1224
      %v1287 = vpop.f32.mrb[0].mxu0
      %v1288 = vadd.f32 0.0, %v1287
      %v1289 = vpop.f32.mrb[0].mxu0
      %v1290 = vpop.f32.mrb[0].mxu0
      %v1291 = vadd.f32 0.0, %v1290
      %v1292 = vpop.f32.mrb[0].mxu0
      %1293 = vdwg.mxu0
      %v1294 = vadd.f32 %v1204, %v1264
      %v1295 = vadd.f32 %v1205, %v1267
      %v1296 = vadd.f32 %v1206, %v1272
      %v1297 = vadd.f32 %v1207, %v1275
      %v1298 = vadd.f32 %v1208, %v1280
      %v1299 = vadd.f32 %v1209, %v1283
      %v1300 = vadd.f32 %v1210, %v1288
      %v1301 = vadd.f32 %v1211, %v1291
      %v1302 = vld [vmem:[%s3] sm:$0x1]
      %v1304 = vlaneseq
      %v1305 = vshrl.u32 %v1304, 7
      %v1306 = vsub.s32 0, %v1305
      %v1307 = vrot.slane %v1302, %v1306
      %v1309 = vadd.f32 %v1294, %v1307
      %v1310 = vadd.f32 %v1295, %v1307
      %v1311 = vadd.f32 %v1296, %v1307
      %v1312 = vadd.f32 %v1297, %v1307
      %v1313 = vadd.f32 %v1298, %v1307
      %v1314 = vadd.f32 %v1299, %v1307
      %v1315 = vadd.f32 %v1300, %v1307
      %v1316 = vadd.f32 %v1301, %v1307
      %1317 = vst [vmem:[%s375] sm:$0xff] %v1309
      %1318 = vst [vmem:[%s375 + $0x8] sm:$0xff] %v1310
      %1319 = vst [vmem:[%s375 + $0x10] sm:$0xff] %v1311
      %1320 = vst [vmem:[%s375 + $0x18] sm:$0xff] %v1312
      %1321 = vst [vmem:[%s375 + $0x20] sm:$0xff] %v1313
      %1322 = vst [vmem:[%s375 + $0x28] sm:$0xff] %v1314
      %1323 = vst [vmem:[%s375 + $0x30] sm:$0xff] %v1315
      %1324 = vst [vmem:[%s375 + $0x38] sm:$0xff] %v1316
      %v1325 = vld [vmem:[%s365] sm:$0xff]
      %v1326 = vld [vmem:[%s365 + $0x8] sm:$0xff]
      %v1327 = vld [vmem:[%s365 + $0x10] sm:$0xff]
      %v1328 = vld [vmem:[%s365 + $0x18] sm:$0xff]
      %v1329 = vld [vmem:[%s365 + $0x20] sm:$0xff]
      %v1330 = vld [vmem:[%s365 + $0x28] sm:$0xff]
      %v1331 = vld [vmem:[%s365 + $0x30] sm:$0xff]
      %v1332 = vld [vmem:[%s365 + $0x38] sm:$0xff]
      %1334 = vset.pattern.permute.xlu0 0
      %1335 = vperm.xlu0 %1334, %v1325
      %v1336 = vpop.permute.xlu0 %1335
      %1339 = vset.pattern.permute.xlu0 0
      %1340 = vperm.xlu0 %1339, %v1326
      %v1341 = vpop.permute.xlu0 %1340
      %1344 = vset.pattern.permute.xlu0 0
      %1345 = vperm.xlu0 %1344, %v1327
      %v1346 = vpop.permute.xlu0 %1345
      %1349 = vset.pattern.permute.xlu0 0
      %1350 = vperm.xlu0 %1349, %v1328
      %v1351 = vpop.permute.xlu0 %1350
      %1354 = vset.pattern.permute.xlu0 0
      %1355 = vperm.xlu0 %1354, %v1329
      %v1356 = vpop.permute.xlu0 %1355
      %1359 = vset.pattern.permute.xlu0 0
      %1360 = vperm.xlu0 %1359, %v1330
      %v1361 = vpop.permute.xlu0 %1360
      %1364 = vset.pattern.permute.xlu0 0
      %1365 = vperm.xlu0 %1364, %v1331
      %v1366 = vpop.permute.xlu0 %1365
      %1369 = vset.pattern.permute.xlu0 0
      %1370 = vperm.xlu0 %1369, %v1332
      %v1371 = vpop.permute.xlu0 %1370
      %v1373 = vmul.f32 %v1309, %v1336
      %v1374 = vmul.f32 %v1310, %v1341
      %v1375 = vmul.f32 %v1311, %v1346
      %v1376 = vmul.f32 %v1312, %v1351
      %v1377 = vmul.f32 %v1313, %v1356
      %v1378 = vmul.f32 %v1314, %v1361
      %v1379 = vmul.f32 %v1315, %v1366
      %v1380 = vmul.f32 %v1316, %v1371
      %v1381 = vadd.f32 %v1373, %v1374
      %v1382 = vadd.f32 %v1381, %v1375
      %v1383 = vadd.f32 %v1382, %v1376
      %v1384 = vadd.f32 %v1383, %v1377
      %v1385 = vadd.f32 %v1384, %v1378
      %v1386 = vadd.f32 %v1385, %v1379
      %v1387 = vadd.f32 %v1386, %v1380
      %v1388 = vrot.slane %v1387, 4
      %v1389 = vadd.f32 %v1387, %v1388
      %v1390 = vrot.slane %v1389, 2
      %v1391 = vadd.f32 %v1389, %v1390
      %v1392 = vrot.slane %v1391, 1
      %v1393 = vadd.f32 %v1391, %v1392
      %v1394 = vmul.f32 %v1373, %v1309
      %v1395 = vmul.f32 %v1374, %v1310
      %v1396 = vmul.f32 %v1375, %v1311
      %v1397 = vmul.f32 %v1376, %v1312
      %v1398 = vmul.f32 %v1377, %v1313
      %v1399 = vmul.f32 %v1378, %v1314
      %v1400 = vmul.f32 %v1379, %v1315
      %v1401 = vmul.f32 %v1380, %v1316
      %v1402 = vadd.f32 %v1394, %v1395
      %v1403 = vadd.f32 %v1402, %v1396
      %v1404 = vadd.f32 %v1403, %v1397
      %v1405 = vadd.f32 %v1404, %v1398
      %v1406 = vadd.f32 %v1405, %v1399
      %v1407 = vadd.f32 %v1406, %v1400
      %v1408 = vadd.f32 %v1407, %v1401
      %v1409 = vrot.slane %v1408, 4
      %v1410 = vadd.f32 %v1408, %v1409
      %v1411 = vrot.slane %v1410, 2
      %v1412 = vadd.f32 %v1410, %v1411
      %v1413 = vrot.slane %v1412, 1
      %v1414 = vadd.f32 %v1412, %v1413
      %vm1415 = vcmask 1040384
      %v1416 = vsel %vm1415, %v1393, %v1414
      %p1417 = scmp.eq.s32.totalorder %s23, 0
      // Predicated region
      $region41: #{unet_down_block.3} parent=39 // pred_check
        %p1418 = pneg %p1417
      $region42: #{unet_down_block.3} parent=39 // pred_check_branch
        %1420 = sbr.rel (%p1418) target = $region44
      $region43: #{unet_down_block.3} parent=39 // pred_region
        %1421 = vst [vmem:[%s380] sm:$0x3] %v1416
      $region44: #{unet_down_block.3} parent=39 // pred_fallthru
        _
      %p1422 = scmp.ne.s32.totalorder %s23, 0
      // Predicated region
      $region45: #{unet_down_block.3} parent=39 // pred_check
        %p1423 = pneg %p1422
      $region46: #{unet_down_block.3} parent=39 // pred_check_branch
        %1425 = sbr.rel (%p1423) target = $region48
      $region47: #{unet_down_block.3} parent=39 // pred_region
        %v1426 = vld [vmem:[%s380] sm:$0x3]
        %v1427 = vadd.f32 %v1426, %v1416
        %1428 = vst [vmem:[%s380] sm:$0x3] %v1427
      $region48: #{unet_down_block.3} parent=39 // pred_fallthru
        _
      %s1429 = smul.u32 8, %s23
      %p1430 = scmp.lt.s32.totalorder %s22, 1
      %s1431 = scalar_select %p1430, %s22, 1
      %p1432 = scmp.lt.s32.totalorder %s1429, 7
      %s1433 = scalar_select %p1432, %s1429, 7
      %s1434 = smul.addr %s1431, 8
      %s1435 = sadd.s32 %s1433, %s1434
      %s1436 = smul.addr %s1435, 8
      %s1437 = scalar_lea.vmem %s5, %s1436
      %p1438 = scmp.lt.s32.totalorder %s22, 1
      %s1439 = scalar_select %p1438, %s22, 1
      %s1440 = smul.addr %s1439, 2
      %s1441 = scalar_lea.vmem %s6, %s1440
      // Predicated region
      $region49: #{unet_down_block.3} parent=39 // pred_check
        %p1442 = pneg %p180
      $region50: #{unet_down_block.3} parent=39 // pred_check_branch
        %1444 = sbr.rel (%p1442) target = $region52
      $region51: #{unet_down_block.3} parent=39 // pred_region
        %s1445 = smul.u32 8, %s23
      $region52: #{unet_down_block.3} parent=39 // pred_fallthru
        _
      // Predicated region
      $region53: #{unet_down_block.3} parent=39 // pred_check
        %p1446 = pneg %p206
      $region54: #{unet_down_block.3} parent=39 // pred_check_branch
        %1448 = sbr.rel (%p1446) target = $region56
      $region55: #{unet_down_block.3} parent=39 // pred_region
        _
      $region56: #{unet_down_block.3} parent=39 // pred_fallthru
        _
    $region40: #{unet_down_block.3} parent=5 // pred_fallthru
      _
    %p1449 = scmp.le.s32.totalorder 2, %s13
    // Predicated region
    $region57: #{unet_down_block.3} parent=5 // pred_check
      %p1450 = pneg %p1449
    $region58: #{unet_down_block.3} parent=5 // pred_check_branch
      %1452 = sbr.rel (%p1450) target = $region60
    $region59: #{unet_down_block.3} parent=5 // pred_region
      %s1453 = ssub.s32 %s13, 2
      // Predicated region
      $region61: #{unet_down_block.3} parent=59 // pred_check
        %p1454 = pneg %p186
      $region62: #{unet_down_block.3} parent=59 // pred_check_branch
        %1456 = sbr.rel (%p1454) target = $region64
      $region63: #{unet_down_block.3} parent=59 // pred_region
        %s1457 = smul.u32 8, %s25
        %p1458 = scmp.lt.s32.totalorder %s24, 1
        %s1459 = scalar_select %p1458, %s24, 1
        %p1460 = scmp.lt.s32.totalorder %s1457, 7
        %s1461 = scalar_select %p1460, %s1457, 7
        %s1462 = smul.addr %s1459, 8
        %s1463 = sadd.s32 %s1461, %s1462
        %s1464 = smul.addr %s1463, 8
        %s1465 = scalar_lea.vmem %s5, %s1464
      $region64: #{unet_down_block.3} parent=59 // pred_fallthru
        _
      // Predicated region
      $region65: #{unet_down_block.3} parent=59 // pred_check
        %p1466 = pneg %p212
      $region66: #{unet_down_block.3} parent=59 // pred_check_branch
        %1468 = sbr.rel (%p1466) target = $region68
      $region67: #{unet_down_block.3} parent=59 // pred_region
        %p1469 = scmp.lt.s32.totalorder %s24, 1
        %s1470 = scalar_select %p1469, %s24, 1
        %s1471 = smul.addr %s1470, 2
        %s1472 = scalar_lea.vmem %s6, %s1471
      $region68: #{unet_down_block.3} parent=59 // pred_fallthru
        _
    $region60: #{unet_down_block.3} parent=5 // pred_fallthru
      _
  $region6: #{unet_down_block.3} parent=0 // loop_footer
    %s17 = sadd.s32 1, %s13
  $region7: #{unet_down_block.3} parent=0 // loop_footer_branch
    %12 = sbr.rel target = $region3
  $region8: #{unet_down_block.3} parent=0 // loop_exit
    _

// kernel: unet_down_block.4
$region0: #{unet_down_block.4}
  #allocation0 [shape = 'u32[]', space=smem, size = 0x4, offset = 0x4, fixed_abs, tag = 'smem constant byte address 0x4 - core index']
  #allocation1 [shape = 'u32[144,128]{1,0:T(1,128)}', space=vmem, size = 0x12000, scoped, tag = 'internal scratch']
  %s0 = inlined_call_operand.vmem [shape: f32[2,64,128], index: 0, kind: input, shape index: {}, may-alias: {0,1}]
  %s1 = inlined_call_operand.vmem [shape: f32[2,64,128], index: 1, kind: input, shape index: {}, may-alias: {0,1}]
  %s2 = inlined_call_operand.vmem [shape: f32[1,128], index: 2, kind: input, shape index: {}]
  %s3 = inlined_call_operand.vmem [shape: f32[1,128], index: 3, kind: input, shape index: {}]
  %s4 = inlined_call_operand.vmem [shape: bf16[9,128,128], index: 4, kind: input, shape index: {}]
  %s5 = inlined_call_operand.vmem [shape: f32[1,128], index: 5, kind: input, shape index: {}]
  %s6 = inlined_call_operand.vmem [shape: f32[64,1], index: 6, kind: input, shape index: {}]
  %s7 = inlined_call_operand.vmem [shape: f32[2,64,128], index: 7, kind: output, shape index: {0}]
  %s8 = inlined_call_operand.vmem [shape: f32[2,2,128], index: 8, kind: output, shape index: {1}]
  %9 = xla_tuple %s7, %s8
  %s10 = sld [smem:[#allocation0]]
  $region77: #{unet_down_block.4} parent=0
    _
  %s12 = ssub.s32 1, %s10
  %s13 = scalar_select 0, %s12, %s10
  loop: start=0, step=1, limit=4
  $region2: #{unet_down_block.4} parent=0 // loop_pre_header
    _
  $region3: #{unet_down_block.4} parent=0 // loop_header
    %s15 = sphi 0, %s19
    %p16 = scmp.ge.s32.totalorder %s15, 4
    %s22 = sphi 0, %s34
    %s23 = sphi 0, %s30
    %s24 = sphi 0, %s22
    %s25 = sphi 0, %s23
    %s26 = sphi 0, %s24
    %s27 = sphi 0, %s25
    %s39 = sphi 0, %s41
    %s42 = sphi 0, %s39
    %s43 = sphi 0, %s42
    %s59 = sphi 0, %s43
    %s73 = sphi 0, %s75
    %s76 = sphi 0, %s73
    %s77 = sphi 0, %s76
    %s93 = sphi 0, %s77
    %s97 = sphi 0, %s97
    %s99 = sphi 0, %s97
    %s100 = sphi 0, %s99
    %s114 = sphi 0, %s100
    %s118 = sphi 0, %s118
    %s120 = sphi 0, %s118
    %s121 = sphi 0, %s120
    %s135 = sphi 0, %s121
    %s139 = sphi 0, %s139
    %s141 = sphi 0, %s139
    %s142 = sphi 0, %s141
    %s156 = sphi 0, %s142
    %s160 = sphi 0, %s160
    %s162 = sphi 0, %s160
    %s163 = sphi 0, %s162
    %s177 = sphi 0, %s163
    %s183 = sphi 0, %s185
    %s186 = sphi 0, %s183
    %s187 = sphi 0, %s186
    %s203 = sphi 0, %s187
    %s211 = sphi 0, %s213
    %s214 = sphi 0, %s211
    %s215 = sphi 0, %s214
    %s231 = sphi 0, %s215
    %s237 = sphi 0, %s239
    %s240 = sphi 0, %s237
    %s241 = sphi 0, %s240
    %s257 = sphi 0, %s241
  $region4: #{unet_down_block.4} parent=0 // loop_header_branch
    %18 = sbr.rel (%p16) target = $region8
  $region5: #{unet_down_block.4} parent=0 // loop_body
    %s20 = ssub.s32 %s15, 1
    %s21 = ssub.s32 %s15, 2
    %s28 = sadd.s32 1, %s23
    %p29 = scmp.ge.s32.totalorder %s28, 1
    %s30 = scalar_select %p29, 0, %s28
    %s31 = sadd.s32 1, %s22
    %s32 = scalar_select %p29, %s31, %s22
    %p33 = scmp.ge.s32.totalorder %s32, 2
    %s34 = scalar_select %p33, 0, %s32
    %s35 = ssub.s32 %s22, %s34
    %s36 = ssub.s32 %s23, %s30
    %s37 = sor.u32 %s35, %s36
    %p38 = scmp.eq.s32.totalorder %s37, 0
    %s40 = sadd.s32 %s39, 1
    %s41 = scalar_select %p38, %s39, %s40
    %p44 = pneg %p38
    %p45 = scmp.eq.s32.totalorder %s15, 1
    %p46 = por %p44, %p45
    %p47 = scmp.ne.s32.totalorder %s39, %s42
    %p48 = scmp.eq.s32.totalorder %s15, 0
    %p49 = por %p47, %p48
    %p50 = scmp.ne.s32.totalorder %s39, %s42
    %p51 = scmp.eq.s32.totalorder %s20, 1
    %p52 = por %p50, %p51
    %p53 = scmp.ne.s32.totalorder %s42, %s43
    %p54 = scmp.eq.s32.totalorder %s20, 0
    %p55 = por %p53, %p54
    %p56 = scmp.ne.s32.totalorder %s42, %s43
    %p57 = scmp.eq.s32.totalorder %s21, 1
    %p58 = por %p56, %p57
    %p60 = scmp.ne.s32.totalorder %s43, %s59
    %p61 = scmp.eq.s32.totalorder %s21, 0
    %p62 = por %p60, %p61
    %s63 = sadd.s32 %s23, 1
    %p64 = scmp.lt.s32.totalorder %s63, 0
    %s65 = scalar_select %p64, %s63, 0
    %s66 = sadd.s32 %s30, 1
    %p67 = scmp.lt.s32.totalorder %s66, 0
    %s68 = scalar_select %p67, %s66, 0
    %s69 = ssub.s32 %s22, %s34
    %s70 = ssub.s32 %s65, %s68
    %s71 = sor.u32 %s69, %s70
    %p72 = scmp.eq.s32.totalorder %s71, 0
    %s74 = sadd.s32 %s73, 1
    %s75 = scalar_select %p72, %s73, %s74
    %p78 = pneg %p72
    %p79 = scmp.eq.s32.totalorder %s15, 1
    %p80 = por %p78, %p79
    %p81 = scmp.ne.s32.totalorder %s73, %s76
    %p82 = scmp.eq.s32.totalorder %s15, 0
    %p83 = por %p81, %p82
    %p84 = scmp.ne.s32.totalorder %s73, %s76
    %p85 = scmp.eq.s32.totalorder %s20, 1
    %p86 = por %p84, %p85
    %p87 = scmp.ne.s32.totalorder %s76, %s77
    %p88 = scmp.eq.s32.totalorder %s20, 0
    %p89 = por %p87, %p88
    %p90 = scmp.ne.s32.totalorder %s76, %s77
    %p91 = scmp.eq.s32.totalorder %s21, 1
    %p92 = por %p90, %p91
    %p94 = scmp.ne.s32.totalorder %s77, %s93
    %p95 = scmp.eq.s32.totalorder %s21, 0
    %p96 = por %p94, %p95
    %s98 = sadd.s32 %s97, 1
    %p101 = scmp.eq.s32.totalorder %s15, 1
    %p102 = scmp.ne.s32.totalorder %s97, %s99
    %p103 = scmp.eq.s32.totalorder %s15, 0
    %p104 = por %p102, %p103
    %p105 = scmp.ne.s32.totalorder %s97, %s99
    %p106 = scmp.eq.s32.totalorder %s20, 1
    %p107 = por %p105, %p106
    %p108 = scmp.ne.s32.totalorder %s99, %s100
    %p109 = scmp.eq.s32.totalorder %s20, 0
    %p110 = por %p108, %p109
    %p111 = scmp.ne.s32.totalorder %s99, %s100
    %p112 = scmp.eq.s32.totalorder %s21, 1
    %p113 = por %p111, %p112
    %p115 = scmp.ne.s32.totalorder %s100, %s114
    %p116 = scmp.eq.s32.totalorder %s21, 0
    %p117 = por %p115, %p116
    %s119 = sadd.s32 %s118, 1
    %p122 = scmp.eq.s32.totalorder %s15, 1
    %p123 = scmp.ne.s32.totalorder %s118, %s120
    %p124 = scmp.eq.s32.totalorder %s15, 0
    %p125 = por %p123, %p124
    %p126 = scmp.ne.s32.totalorder %s118, %s120
    %p127 = scmp.eq.s32.totalorder %s20, 1
    %p128 = por %p126, %p127
    %p129 = scmp.ne.s32.totalorder %s120, %s121
    %p130 = scmp.eq.s32.totalorder %s20, 0
    %p131 = por %p129, %p130
    %p132 = scmp.ne.s32.totalorder %s120, %s121
    %p133 = scmp.eq.s32.totalorder %s21, 1
    %p134 = por %p132, %p133
    %p136 = scmp.ne.s32.totalorder %s121, %s135
    %p137 = scmp.eq.s32.totalorder %s21, 0
    %p138 = por %p136, %p137
    %s140 = sadd.s32 %s139, 1
    %p143 = scmp.eq.s32.totalorder %s15, 1
    %p144 = scmp.ne.s32.totalorder %s139, %s141
    %p145 = scmp.eq.s32.totalorder %s15, 0
    %p146 = por %p144, %p145
    %p147 = scmp.ne.s32.totalorder %s139, %s141
    %p148 = scmp.eq.s32.totalorder %s20, 1
    %p149 = por %p147, %p148
    %p150 = scmp.ne.s32.totalorder %s141, %s142
    %p151 = scmp.eq.s32.totalorder %s20, 0
    %p152 = por %p150, %p151
    %p153 = scmp.ne.s32.totalorder %s141, %s142
    %p154 = scmp.eq.s32.totalorder %s21, 1
    %p155 = por %p153, %p154
    %p157 = scmp.ne.s32.totalorder %s142, %s156
    %p158 = scmp.eq.s32.totalorder %s21, 0
    %p159 = por %p157, %p158
    %s161 = sadd.s32 %s160, 1
    %p164 = scmp.eq.s32.totalorder %s15, 1
    %p165 = scmp.ne.s32.totalorder %s160, %s162
    %p166 = scmp.eq.s32.totalorder %s15, 0
    %p167 = por %p165, %p166
    %p168 = scmp.ne.s32.totalorder %s160, %s162
    %p169 = scmp.eq.s32.totalorder %s20, 1
    %p170 = por %p168, %p169
    %p171 = scmp.ne.s32.totalorder %s162, %s163
    %p172 = scmp.eq.s32.totalorder %s20, 0
    %p173 = por %p171, %p172
    %p174 = scmp.ne.s32.totalorder %s162, %s163
    %p175 = scmp.eq.s32.totalorder %s21, 1
    %p176 = por %p174, %p175
    %p178 = scmp.ne.s32.totalorder %s163, %s177
    %p179 = scmp.eq.s32.totalorder %s21, 0
    %p180 = por %p178, %p179
    %s181 = ssub.s32 %s23, %s30
    %p182 = scmp.eq.s32.totalorder %s181, 0
    %s184 = sadd.s32 %s183, 1
    %s185 = scalar_select %p182, %s183, %s184
    %p188 = pneg %p182
    %p189 = scmp.eq.s32.totalorder %s15, 1
    %p190 = por %p188, %p189
    %p191 = scmp.ne.s32.totalorder %s183, %s186
    %p192 = scmp.eq.s32.totalorder %s15, 0
    %p193 = por %p191, %p192
    %p194 = scmp.ne.s32.totalorder %s183, %s186
    %p195 = scmp.eq.s32.totalorder %s20, 1
    %p196 = por %p194, %p195
    %p197 = scmp.ne.s32.totalorder %s186, %s187
    %p198 = scmp.eq.s32.totalorder %s20, 0
    %p199 = por %p197, %p198
    %p200 = scmp.ne.s32.totalorder %s186, %s187
    %p201 = scmp.eq.s32.totalorder %s21, 1
    %p202 = por %p200, %p201
    %p204 = scmp.ne.s32.totalorder %s187, %s203
    %p205 = scmp.eq.s32.totalorder %s21, 0
    %p206 = por %p204, %p205
    %s207 = ssub.s32 %s22, %s34
    %s208 = ssub.s32 %s23, %s30
    %s209 = sor.u32 %s207, %s208
    %p210 = scmp.eq.s32.totalorder %s209, 0
    %s212 = sadd.s32 %s211, 1
    %s213 = scalar_select %p210, %s211, %s212
    %p216 = pneg %p210
    %p217 = scmp.eq.s32.totalorder %s15, 1
    %p218 = por %p216, %p217
    %p219 = scmp.ne.s32.totalorder %s211, %s214
    %p220 = scmp.eq.s32.totalorder %s15, 0
    %p221 = por %p219, %p220
    %p222 = scmp.ne.s32.totalorder %s211, %s214
    %p223 = scmp.eq.s32.totalorder %s20, 1
    %p224 = por %p222, %p223
    %p225 = scmp.ne.s32.totalorder %s214, %s215
    %p226 = scmp.eq.s32.totalorder %s20, 0
    %p227 = por %p225, %p226
    %p228 = scmp.ne.s32.totalorder %s214, %s215
    %p229 = scmp.eq.s32.totalorder %s21, 1
    %p230 = por %p228, %p229
    %p232 = scmp.ne.s32.totalorder %s215, %s231
    %p233 = scmp.eq.s32.totalorder %s21, 0
    %p234 = por %p232, %p233
    %s235 = ssub.s32 %s22, %s34
    %p236 = scmp.eq.s32.totalorder %s235, 0
    %s238 = sadd.s32 %s237, 1
    %s239 = scalar_select %p236, %s237, %s238
    %p242 = pneg %p236
    %p243 = scmp.eq.s32.totalorder %s15, 1
    %p244 = por %p242, %p243
    %p245 = scmp.ne.s32.totalorder %s237, %s240
    %p246 = scmp.eq.s32.totalorder %s15, 0
    %p247 = por %p245, %p246
    %p248 = scmp.ne.s32.totalorder %s237, %s240
    %p249 = scmp.eq.s32.totalorder %s20, 1
    %p250 = por %p248, %p249
    %p251 = scmp.ne.s32.totalorder %s240, %s241
    %p252 = scmp.eq.s32.totalorder %s20, 0
    %p253 = por %p251, %p252
    %p254 = scmp.ne.s32.totalorder %s240, %s241
    %p255 = scmp.eq.s32.totalorder %s21, 1
    %p256 = por %p254, %p255
    %p258 = scmp.ne.s32.totalorder %s241, %s257
    %p259 = scmp.eq.s32.totalorder %s21, 0
    %p260 = por %p258, %p259
    %p261 = scmp.le.s32.totalorder 1, %s15
    %p262 = scmp.lt.s32.totalorder %s15, 3
    %p263 = pnand %p261, %p262
    %p264 = pneg %p263
    // Predicated region
    $region9: #{unet_down_block.4} parent=5 // pred_check
      _
    $region10: #{unet_down_block.4} parent=5 // pred_check_branch
      %266 = sbr.rel (%p263) target = $region12
    $region11: #{unet_down_block.4} parent=5 // pred_region
      %s267 = ssub.s32 %s15, 1
      // Predicated region
      $region13: #{unet_down_block.4} parent=11 // pred_check
        %p268 = pneg %p110
      $region14: #{unet_down_block.4} parent=11 // pred_check_branch
        %270 = sbr.rel (%p268) target = $region16
      $region15: #{unet_down_block.4} parent=11 // pred_region
        _
      $region16: #{unet_down_block.4} parent=11 // pred_fallthru
        _
      // Predicated region
      $region17: #{unet_down_block.4} parent=11 // pred_check
        %p271 = pneg %p131
      $region18: #{unet_down_block.4} parent=11 // pred_check_branch
        %273 = sbr.rel (%p271) target = $region20
      $region19: #{unet_down_block.4} parent=11 // pred_region
        _
      $region20: #{unet_down_block.4} parent=11 // pred_fallthru
        _
      // Predicated region
      $region21: #{unet_down_block.4} parent=11 // pred_check
        %p274 = pneg %p152
      $region22: #{unet_down_block.4} parent=11 // pred_check_branch
        %276 = sbr.rel (%p274) target = $region24
      $region23: #{unet_down_block.4} parent=11 // pred_region
        _
      $region24: #{unet_down_block.4} parent=11 // pred_fallthru
        _
      // Predicated region
      $region25: #{unet_down_block.4} parent=11 // pred_check
        %p277 = pneg %p173
      $region26: #{unet_down_block.4} parent=11 // pred_check_branch
        %279 = sbr.rel (%p277) target = $region28
      $region27: #{unet_down_block.4} parent=11 // pred_region
        _
      $region28: #{unet_down_block.4} parent=11 // pred_fallthru
        _
      // Predicated region
      $region29: #{unet_down_block.4} parent=11 // pred_check
        %p280 = pneg %p199
      $region30: #{unet_down_block.4} parent=11 // pred_check_branch
        %282 = sbr.rel (%p280) target = $region32
      $region31: #{unet_down_block.4} parent=11 // pred_region
        %s283 = smul.u32 8, %s25
        %p284 = scmp.lt.s32.totalorder %s283, 7
        %s285 = scalar_select %p284, %s283, 7
        %s286 = smul.addr %s285, 8
        %s287 = scalar_lea.vmem %s6, %s286
        %s288 = smul.u32 8, %s25
      $region32: #{unet_down_block.4} parent=11 // pred_fallthru
        _
    $region12: #{unet_down_block.4} parent=5 // pred_fallthru
      _
    %p289 = scmp.lt.s32.totalorder %s15, 2
    // Predicated region
    $region33: #{unet_down_block.4} parent=5 // pred_check
      %p290 = pneg %p289
    $region34: #{unet_down_block.4} parent=5 // pred_check_branch
      %292 = sbr.rel (%p290) target = $region36
    $region35: #{unet_down_block.4} parent=5 // pred_region
      // Predicated region
      $region37: #{unet_down_block.4} parent=35 // pred_check
        %p293 = pneg %p49
      $region38: #{unet_down_block.4} parent=35 // pred_check_branch
        %295 = sbr.rel (%p293) target = $region40
      $region39: #{unet_down_block.4} parent=35 // pred_region
        %s296 = smul.u32 8, %s23
        %p297 = scmp.lt.s32.totalorder %s22, 1
        %s298 = scalar_select %p297, %s22, 1
        %p299 = scmp.lt.s32.totalorder %s296, 7
        %s300 = scalar_select %p299, %s296, 7
        %s301 = smul.addr %s298, 8
        %s302 = sadd.s32 %s300, %s301
        %s303 = smul.addr %s302, 8
        %s304 = scalar_lea.vmem %s0, %s303
        %s305 = smul.u32 8, %s23
      $region40: #{unet_down_block.4} parent=35 // pred_fallthru
        _
      // Predicated region
      $region41: #{unet_down_block.4} parent=35 // pred_check
        %p306 = pneg %p83
      $region42: #{unet_down_block.4} parent=35 // pred_check_branch
        %308 = sbr.rel (%p306) target = $region44
      $region43: #{unet_down_block.4} parent=35 // pred_region
        %s309 = sadd.s32 %s23, 1
        %p310 = scmp.lt.s32.totalorder %s309, 0
        %s311 = scalar_select %p310, %s309, 0
        %s312 = smul.u32 8, %s311
        %p313 = scmp.lt.s32.totalorder %s22, 1
        %s314 = scalar_select %p313, %s22, 1
        %p315 = scmp.lt.s32.totalorder %s312, 7
        %s316 = scalar_select %p315, %s312, 7
        %s317 = smul.addr %s314, 8
        %s318 = sadd.s32 %s316, %s317
        %s319 = smul.addr %s318, 8
        %s320 = scalar_lea.vmem %s1, %s319
        %s321 = sadd.s32 %s23, 1
        %p322 = scmp.lt.s32.totalorder %s321, 0
        %s323 = scalar_select %p322, %s321, 0
        %s324 = smul.u32 8, %s323
      $region44: #{unet_down_block.4} parent=35 // pred_fallthru
        _
    $region36: #{unet_down_block.4} parent=5 // pred_fallthru
      _
    %p325 = scmp.le.s32.totalorder 1, %s15
    %p326 = scmp.lt.s32.totalorder %s15, 3
    %p327 = pnand %p325, %p326
    %p328 = pneg %p327
    // Predicated region
    $region45: #{unet_down_block.4} parent=5 // pred_check
      _
    $region46: #{unet_down_block.4} parent=5 // pred_check_branch
      %330 = sbr.rel (%p327) target = $region48
    $region47: #{unet_down_block.4} parent=5 // pred_region
      %s331 = ssub.s32 %s15, 1
      %s332 = smul.u32 8, %s25
      %p333 = scmp.lt.s32.totalorder %s24, 1
      %s334 = scalar_select %p333, %s24, 1
      %p335 = scmp.lt.s32.totalorder %s332, 7
      %s336 = scalar_select %p335, %s332, 7
      %s337 = smul.addr %s334, 8
      %s338 = sadd.s32 %s336, %s337
      %s339 = smul.addr %s338, 8
      %s340 = scalar_lea.vmem %s0, %s339
      %p341 = pneg %p55
      %p342 = pneg %p52
      %s343 = sadd.s32 %s25, 1
      %p344 = scmp.lt.s32.totalorder %s343, 0
      %s345 = scalar_select %p344, %s343, 0
      %s346 = smul.u32 8, %s345
      %p347 = scmp.lt.s32.totalorder %s24, 1
      %s348 = scalar_select %p347, %s24, 1
      %p349 = scmp.lt.s32.totalorder %s346, 7
      %s350 = scalar_select %p349, %s346, 7
      %s351 = smul.addr %s348, 8
      %s352 = sadd.s32 %s350, %s351
      %s353 = smul.addr %s352, 8
      %s354 = scalar_lea.vmem %s1, %s353
      %p355 = pneg %p89
      %p356 = pneg %p86
      %p357 = pneg %p110
      %p358 = pneg %p107
      %p359 = pneg %p131
      %p360 = pneg %p128
      %p361 = pneg %p152
      %p362 = pneg %p149
      %p363 = pneg %p173
      %p364 = pneg %p170
      %s365 = smul.u32 8, %s25
      %p366 = scmp.lt.s32.totalorder %s365, 7
      %s367 = scalar_select %p366, %s365, 7
      %s368 = smul.addr %s367, 8
      %s369 = scalar_lea.vmem %s6, %s368
      %p370 = pneg %p199
      %p371 = pneg %p196
      %p372 = pneg %p227
      %p373 = pneg %p224
      %s374 = smul.u32 8, %s25
      %p375 = scmp.lt.s32.totalorder %s24, 1
      %s376 = scalar_select %p375, %s24, 1
      %p377 = scmp.lt.s32.totalorder %s374, 7
      %s378 = scalar_select %p377, %s374, 7
      %s379 = smul.addr %s376, 8
      %s380 = sadd.s32 %s378, %s379
      %s381 = smul.addr %s380, 8
      %s382 = scalar_lea.vmem %s7, %s381
      %p383 = pneg %p253
      %p384 = pneg %p250
      %p385 = scmp.lt.s32.totalorder %s24, 1
      %s386 = scalar_select %p385, %s24, 1
      %s387 = smul.addr %s386, 2
      %s388 = scalar_lea.vmem %s8, %s387
      %s389 = smul.u32 8, %s25
      %p390 = scmp.lt.s32.totalorder %s24, 1
      %s391 = scalar_select %p390, %s24, 1
      %p392 = scmp.lt.s32.totalorder %s389, 7
      %s393 = scalar_select %p392, %s389, 7
      %s394 = smul.addr %s391, 8
      %s395 = sadd.s32 %s393, %s394
      %s396 = smul.addr %s395, 8
      %s397 = scalar_lea.vmem %s0, %s396
      %s398 = smul.u32 8, %s25
      %s399 = sadd.s32 %s25, 1
      %p400 = scmp.lt.s32.totalorder %s399, 0
      %s401 = scalar_select %p400, %s399, 0
      %s402 = smul.u32 8, %s401
      %p403 = scmp.lt.s32.totalorder %s24, 1
      %s404 = scalar_select %p403, %s24, 1
      %p405 = scmp.lt.s32.totalorder %s402, 7
      %s406 = scalar_select %p405, %s402, 7
      %s407 = smul.addr %s404, 8
      %s408 = sadd.s32 %s406, %s407
      %s409 = smul.addr %s408, 8
      %s410 = scalar_lea.vmem %s1, %s409
      %s411 = sadd.s32 %s25, 1
      %p412 = scmp.lt.s32.totalorder %s411, 0
      %s413 = scalar_select %p412, %s411, 0
      %s414 = smul.u32 8, %s413
      %s415 = smul.u32 8, %s25
      %p416 = scmp.lt.s32.totalorder %s415, 7
      %s417 = scalar_select %p416, %s415, 7
      %s418 = smul.addr %s417, 8
      %s419 = scalar_lea.vmem %s6, %s418
      %s420 = smul.u32 8, %s25
      %s421 = smul.u32 8, %s25
      %p422 = scmp.lt.s32.totalorder %s24, 1
      %s423 = scalar_select %p422, %s24, 1
      %p424 = scmp.lt.s32.totalorder %s421, 7
      %s425 = scalar_select %p424, %s421, 7
      %s426 = smul.addr %s423, 8
      %s427 = sadd.s32 %s425, %s426
      %s428 = smul.addr %s427, 8
      %s429 = scalar_lea.vmem %s7, %s428
      %s430 = smul.u32 8, %s25
      %p431 = scmp.lt.s32.totalorder %s24, 1
      %s432 = scalar_select %p431, %s24, 1
      %s433 = smul.addr %s432, 2
      %s434 = scalar_lea.vmem %s8, %s433
      %v436 = vld [vmem:[%s397] sm:$0xff]
      %v437 = vld [vmem:[%s397 + $0x8] sm:$0xff]
      %v438 = vld [vmem:[%s397 + $0x10] sm:$0xff]
      %v439 = vld [vmem:[%s397 + $0x18] sm:$0xff]
      %v440 = vld [vmem:[%s397 + $0x20] sm:$0xff]
      %v441 = vld [vmem:[%s397 + $0x28] sm:$0xff]
      %v442 = vld [vmem:[%s397 + $0x30] sm:$0xff]
      %v443 = vld [vmem:[%s397 + $0x38] sm:$0xff]
      %v444 = vld [vmem:[%s410] sm:$0xff]
      %v445 = vld [vmem:[%s410 + $0x8] sm:$0xff]
      %v446 = vld [vmem:[%s410 + $0x10] sm:$0xff]
      %v447 = vld [vmem:[%s2] sm:$0x1]
      %v448 = vld [vmem:[%s3] sm:$0x1]
      %v450 = vlaneseq
      %v451 = vshrl.u32 %v450, 7
      %v452 = vsub.s32 0, %v451
      %v453 = vrot.slane %v447, %v452
      %v455 = vmul.f32 %v436, %v453
      %v456 = vmul.f32 %v437, %v453
      %v457 = vmul.f32 %v438, %v453
      %v458 = vmul.f32 %v439, %v453
      %v459 = vmul.f32 %v440, %v453
      %v460 = vmul.f32 %v441, %v453
      %v461 = vmul.f32 %v442, %v453
      %v462 = vmul.f32 %v443, %v453
      %v464 = vlaneseq
      %v465 = vshrl.u32 %v464, 7
      %v466 = vsub.s32 0, %v465
      %v467 = vrot.slane %v448, %v466
      %v469 = vadd.f32 %v455, %v467
      %v470 = vadd.f32 %v456, %v467
      %v471 = vadd.f32 %v457, %v467
      %v472 = vadd.f32 %v458, %v467
      %v473 = vadd.f32 %v459, %v467
      %v474 = vadd.f32 %v460, %v467
      %v475 = vadd.f32 %v461, %v467
      %v476 = vadd.f32 %v462, %v467
      %v477 = vmax.f32 %v469, 0.0
      %v478 = vmax.f32 %v470, 0.0
      %v479 = vmax.f32 %v471, 0.0
      %v480 = vmax.f32 %v472, 0.0
      %v481 = vmax.f32 %v473, 0.0
      %v482 = vmax.f32 %v474, 0.0
      %v483 = vmax.f32 %v475, 0.0
      %v484 = vmax.f32 %v476, 0.0
      %v485 = vmul.f32 %v444, %v453
      %v486 = vmul.f32 %v445, %v453
      %v487 = vmul.f32 %v446, %v453
      %v488 = vadd.f32 %v485, %v467
      %v489 = vadd.f32 %v486, %v467
      %v490 = vadd.f32 %v487, %v467
      %v491 = vmax.f32 %v488, 0.0
      %v492 = vmax.f32 %v489, 0.0
      %v493 = vmax.f32 %v490, 0.0
      %v494 = vpack.c.bf16 %v478, %v477
      %v495 = vpack.c.bf16 %v480, %v479
      %v496 = vpack.c.bf16 %v482, %v481
      %v497 = vpack.c.bf16 %v484, %v483
      %v498 = vld [vmem:[%s4] sm:$0xf]
      %v499 = vld [vmem:[%s4 + $0x4] sm:$0xf]
      %v500 = vld [vmem:[%s4 + $0x8] sm:$0xf]
      %v501 = vld [vmem:[%s4 + $0xc] sm:$0xf]
      %v502 = vld [vmem:[%s4 + $0x10] sm:$0xf]
      %v503 = vld [vmem:[%s4 + $0x14] sm:$0xf]
      %v504 = vld [vmem:[%s4 + $0x18] sm:$0xf]
      %v505 = vld [vmem:[%s4 + $0x1c] sm:$0xf]
      %v506 = vld [vmem:[%s4 + $0x20] sm:$0xf]
      %v507 = vld [vmem:[%s4 + $0x24] sm:$0xf]
      %v508 = vld [vmem:[%s4 + $0x28] sm:$0xf]
      %v509 = vld [vmem:[%s4 + $0x2c] sm:$0xf]
      %v510 = vld [vmem:[%s4 + $0x30] sm:$0xf]
      %v511 = vld [vmem:[%s4 + $0x34] sm:$0xf]
      %v512 = vld [vmem:[%s4 + $0x38] sm:$0xf]
      %v513 = vld [vmem:[%s4 + $0x3c] sm:$0xf]
      %v514 = vpack.c.bf16 %v491, %v491
      %s515 = scalar_lea.vmem %s4, 64
      %v516 = vld [vmem:[%s515] sm:$0xf]
      %v517 = vld [vmem:[%s515 + $0x4] sm:$0xf]
      %v518 = vld [vmem:[%s515 + $0x8] sm:$0xf]
      %v519 = vld [vmem:[%s515 + $0xc] sm:$0xf]
      %v520 = vld [vmem:[%s515 + $0x10] sm:$0xf]
      %v521 = vld [vmem:[%s515 + $0x14] sm:$0xf]
      %v522 = vld [vmem:[%s515 + $0x18] sm:$0xf]
      %v523 = vld [vmem:[%s515 + $0x1c] sm:$0xf]
      %v524 = vld [vmem:[%s515 + $0x20] sm:$0xf]
      %v525 = vld [vmem:[%s515 + $0x24] sm:$0xf]
      %v526 = vld [vmem:[%s515 + $0x28] sm:$0xf]
      %v527 = vld [vmem:[%s515 + $0x2c] sm:$0xf]
      %v528 = vld [vmem:[%s515 + $0x30] sm:$0xf]
      %v529 = vld [vmem:[%s515 + $0x34] sm:$0xf]
      %v530 = vld [vmem:[%s515 + $0x38] sm:$0xf]
      %v531 = vld [vmem:[%s515 + $0x3c] sm:$0xf]
      %vm532 = vsmask.f32 7424
      %v534 = vshrl.u32 %v494, 16
      %v536 = vshll.u32 %v494, 16
      %v538 = vrot.slane %v536, 1
      %v539 = vor.u32 %v534, %v538
      %v541 = vshll.u32 %v495, 16
      %v543 = vrot.slane %v541, 1
      %v544 = vsel %vm532, %v539, %v543
      %v545 = vshrl.u32 %v495, 16
      %v547 = vor.u32 %v545, %v543
      %v549 = vshll.u32 %v496, 16
      %v551 = vrot.slane %v549, 1
      %v552 = vsel %vm532, %v547, %v551
      %v553 = vshrl.u32 %v496, 16
      %v555 = vor.u32 %v553, %v551
      %v557 = vshll.u32 %v497, 16
      %v559 = vrot.slane %v557, 1
      %v560 = vsel %vm532, %v555, %v559
      %v561 = vshrl.u32 %v497, 16
      %v563 = vor.u32 %v561, %v559
      %v565 = vshll.u32 %v514, 16
      %v567 = vrot.slane %v565, 1
      %v568 = vsel %vm532, %v563, %v567
      %v589 = vunpack.c.l.b16 %v516
      %v590 = vunpack.c.l.b16 %v517
      %v591 = vunpack.c.l.b16 %v518
      %v592 = vunpack.c.l.b16 %v519
      %v593 = vunpack.c.l.b16 %v520
      %v594 = vunpack.c.l.b16 %v521
      %v595 = vunpack.c.l.b16 %v522
      %v596 = vunpack.c.l.b16 %v523
      %v597 = vunpack.c.l.b16 %v524
      %v598 = vunpack.c.l.b16 %v525
      %v599 = vunpack.c.l.b16 %v526
      %v600 = vunpack.c.l.b16 %v527
      %v601 = vunpack.c.l.b16 %v528
      %v602 = vunpack.c.l.b16 %v529
      %v603 = vunpack.c.l.b16 %v530
      %v604 = vunpack.c.l.b16 %v531
      %v605 = vpack.c.b16 %v590, %v589
      %v606 = vpack.c.b16 %v592, %v591
      %v607 = vpack.c.b16 %v594, %v593
      %v608 = vpack.c.b16 %v596, %v595
      %v609 = vpack.c.b16 %v598, %v597
      %v610 = vpack.c.b16 %v600, %v599
      %v611 = vpack.c.b16 %v602, %v601
      %v612 = vpack.c.b16 %v604, %v603
      %621 = vmatprep.subr.bf16.mxu0 0
      %622 = vmatpush1.bf16.msra.mxu0 %v605
      %623 = vmatprep.subr.bf16.mxu0 0
      %624 = vmatpush1.bf16.msra.mxu0 %v606
      %625 = vmatprep.subr.bf16.mxu0 0
      %626 = vmatpush1.bf16.msra.mxu0 %v607
      %627 = vmatprep.subr.bf16.mxu0 0
      %628 = vmatpush1.bf16.msra.mxu0 %v608
      %629 = vmatprep.subr.bf16.mxu0 0
      %630 = vmatpush1.bf16.msra.mxu0 %v609
      %631 = vmatprep.subr.bf16.mxu0 0
      %632 = vmatpush1.bf16.msra.mxu0 %v610
      %633 = vmatprep.subr.bf16.mxu0 0
      %634 = vmatpush1.bf16.msra.mxu0 %v611
      %635 = vmatprep.subr.bf16.mxu0 0
      %636 = vmatpush1.bf16.msra.mxu0 %v612
      %637 = vmatprep.subr.bf16.mxu0 0
      %638 = vmatpush1.bf16.msra.mxu0 0
      %639 = vmatprep.subr.bf16.mxu0 0
      %640 = vmatpush1.bf16.msra.mxu0 0
      %641 = vmatprep.subr.bf16.mxu0 0
      %642 = vmatpush1.bf16.msra.mxu0 0
      %643 = vmatprep.subr.bf16.mxu0 0
      %644 = vmatpush1.bf16.msra.mxu0 0
      %645 = vmatprep.subr.bf16.mxu0 0
      %646 = vmatpush1.bf16.msra.mxu0 0
      %647 = vmatprep.subr.bf16.mxu0 0
      %648 = vmatpush1.bf16.msra.mxu0 0
      %649 = vmatprep.subr.bf16.mxu0 0
      %650 = vmatpush1.bf16.msra.mxu0 0
      %651 = vmatprep.subr.bf16.mxu0 0
      %652 = vmatpush1.bf16.msra.mxu0 0
      %653 = vmatprep.mubr.bf16.mxu0 0
      %654 = vmatmul.mubr.bf16.gmra.mrb[0].mxu0 %v544
      %v655 = vpop.f32.mrb[0].mxu0
      %v656 = vadd.f32 0.0, %v655
      %v657 = vpop.f32.mrb[0].mxu0
      %v658 = vpop.f32.mrb[0].mxu0
      %v659 = vadd.f32 0.0, %v658
      %v660 = vpop.f32.mrb[0].mxu0
      %661 = vmatprep.mubr.bf16.mxu0 0
      %662 = vmatmul.mubr.bf16.gmra.mrb[0].mxu0 %v552
      %v663 = vpop.f32.mrb[0].mxu0
      %v664 = vadd.f32 0.0, %v663
      %v665 = vpop.f32.mrb[0].mxu0
      %v666 = vpop.f32.mrb[0].mxu0
      %v667 = vadd.f32 0.0, %v666
      %v668 = vpop.f32.mrb[0].mxu0
      %669 = vmatprep.mubr.bf16.mxu0 0
      %670 = vmatmul.mubr.bf16.gmra.mrb[0].mxu0 %v560
      %v671 = vpop.f32.mrb[0].mxu0
      %v672 = vadd.f32 0.0, %v671
      %v673 = vpop.f32.mrb[0].mxu0
      %v674 = vpop.f32.mrb[0].mxu0
      %v675 = vadd.f32 0.0, %v674
      %v676 = vpop.f32.mrb[0].mxu0
      %677 = vmatprep.mubr.bf16.mxu0 0
      %678 = vmatmul.mubr.bf16.gmra.mrb[0].mxu0 %v568
      %v679 = vpop.f32.mrb[0].mxu0
      %v680 = vadd.f32 0.0, %v679
      %v681 = vpop.f32.mrb[0].mxu0
      %v682 = vpop.f32.mrb[0].mxu0
      %v683 = vadd.f32 0.0, %v682
      %v684 = vpop.f32.mrb[0].mxu0
      %685 = vdwg.mxu0
      %v702 = vunpack.c.l.b16 %v498
      %v703 = vunpack.c.l.b16 %v499
      %v704 = vunpack.c.l.b16 %v500
      %v705 = vunpack.c.l.b16 %v501
      %v706 = vunpack.c.l.b16 %v502
      %v707 = vunpack.c.l.b16 %v503
      %v708 = vunpack.c.l.b16 %v504
      %v709 = vunpack.c.l.b16 %v505
      %v710 = vunpack.c.l.b16 %v506
      %v711 = vunpack.c.l.b16 %v507
      %v712 = vunpack.c.l.b16 %v508
      %v713 = vunpack.c.l.b16 %v509
      %v714 = vunpack.c.l.b16 %v510
      %v715 = vunpack.c.l.b16 %v511
      %v716 = vunpack.c.l.b16 %v512
      %v717 = vunpack.c.l.b16 %v513
      %v718 = vpack.c.b16 %v703, %v702
      %v719 = vpack.c.b16 %v705, %v704
      %v720 = vpack.c.b16 %v707, %v706
      %v721 = vpack.c.b16 %v709, %v708
      %v722 = vpack.c.b16 %v711, %v710
      %v723 = vpack.c.b16 %v713, %v712
      %v724 = vpack.c.b16 %v715, %v714
      %v725 = vpack.c.b16 %v717, %v716
      %734 = vmatprep.subr.bf16.mxu0 0
      %735 = vmatpush1.bf16.msra.mxu0 %v718
      %736 = vmatprep.subr.bf16.mxu0 0
      %737 = vmatpush1.bf16.msra.mxu0 %v719
      %738 = vmatprep.subr.bf16.mxu0 0
      %739 = vmatpush1.bf16.msra.mxu0 %v720
      %740 = vmatprep.subr.bf16.mxu0 0
      %741 = vmatpush1.bf16.msra.mxu0 %v721
      %742 = vmatprep.subr.bf16.mxu0 0
      %743 = vmatpush1.bf16.msra.mxu0 %v722
      %744 = vmatprep.subr.bf16.mxu0 0
      %745 = vmatpush1.bf16.msra.mxu0 %v723
      %746 = vmatprep.subr.bf16.mxu0 0
      %747 = vmatpush1.bf16.msra.mxu0 %v724
      %748 = vmatprep.subr.bf16.mxu0 0
      %749 = vmatpush1.bf16.msra.mxu0 %v725
      %750 = vmatprep.subr.bf16.mxu0 0
      %751 = vmatpush1.bf16.msra.mxu0 0
      %752 = vmatprep.subr.bf16.mxu0 0
      %753 = vmatpush1.bf16.msra.mxu0 0
      %754 = vmatprep.subr.bf16.mxu0 0
      %755 = vmatpush1.bf16.msra.mxu0 0
      %756 = vmatprep.subr.bf16.mxu0 0
      %757 = vmatpush1.bf16.msra.mxu0 0
      %758 = vmatprep.subr.bf16.mxu0 0
      %759 = vmatpush1.bf16.msra.mxu0 0
      %760 = vmatprep.subr.bf16.mxu0 0
      %761 = vmatpush1.bf16.msra.mxu0 0
      %762 = vmatprep.subr.bf16.mxu0 0
      %763 = vmatpush1.bf16.msra.mxu0 0
      %764 = vmatprep.subr.bf16.mxu0 0
      %765 = vmatpush1.bf16.msra.mxu0 0
      %766 = vmatprep.mubr.bf16.mxu0 0
      %767 = vmatmul.mubr.bf16.gmra.mrb[0].mxu0 %v494
      %v768 = vpop.f32.mrb[0].mxu0
      %v769 = vadd.f32 %v656, %v768
      %v770 = vpop.f32.mrb[0].mxu0
      %v771 = vpop.f32.mrb[0].mxu0
      %v772 = vadd.f32 %v659, %v771
      %v773 = vpop.f32.mrb[0].mxu0
      %774 = vmatprep.mubr.bf16.mxu0 0
      %775 = vmatmul.mubr.bf16.gmra.mrb[0].mxu0 %v495
      %v776 = vpop.f32.mrb[0].mxu0
      %v777 = vadd.f32 %v664, %v776
      %v778 = vpop.f32.mrb[0].mxu0
      %v779 = vpop.f32.mrb[0].mxu0
      %v780 = vadd.f32 %v667, %v779
      %v781 = vpop.f32.mrb[0].mxu0
      %782 = vmatprep.mubr.bf16.mxu0 0
      %783 = vmatmul.mubr.bf16.gmra.mrb[0].mxu0 %v496
      %v784 = vpop.f32.mrb[0].mxu0
      %v785 = vadd.f32 %v672, %v784
      %v786 = vpop.f32.mrb[0].mxu0
      %v787 = vpop.f32.mrb[0].mxu0
      %v788 = vadd.f32 %v675, %v787
      %v789 = vpop.f32.mrb[0].mxu0
      %790 = vmatprep.mubr.bf16.mxu0 0
      %791 = vmatmul.mubr.bf16.gmra.mrb[0].mxu0 %v497
      %v792 = vpop.f32.mrb[0].mxu0
      %v793 = vadd.f32 %v680, %v792
      %v794 = vpop.f32.mrb[0].mxu0
      %v795 = vpop.f32.mrb[0].mxu0
      %v796 = vadd.f32 %v683, %v795
      %v797 = vpop.f32.mrb[0].mxu0
      %798 = vdwg.mxu0
      %s799 = scalar_lea.vmem %s4, 128
      %v800 = vld [vmem:[%s799] sm:$0xf]
      %v801 = vld [vmem:[%s799 + $0x4] sm:$0xf]
      %v802 = vld [vmem:[%s799 + $0x8] sm:$0xf]
      %v803 = vld [vmem:[%s799 + $0xc] sm:$0xf]
      %v804 = vld [vmem:[%s799 + $0x10] sm:$0xf]
      %v805 = vld [vmem:[%s799 + $0x14] sm:$0xf]
      %v806 = vld [vmem:[%s799 + $0x18] sm:$0xf]
      %v807 = vld [vmem:[%s799 + $0x1c] sm:$0xf]
      %v808 = vld [vmem:[%s799 + $0x20] sm:$0xf]
      %v809 = vld [vmem:[%s799 + $0x24] sm:$0xf]
      %v810 = vld [vmem:[%s799 + $0x28] sm:$0xf]
      %v811 = vld [vmem:[%s799 + $0x2c] sm:$0xf]
      %v812 = vld [vmem:[%s799 + $0x30] sm:$0xf]
      %v813 = vld [vmem:[%s799 + $0x34] sm:$0xf]
      %v814 = vld [vmem:[%s799 + $0x38] sm:$0xf]
      %v815 = vld [vmem:[%s799 + $0x3c] sm:$0xf]
      %vm821 = vcmask 1046528
      %v822 = vrot.slane %v494, 1
      %v823 = vrot.slane %v495, 1
      %v824 = vsel %vm821, %v822, %v823
      %v825 = vrot.slane %v496, 1
      %v826 = vsel %vm821, %v823, %v825
      %v827 = vrot.slane %v497, 1
      %v828 = vsel %vm821, %v825, %v827
      %v829 = vrot.slane %v514, 1
      %v830 = vsel %vm821, %v827, %v829
      %v851 = vunpack.c.l.b16 %v800
      %v852 = vunpack.c.l.b16 %v801
      %v853 = vunpack.c.l.b16 %v802
      %v854 = vunpack.c.l.b16 %v803
      %v855 = vunpack.c.l.b16 %v804
      %v856 = vunpack.c.l.b16 %v805
      %v857 = vunpack.c.l.b16 %v806
      %v858 = vunpack.c.l.b16 %v807
      %v859 = vunpack.c.l.b16 %v808
      %v860 = vunpack.c.l.b16 %v809
      %v861 = vunpack.c.l.b16 %v810
      %v862 = vunpack.c.l.b16 %v811
      %v863 = vunpack.c.l.b16 %v812
      %v864 = vunpack.c.l.b16 %v813
      %v865 = vunpack.c.l.b16 %v814
      %v866 = vunpack.c.l.b16 %v815
      %v867 = vpack.c.b16 %v852, %v851
      %v868 = vpack.c.b16 %v854, %v853
      %v869 = vpack.c.b16 %v856, %v855
      %v870 = vpack.c.b16 %v858, %v857
      %v871 = vpack.c.b16 %v860, %v859
      %v872 = vpack.c.b16 %v862, %v861
      %v873 = vpack.c.b16 %v864, %v863
      %v874 = vpack.c.b16 %v866, %v865
      %883 = vmatprep.subr.bf16.mxu0 0
      %884 = vmatpush1.bf16.msra.mxu0 %v867
      %885 = vmatprep.subr.bf16.mxu0 0
      %886 = vmatpush1.bf16.msra.mxu0 %v868
      %887 = vmatprep.subr.bf16.mxu0 0
      %888 = vmatpush1.bf16.msra.mxu0 %v869
      %889 = vmatprep.subr.bf16.mxu0 0
      %890 = vmatpush1.bf16.msra.mxu0 %v870
      %891 = vmatprep.subr.bf16.mxu0 0
      %892 = vmatpush1.bf16.msra.mxu0 %v871
      %893 = vmatprep.subr.bf16.mxu0 0
      %894 = vmatpush1.bf16.msra.mxu0 %v872
      %895 = vmatprep.subr.bf16.mxu0 0
      %896 = vmatpush1.bf16.msra.mxu0 %v873
      %897 = vmatprep.subr.bf16.mxu0 0
      %898 = vmatpush1.bf16.msra.mxu0 %v874
      %899 = vmatprep.subr.bf16.mxu0 0
      %900 = vmatpush1.bf16.msra.mxu0 0
      %901 = vmatprep.subr.bf16.mxu0 0
      %902 = vmatpush1.bf16.msra.mxu0 0
      %903 = vmatprep.subr.bf16.mxu0 0
      %904 = vmatpush1.bf16.msra.mxu0 0
      %905 = vmatprep.subr.bf16.mxu0 0
      %906 = vmatpush1.bf16.msra.mxu0 0
      %907 = vmatprep.subr.bf16.mxu0 0
      %908 = vmatpush1.bf16.msra.mxu0 0
      %909 = vmatprep.subr.bf16.mxu0 0
      %910 = vmatpush1.bf16.msra.mxu0 0
      %911 = vmatprep.subr.bf16.mxu0 0
      %912 = vmatpush1.bf16.msra.mxu0 0
      %913 = vmatprep.subr.bf16.mxu0 0
      %914 = vmatpush1.bf16.msra.mxu0 0
      %915 = vmatprep.mubr.bf16.mxu0 0
      %916 = vmatmul.mubr.bf16.gmra.mrb[0].mxu0 %v824
      %v917 = vpop.f32.mrb[0].mxu0
      %v918 = vadd.f32 0.0, %v917
      %v919 = vpop.f32.mrb[0].mxu0
      %v920 = vpop.f32.mrb[0].mxu0
      %v921 = vadd.f32 0.0, %v920
      %v922 = vpop.f32.mrb[0].mxu0
      %923 = vmatprep.mubr.bf16.mxu0 0
      %924 = vmatmul.mubr.bf16.gmra.mrb[0].mxu0 %v826
      %v925 = vpop.f32.mrb[0].mxu0
      %v926 = vadd.f32 0.0, %v925
      %v927 = vpop.f32.mrb[0].mxu0
      %v928 = vpop.f32.mrb[0].mxu0
      %v929 = vadd.f32 0.0, %v928
      %v930 = vpop.f32.mrb[0].mxu0
      %931 = vmatprep.mubr.bf16.mxu0 0
      %932 = vmatmul.mubr.bf16.gmra.mrb[0].mxu0 %v828
      %v933 = vpop.f32.mrb[0].mxu0
      %v934 = vadd.f32 0.0, %v933
      %v935 = vpop.f32.mrb[0].mxu0
      %v936 = vpop.f32.mrb[0].mxu0
      %v937 = vadd.f32 0.0, %v936
      %v938 = vpop.f32.mrb[0].mxu0
      %939 = vmatprep.mubr.bf16.mxu0 0
      %940 = vmatmul.mubr.bf16.gmra.mrb[0].mxu0 %v830
      %v941 = vpop.f32.mrb[0].mxu0
      %v942 = vadd.f32 0.0, %v941
      %v943 = vpop.f32.mrb[0].mxu0
      %v944 = vpop.f32.mrb[0].mxu0
      %v945 = vadd.f32 0.0, %v944
      %v946 = vpop.f32.mrb[0].mxu0
      %947 = vdwg.mxu0
      %v948 = vadd.f32 %v769, %v918
      %v949 = vadd.f32 %v772, %v921
      %v950 = vadd.f32 %v777, %v926
      %v951 = vadd.f32 %v780, %v929
      %v952 = vadd.f32 %v785, %v934
      %v953 = vadd.f32 %v788, %v937
      %v954 = vadd.f32 %v793, %v942
      %v955 = vadd.f32 %v796, %v945
      %v956 = vpack.c.bf16 %v479, %v478
      %v957 = vpack.c.bf16 %v481, %v480
      %v958 = vpack.c.bf16 %v483, %v482
      %v959 = vpack.c.bf16 %v491, %v484
      %s960 = scalar_lea.vmem %s4, 192
      %v961 = vld [vmem:[%s960] sm:$0xf]
      %v962 = vld [vmem:[%s960 + $0x4] sm:$0xf]
      %v963 = vld [vmem:[%s960 + $0x8] sm:$0xf]
      %v964 = vld [vmem:[%s960 + $0xc] sm:$0xf]
      %v965 = vld [vmem:[%s960 + $0x10] sm:$0xf]
      %v966 = vld [vmem:[%s960 + $0x14] sm:$0xf]
      %v967 = vld [vmem:[%s960 + $0x18] sm:$0xf]
      %v968 = vld [vmem:[%s960 + $0x1c] sm:$0xf]
      %v969 = vld [vmem:[%s960 + $0x20] sm:$0xf]
      %v970 = vld [vmem:[%s960 + $0x24] sm:$0xf]
      %v971 = vld [vmem:[%s960 + $0x28] sm:$0xf]
      %v972 = vld [vmem:[%s960 + $0x2c] sm:$0xf]
      %v973 = vld [vmem:[%s960 + $0x30] sm:$0xf]
      %v974 = vld [vmem:[%s960 + $0x34] sm:$0xf]
      %v975 = vld [vmem:[%s960 + $0x38] sm:$0xf]
      %v976 = vld [vmem:[%s960 + $0x3c] sm:$0xf]
      %v993 = vunpack.c.l.b16 %v961
      %v994 = vunpack.c.l.b16 %v962
      %v995 = vunpack.c.l.b16 %v963
      %v996 = vunpack.c.l.b16 %v964
      %v997 = vunpack.c.l.b16 %v965
      %v998 = vunpack.c.l.b16 %v966
      %v999 = vunpack.c.l.b16 %v967
      %v1000 = vunpack.c.l.b16 %v968
      %v1001 = vunpack.c.l.b16 %v969
      %v1002 = vunpack.c.l.b16 %v970
      %v1003 = vunpack.c.l.b16 %v971
      %v1004 = vunpack.c.l.b16 %v972
      %v1005 = vunpack.c.l.b16 %v973
      %v1006 = vunpack.c.l.b16 %v974
      %v1007 = vunpack.c.l.b16 %v975
      %v1008 = vunpack.c.l.b16 %v976
      %v1009 = vpack.c.b16 %v994, %v993
      %v1010 = vpack.c.b16 %v996, %v995
      %v1011 = vpack.c.b16 %v998, %v997
      %v1012 = vpack.c.b16 %v1000, %v999
      %v1013 = vpack.c.b16 %v1002, %v1001
      %v1014 = vpack.c.b16 %v1004, %v1003
      %v1015 = vpack.c.b16 %v1006, %v1005
      %v1016 = vpack.c.b16 %v1008, %v1007
      %1025 = vmatprep.subr.bf16.mxu0 0
      %1026 = vmatpush1.bf16.msra.mxu0 %v1009
      %1027 = vmatprep.subr.bf16.mxu0 0
      %1028 = vmatpush1.bf16.msra.mxu0 %v1010
      %1029 = vmatprep.subr.bf16.mxu0 0
      %1030 = vmatpush1.bf16.msra.mxu0 %v1011
      %1031 = vmatprep.subr.bf16.mxu0 0
      %1032 = vmatpush1.bf16.msra.mxu0 %v1012
      %1033 = vmatprep.subr.bf16.mxu0 0
      %1034 = vmatpush1.bf16.msra.mxu0 %v1013
      %1035 = vmatprep.subr.bf16.mxu0 0
      %1036 = vmatpush1.bf16.msra.mxu0 %v1014
      %1037 = vmatprep.subr.bf16.mxu0 0
      %1038 = vmatpush1.bf16.msra.mxu0 %v1015
      %1039 = vmatprep.subr.bf16.mxu0 0
      %1040 = vmatpush1.bf16.msra.mxu0 %v1016
      %1041 = vmatprep.subr.bf16.mxu0 0
      %1042 = vmatpush1.bf16.msra.mxu0 0
      %1043 = vmatprep.subr.bf16.mxu0 0
      %1044 = vmatpush1.bf16.msra.mxu0 0
      %1045 = vmatprep.subr.bf16.mxu0 0
      %1046 = vmatpush1.bf16.msra.mxu0 0
      %1047 = vmatprep.subr.bf16.mxu0 0
      %1048 = vmatpush1.bf16.msra.mxu0 0
      %1049 = vmatprep.subr.bf16.mxu0 0
      %1050 = vmatpush1.bf16.msra.mxu0 0
      %1051 = vmatprep.subr.bf16.mxu0 0
      %1052 = vmatpush1.bf16.msra.mxu0 0
      %1053 = vmatprep.subr.bf16.mxu0 0
      %1054 = vmatpush1.bf16.msra.mxu0 0
      %1055 = vmatprep.subr.bf16.mxu0 0
      %1056 = vmatpush1.bf16.msra.mxu0 0
      %1057 = vmatprep.mubr.bf16.mxu0 0
      %1058 = vmatmul.mubr.bf16.gmra.mrb[0].mxu0 %v956
      %v1059 = vpop.f32.mrb[0].mxu0
      %v1060 = vadd.f32 0.0, %v1059
      %v1061 = vpop.f32.mrb[0].mxu0
      %v1062 = vpop.f32.mrb[0].mxu0
      %v1063 = vadd.f32 0.0, %v1062
      %v1064 = vpop.f32.mrb[0].mxu0
      %1065 = vmatprep.mubr.bf16.mxu0 0
      %1066 = vmatmul.mubr.bf16.gmra.mrb[0].mxu0 %v957
      %v1067 = vpop.f32.mrb[0].mxu0
      %v1068 = vadd.f32 0.0, %v1067
      %v1069 = vpop.f32.mrb[0].mxu0
      %v1070 = vpop.f32.mrb[0].mxu0
      %v1071 = vadd.f32 0.0, %v1070
      %v1072 = vpop.f32.mrb[0].mxu0
      %1073 = vmatprep.mubr.bf16.mxu0 0
      %1074 = vmatmul.mubr.bf16.gmra.mrb[0].mxu0 %v958
      %v1075 = vpop.f32.mrb[0].mxu0
      %v1076 = vadd.f32 0.0, %v1075
      %v1077 = vpop.f32.mrb[0].mxu0
      %v1078 = vpop.f32.mrb[0].mxu0
      %v1079 = vadd.f32 0.0, %v1078
      %v1080 = vpop.f32.mrb[0].mxu0
      %1081 = vmatprep.mubr.bf16.mxu0 0
      %1082 = vmatmul.mubr.bf16.gmra.mrb[0].mxu0 %v959
      %v1083 = vpop.f32.mrb[0].mxu0
      %v1084 = vadd.f32 0.0, %v1083
      %v1085 = vpop.f32.mrb[0].mxu0
      %v1086 = vpop.f32.mrb[0].mxu0
      %v1087 = vadd.f32 0.0, %v1086
      %v1088 = vpop.f32.mrb[0].mxu0
      %1089 = vdwg.mxu0
      %v1090 = vadd.f32 %v948, %v1060
      %v1091 = vadd.f32 %v949, %v1063
      %v1092 = vadd.f32 %v950, %v1068
      %v1093 = vadd.f32 %v951, %v1071
      %v1094 = vadd.f32 %v952, %v1076
      %v1095 = vadd.f32 %v953, %v1079
      %v1096 = vadd.f32 %v954, %v1084
      %v1097 = vadd.f32 %v955, %v1087
      %v1098 = vpack.c.bf16 %v492, %v492
      %s1099 = scalar_lea.vmem %s4, 256
      %v1100 = vld [vmem:[%s1099] sm:$0xf]
      %v1101 = vld [vmem:[%s1099 + $0x4] sm:$0xf]
      %v1102 = vld [vmem:[%s1099 + $0x8] sm:$0xf]
      %v1103 = vld [vmem:[%s1099 + $0xc] sm:$0xf]
      %v1104 = vld [vmem:[%s1099 + $0x10] sm:$0xf]
      %v1105 = vld [vmem:[%s1099 + $0x14] sm:$0xf]
      %v1106 = vld [vmem:[%s1099 + $0x18] sm:$0xf]
      %v1107 = vld [vmem:[%s1099 + $0x1c] sm:$0xf]
      %v1108 = vld [vmem:[%s1099 + $0x20] sm:$0xf]
      %v1109 = vld [vmem:[%s1099 + $0x24] sm:$0xf]
      %v1110 = vld [vmem:[%s1099 + $0x28] sm:$0xf]
      %v1111 = vld [vmem:[%s1099 + $0x2c] sm:$0xf]
      %v1112 = vld [vmem:[%s1099 + $0x30] sm:$0xf]
      %v1113 = vld [vmem:[%s1099 + $0x34] sm:$0xf]
      %v1114 = vld [vmem:[%s1099 + $0x38] sm:$0xf]
      %v1115 = vld [vmem:[%s1099 + $0x3c] sm:$0xf]
      %v1117 = vshrl.u32 %v956, 16
      %v1119 = vshll.u32 %v956, 16
      %v1121 = vrot.slane %v1119, 1
      %v1122 = vor.u32 %v1117, %v1121
      %v1124 = vshll.u32 %v957, 16
      %v1126 = vrot.slane %v1124, 1
      %v1127 = vsel %vm532, %v1122, %v1126
      %v1128 = vshrl.u32 %v957, 16
      %v1130 = vor.u32 %v1128, %v1126
      %v1132 = vshll.u32 %v958, 16
      %v1134 = vrot.slane %v1132, 1
      %v1135 = vsel %vm532, %v1130, %v1134
      %v1136 = vshrl.u32 %v958, 16
      %v1138 = vor.u32 %v1136, %v1134
      %v1140 = vshll.u32 %v959, 16
      %v1142 = vrot.slane %v1140, 1
      %v1143 = vsel %vm532, %v1138, %v1142
      %v1144 = vshrl.u32 %v959, 16
      %v1146 = vor.u32 %v1144, %v1142
      %v1148 = vshll.u32 %v1098, 16
      %v1150 = vrot.slane %v1148, 1
      %v1151 = vsel %vm532, %v1146, %v1150
      %v1172 = vunpack.c.l.b16 %v1100
      %v1173 = vunpack.c.l.b16 %v1101
      %v1174 = vunpack.c.l.b16 %v1102
      %v1175 = vunpack.c.l.b16 %v1103
      %v1176 = vunpack.c.l.b16 %v1104
      %v1177 = vunpack.c.l.b16 %v1105
      %v1178 = vunpack.c.l.b16 %v1106
      %v1179 = vunpack.c.l.b16 %v1107
      %v1180 = vunpack.c.l.b16 %v1108
      %v1181 = vunpack.c.l.b16 %v1109
      %v1182 = vunpack.c.l.b16 %v1110
      %v1183 = vunpack.c.l.b16 %v1111
      %v1184 = vunpack.c.l.b16 %v1112
      %v1185 = vunpack.c.l.b16 %v1113
      %v1186 = vunpack.c.l.b16 %v1114
      %v1187 = vunpack.c.l.b16 %v1115
      %v1188 = vpack.c.b16 %v1173, %v1172
      %v1189 = vpack.c.b16 %v1175, %v1174
      %v1190 = vpack.c.b16 %v1177, %v1176
      %v1191 = vpack.c.b16 %v1179, %v1178
      %v1192 = vpack.c.b16 %v1181, %v1180
      %v1193 = vpack.c.b16 %v1183, %v1182
      %v1194 = vpack.c.b16 %v1185, %v1184
      %v1195 = vpack.c.b16 %v1187, %v1186
      %1204 = vmatprep.subr.bf16.mxu0 0
      %1205 = vmatpush1.bf16.msra.mxu0 %v1188
      %1206 = vmatprep.subr.bf16.mxu0 0
      %1207 = vmatpush1.bf16.msra.mxu0 %v1189
      %1208 = vmatprep.subr.bf16.mxu0 0
      %1209 = vmatpush1.bf16.msra.mxu0 %v1190
      %1210 = vmatprep.subr.bf16.mxu0 0
      %1211 = vmatpush1.bf16.msra.mxu0 %v1191
      %1212 = vmatprep.subr.bf16.mxu0 0
      %1213 = vmatpush1.bf16.msra.mxu0 %v1192
      %1214 = vmatprep.subr.bf16.mxu0 0
      %1215 = vmatpush1.bf16.msra.mxu0 %v1193
      %1216 = vmatprep.subr.bf16.mxu0 0
      %1217 = vmatpush1.bf16.msra.mxu0 %v1194
      %1218 = vmatprep.subr.bf16.mxu0 0
      %1219 = vmatpush1.bf16.msra.mxu0 %v1195
      %1220 = vmatprep.subr.bf16.mxu0 0
      %1221 = vmatpush1.bf16.msra.mxu0 0
      %1222 = vmatprep.subr.bf16.mxu0 0
      %1223 = vmatpush1.bf16.msra.mxu0 0
      %1224 = vmatprep.subr.bf16.mxu0 0
      %1225 = vmatpush1.bf16.msra.mxu0 0
      %1226 = vmatprep.subr.bf16.mxu0 0
      %1227 = vmatpush1.bf16.msra.mxu0 0
      %1228 = vmatprep.subr.bf16.mxu0 0
      %1229 = vmatpush1.bf16.msra.mxu0 0
      %1230 = vmatprep.subr.bf16.mxu0 0
      %1231 = vmatpush1.bf16.msra.mxu0 0
      %1232 = vmatprep.subr.bf16.mxu0 0
      %1233 = vmatpush1.bf16.msra.mxu0 0
      %1234 = vmatprep.subr.bf16.mxu0 0
      %1235 = vmatpush1.bf16.msra.mxu0 0
      %1236 = vmatprep.mubr.bf16.mxu0 0
      %1237 = vmatmul.mubr.bf16.gmra.mrb[0].mxu0 %v1127
      %v1238 = vpop.f32.mrb[0].mxu0
      %v1239 = vadd.f32 0.0, %v1238
      %v1240 = vpop.f32.mrb[0].mxu0
      %v1241 = vpop.f32.mrb[0].mxu0
      %v1242 = vadd.f32 0.0, %v1241
      %v1243 = vpop.f32.mrb[0].mxu0
      %1244 = vmatprep.mubr.bf16.mxu0 0
      %1245 = vmatmul.mubr.bf16.gmra.mrb[0].mxu0 %v1135
      %v1246 = vpop.f32.mrb[0].mxu0
      %v1247 = vadd.f32 0.0, %v1246
      %v1248 = vpop.f32.mrb[0].mxu0
      %v1249 = vpop.f32.mrb[0].mxu0
      %v1250 = vadd.f32 0.0, %v1249
      %v1251 = vpop.f32.mrb[0].mxu0
      %1252 = vmatprep.mubr.bf16.mxu0 0
      %1253 = vmatmul.mubr.bf16.gmra.mrb[0].mxu0 %v1143
      %v1254 = vpop.f32.mrb[0].mxu0
      %v1255 = vadd.f32 0.0, %v1254
      %v1256 = vpop.f32.mrb[0].mxu0
      %v1257 = vpop.f32.mrb[0].mxu0
      %v1258 = vadd.f32 0.0, %v1257
      %v1259 = vpop.f32.mrb[0].mxu0
      %1260 = vmatprep.mubr.bf16.mxu0 0
      %1261 = vmatmul.mubr.bf16.gmra.mrb[0].mxu0 %v1151
      %v1262 = vpop.f32.mrb[0].mxu0
      %v1263 = vadd.f32 0.0, %v1262
      %v1264 = vpop.f32.mrb[0].mxu0
      %v1265 = vpop.f32.mrb[0].mxu0
      %v1266 = vadd.f32 0.0, %v1265
      %v1267 = vpop.f32.mrb[0].mxu0
      %1268 = vdwg.mxu0
      %v1269 = vadd.f32 %v1090, %v1239
      %v1270 = vadd.f32 %v1091, %v1242
      %v1271 = vadd.f32 %v1092, %v1247
      %v1272 = vadd.f32 %v1093, %v1250
      %v1273 = vadd.f32 %v1094, %v1255
      %v1274 = vadd.f32 %v1095, %v1258
      %v1275 = vadd.f32 %v1096, %v1263
      %v1276 = vadd.f32 %v1097, %v1266
      %s1277 = scalar_lea.vmem %s4, 320
      %v1278 = vld [vmem:[%s1277] sm:$0xf]
      %v1279 = vld [vmem:[%s1277 + $0x4] sm:$0xf]
      %v1280 = vld [vmem:[%s1277 + $0x8] sm:$0xf]
      %v1281 = vld [vmem:[%s1277 + $0xc] sm:$0xf]
      %v1282 = vld [vmem:[%s1277 + $0x10] sm:$0xf]
      %v1283 = vld [vmem:[%s1277 + $0x14] sm:$0xf]
      %v1284 = vld [vmem:[%s1277 + $0x18] sm:$0xf]
      %v1285 = vld [vmem:[%s1277 + $0x1c] sm:$0xf]
      %v1286 = vld [vmem:[%s1277 + $0x20] sm:$0xf]
      %v1287 = vld [vmem:[%s1277 + $0x24] sm:$0xf]
      %v1288 = vld [vmem:[%s1277 + $0x28] sm:$0xf]
      %v1289 = vld [vmem:[%s1277 + $0x2c] sm:$0xf]
      %v1290 = vld [vmem:[%s1277 + $0x30] sm:$0xf]
      %v1291 = vld [vmem:[%s1277 + $0x34] sm:$0xf]
      %v1292 = vld [vmem:[%s1277 + $0x38] sm:$0xf]
      %v1293 = vld [vmem:[%s1277 + $0x3c] sm:$0xf]
      %v1299 = vrot.slane %v956, 1
      %v1300 = vrot.slane %v957, 1
      %v1301 = vsel %vm821, %v1299, %v1300
      %v1302 = vrot.slane %v958, 1
      %v1303 = vsel %vm821, %v1300, %v1302
      %v1304 = vrot.slane %v959, 1
      %v1305 = vsel %vm821, %v1302, %v1304
      %v1306 = vrot.slane %v1098, 1
      %v1307 = vsel %vm821, %v1304, %v1306
      %v1328 = vunpack.c.l.b16 %v1278
      %v1329 = vunpack.c.l.b16 %v1279
      %v1330 = vunpack.c.l.b16 %v1280
      %v1331 = vunpack.c.l.b16 %v1281
      %v1332 = vunpack.c.l.b16 %v1282
      %v1333 = vunpack.c.l.b16 %v1283
      %v1334 = vunpack.c.l.b16 %v1284
      %v1335 = vunpack.c.l.b16 %v1285
      %v1336 = vunpack.c.l.b16 %v1286
      %v1337 = vunpack.c.l.b16 %v1287
      %v1338 = vunpack.c.l.b16 %v1288
      %v1339 = vunpack.c.l.b16 %v1289
      %v1340 = vunpack.c.l.b16 %v1290
      %v1341 = vunpack.c.l.b16 %v1291
      %v1342 = vunpack.c.l.b16 %v1292
      %v1343 = vunpack.c.l.b16 %v1293
      %v1344 = vpack.c.b16 %v1329, %v1328
      %v1345 = vpack.c.b16 %v1331, %v1330
      %v1346 = vpack.c.b16 %v1333, %v1332
      %v1347 = vpack.c.b16 %v1335, %v1334
      %v1348 = vpack.c.b16 %v1337, %v1336
      %v1349 = vpack.c.b16 %v1339, %v1338
      %v1350 = vpack.c.b16 %v1341, %v1340
      %v1351 = vpack.c.b16 %v1343, %v1342
      %1360 = vmatprep.subr.bf16.mxu0 0
      %1361 = vmatpush1.bf16.msra.mxu0 %v1344
      %1362 = vmatprep.subr.bf16.mxu0 0
      %1363 = vmatpush1.bf16.msra.mxu0 %v1345
      %1364 = vmatprep.subr.bf16.mxu0 0
      %1365 = vmatpush1.bf16.msra.mxu0 %v1346
      %1366 = vmatprep.subr.bf16.mxu0 0
      %1367 = vmatpush1.bf16.msra.mxu0 %v1347
      %1368 = vmatprep.subr.bf16.mxu0 0
      %1369 = vmatpush1.bf16.msra.mxu0 %v1348
      %1370 = vmatprep.subr.bf16.mxu0 0
      %1371 = vmatpush1.bf16.msra.mxu0 %v1349
      %1372 = vmatprep.subr.bf16.mxu0 0
      %1373 = vmatpush1.bf16.msra.mxu0 %v1350
      %1374 = vmatprep.subr.bf16.mxu0 0
      %1375 = vmatpush1.bf16.msra.mxu0 %v1351
      %1376 = vmatprep.subr.bf16.mxu0 0
      %1377 = vmatpush1.bf16.msra.mxu0 0
      %1378 = vmatprep.subr.bf16.mxu0 0
      %1379 = vmatpush1.bf16.msra.mxu0 0
      %1380 = vmatprep.subr.bf16.mxu0 0
      %1381 = vmatpush1.bf16.msra.mxu0 0
      %1382 = vmatprep.subr.bf16.mxu0 0
      %1383 = vmatpush1.bf16.msra.mxu0 0
      %1384 = vmatprep.subr.bf16.mxu0 0
      %1385 = vmatpush1.bf16.msra.mxu0 0
      %1386 = vmatprep.subr.bf16.mxu0 0
      %1387 = vmatpush1.bf16.msra.mxu0 0
      %1388 = vmatprep.subr.bf16.mxu0 0
      %1389 = vmatpush1.bf16.msra.mxu0 0
      %1390 = vmatprep.subr.bf16.mxu0 0
      %1391 = vmatpush1.bf16.msra.mxu0 0
      %1392 = vmatprep.mubr.bf16.mxu0 0
      %1393 = vmatmul.mubr.bf16.gmra.mrb[0].mxu0 %v1301
      %v1394 = vpop.f32.mrb[0].mxu0
      %v1395 = vadd.f32 0.0, %v1394
      %v1396 = vpop.f32.mrb[0].mxu0
      %v1397 = vpop.f32.mrb[0].mxu0
      %v1398 = vadd.f32 0.0, %v1397
      %v1399 = vpop.f32.mrb[0].mxu0
      %1400 = vmatprep.mubr.bf16.mxu0 0
      %1401 = vmatmul.mubr.bf16.gmra.mrb[0].mxu0 %v1303
      %v1402 = vpop.f32.mrb[0].mxu0
      %v1403 = vadd.f32 0.0, %v1402
      %v1404 = vpop.f32.mrb[0].mxu0
      %v1405 = vpop.f32.mrb[0].mxu0
      %v1406 = vadd.f32 0.0, %v1405
      %v1407 = vpop.f32.mrb[0].mxu0
      %1408 = vmatprep.mubr.bf16.mxu0 0
      %1409 = vmatmul.mubr.bf16.gmra.mrb[0].mxu0 %v1305
      %v1410 = vpop.f32.mrb[0].mxu0
      %v1411 = vadd.f32 0.0, %v1410
      %v1412 = vpop.f32.mrb[0].mxu0
      %v1413 = vpop.f32.mrb[0].mxu0
      %v1414 = vadd.f32 0.0, %v1413
      %v1415 = vpop.f32.mrb[0].mxu0
      %1416 = vmatprep.mubr.bf16.mxu0 0
      %1417 = vmatmul.mubr.bf16.gmra.mrb[0].mxu0 %v1307
      %v1418 = vpop.f32.mrb[0].mxu0
      %v1419 = vadd.f32 0.0, %v1418
      %v1420 = vpop.f32.mrb[0].mxu0
      %v1421 = vpop.f32.mrb[0].mxu0
      %v1422 = vadd.f32 0.0, %v1421
      %v1423 = vpop.f32.mrb[0].mxu0
      %1424 = vdwg.mxu0
      %v1425 = vadd.f32 %v1269, %v1395
      %v1426 = vadd.f32 %v1270, %v1398
      %v1427 = vadd.f32 %v1271, %v1403
      %v1428 = vadd.f32 %v1272, %v1406
      %v1429 = vadd.f32 %v1273, %v1411
      %v1430 = vadd.f32 %v1274, %v1414
      %v1431 = vadd.f32 %v1275, %v1419
      %v1432 = vadd.f32 %v1276, %v1422
      %v1433 = vpack.c.bf16 %v492, %v491
      %s1434 = scalar_lea.vmem %s4, 384
      %v1435 = vld [vmem:[%s1434] sm:$0xf]
      %v1436 = vld [vmem:[%s1434 + $0x4] sm:$0xf]
      %v1437 = vld [vmem:[%s1434 + $0x8] sm:$0xf]
      %v1438 = vld [vmem:[%s1434 + $0xc] sm:$0xf]
      %v1439 = vld [vmem:[%s1434 + $0x10] sm:$0xf]
      %v1440 = vld [vmem:[%s1434 + $0x14] sm:$0xf]
      %v1441 = vld [vmem:[%s1434 + $0x18] sm:$0xf]
      %v1442 = vld [vmem:[%s1434 + $0x1c] sm:$0xf]
      %v1443 = vld [vmem:[%s1434 + $0x20] sm:$0xf]
      %v1444 = vld [vmem:[%s1434 + $0x24] sm:$0xf]
      %v1445 = vld [vmem:[%s1434 + $0x28] sm:$0xf]
      %v1446 = vld [vmem:[%s1434 + $0x2c] sm:$0xf]
      %v1447 = vld [vmem:[%s1434 + $0x30] sm:$0xf]
      %v1448 = vld [vmem:[%s1434 + $0x34] sm:$0xf]
      %v1449 = vld [vmem:[%s1434 + $0x38] sm:$0xf]
      %v1450 = vld [vmem:[%s1434 + $0x3c] sm:$0xf]
      %v1467 = vunpack.c.l.b16 %v1435
      %v1468 = vunpack.c.l.b16 %v1436
      %v1469 = vunpack.c.l.b16 %v1437
      %v1470 = vunpack.c.l.b16 %v1438
      %v1471 = vunpack.c.l.b16 %v1439
      %v1472 = vunpack.c.l.b16 %v1440
      %v1473 = vunpack.c.l.b16 %v1441
      %v1474 = vunpack.c.l.b16 %v1442
      %v1475 = vunpack.c.l.b16 %v1443
      %v1476 = vunpack.c.l.b16 %v1444
      %v1477 = vunpack.c.l.b16 %v1445
      %v1478 = vunpack.c.l.b16 %v1446
      %v1479 = vunpack.c.l.b16 %v1447
      %v1480 = vunpack.c.l.b16 %v1448
      %v1481 = vunpack.c.l.b16 %v1449
      %v1482 = vunpack.c.l.b16 %v1450
      %v1483 = vpack.c.b16 %v1468, %v1467
      %v1484 = vpack.c.b16 %v1470, %v1469
      %v1485 = vpack.c.b16 %v1472, %v1471
      %v1486 = vpack.c.b16 %v1474, %v1473
      %v1487 = vpack.c.b16 %v1476, %v1475
      %v1488 = vpack.c.b16 %v1478, %v1477
      %v1489 = vpack.c.b16 %v1480, %v1479
      %v1490 = vpack.c.b16 %v1482, %v1481
      %1499 = vmatprep.subr.bf16.mxu0 0
      %1500 = vmatpush1.bf16.msra.mxu0 %v1483
      %1501 = vmatprep.subr.bf16.mxu0 0
      %1502 = vmatpush1.bf16.msra.mxu0 %v1484
      %1503 = vmatprep.subr.bf16.mxu0 0
      %1504 = vmatpush1.bf16.msra.mxu0 %v1485
      %1505 = vmatprep.subr.bf16.mxu0 0
      %1506 = vmatpush1.bf16.msra.mxu0 %v1486
      %1507 = vmatprep.subr.bf16.mxu0 0
      %1508 = vmatpush1.bf16.msra.mxu0 %v1487
      %1509 = vmatprep.subr.bf16.mxu0 0
      %1510 = vmatpush1.bf16.msra.mxu0 %v1488
      %1511 = vmatprep.subr.bf16.mxu0 0
      %1512 = vmatpush1.bf16.msra.mxu0 %v1489
      %1513 = vmatprep.subr.bf16.mxu0 0
      %1514 = vmatpush1.bf16.msra.mxu0 %v1490
      %1515 = vmatprep.subr.bf16.mxu0 0
      %1516 = vmatpush1.bf16.msra.mxu0 0
      %1517 = vmatprep.subr.bf16.mxu0 0
      %1518 = vmatpush1.bf16.msra.mxu0 0
      %1519 = vmatprep.subr.bf16.mxu0 0
      %1520 = vmatpush1.bf16.msra.mxu0 0
      %1521 = vmatprep.subr.bf16.mxu0 0
      %1522 = vmatpush1.bf16.msra.mxu0 0
      %1523 = vmatprep.subr.bf16.mxu0 0
      %1524 = vmatpush1.bf16.msra.mxu0 0
      %1525 = vmatprep.subr.bf16.mxu0 0
      %1526 = vmatpush1.bf16.msra.mxu0 0
      %1527 = vmatprep.subr.bf16.mxu0 0
      %1528 = vmatpush1.bf16.msra.mxu0 0
      %1529 = vmatprep.subr.bf16.mxu0 0
      %1530 = vmatpush1.bf16.msra.mxu0 0
      %1531 = vmatprep.mubr.bf16.mxu0 0
      %1532 = vmatmul.mubr.bf16.gmra.mrb[0].mxu0 %v495
      %v1533 = vpop.f32.mrb[0].mxu0
      %v1534 = vadd.f32 0.0, %v1533
      %v1535 = vpop.f32.mrb[0].mxu0
      %v1536 = vpop.f32.mrb[0].mxu0
      %v1537 = vadd.f32 0.0, %v1536
      %v1538 = vpop.f32.mrb[0].mxu0
      %1539 = vmatprep.mubr.bf16.mxu0 0
      %1540 = vmatmul.mubr.bf16.gmra.mrb[0].mxu0 %v496
      %v1541 = vpop.f32.mrb[0].mxu0
      %v1542 = vadd.f32 0.0, %v1541
      %v1543 = vpop.f32.mrb[0].mxu0
      %v1544 = vpop.f32.mrb[0].mxu0
      %v1545 = vadd.f32 0.0, %v1544
      %v1546 = vpop.f32.mrb[0].mxu0
      %1547 = vmatprep.mubr.bf16.mxu0 0
      %1548 = vmatmul.mubr.bf16.gmra.mrb[0].mxu0 %v497
      %v1549 = vpop.f32.mrb[0].mxu0
      %v1550 = vadd.f32 0.0, %v1549
      %v1551 = vpop.f32.mrb[0].mxu0
      %v1552 = vpop.f32.mrb[0].mxu0
      %v1553 = vadd.f32 0.0, %v1552
      %v1554 = vpop.f32.mrb[0].mxu0
      %1555 = vmatprep.mubr.bf16.mxu0 0
      %1556 = vmatmul.mubr.bf16.gmra.mrb[0].mxu0 %v1433
      %v1557 = vpop.f32.mrb[0].mxu0
      %v1558 = vadd.f32 0.0, %v1557
      %v1559 = vpop.f32.mrb[0].mxu0
      %v1560 = vpop.f32.mrb[0].mxu0
      %v1561 = vadd.f32 0.0, %v1560
      %v1562 = vpop.f32.mrb[0].mxu0
      %1563 = vdwg.mxu0
      %v1564 = vadd.f32 %v1425, %v1534
      %v1565 = vadd.f32 %v1426, %v1537
      %v1566 = vadd.f32 %v1427, %v1542
      %v1567 = vadd.f32 %v1428, %v1545
      %v1568 = vadd.f32 %v1429, %v1550
      %v1569 = vadd.f32 %v1430, %v1553
      %v1570 = vadd.f32 %v1431, %v1558
      %v1571 = vadd.f32 %v1432, %v1561
      %v1572 = vpack.c.bf16 %v493, %v493
      %s1573 = scalar_lea.vmem %s4, 448
      %v1574 = vld [vmem:[%s1573] sm:$0xf]
      %v1575 = vld [vmem:[%s1573 + $0x4] sm:$0xf]
      %v1576 = vld [vmem:[%s1573 + $0x8] sm:$0xf]
      %v1577 = vld [vmem:[%s1573 + $0xc] sm:$0xf]
      %v1578 = vld [vmem:[%s1573 + $0x10] sm:$0xf]
      %v1579 = vld [vmem:[%s1573 + $0x14] sm:$0xf]
      %v1580 = vld [vmem:[%s1573 + $0x18] sm:$0xf]
      %v1581 = vld [vmem:[%s1573 + $0x1c] sm:$0xf]
      %v1582 = vld [vmem:[%s1573 + $0x20] sm:$0xf]
      %v1583 = vld [vmem:[%s1573 + $0x24] sm:$0xf]
      %v1584 = vld [vmem:[%s1573 + $0x28] sm:$0xf]
      %v1585 = vld [vmem:[%s1573 + $0x2c] sm:$0xf]
      %v1586 = vld [vmem:[%s1573 + $0x30] sm:$0xf]
      %v1587 = vld [vmem:[%s1573 + $0x34] sm:$0xf]
      %v1588 = vld [vmem:[%s1573 + $0x38] sm:$0xf]
      %v1589 = vld [vmem:[%s1573 + $0x3c] sm:$0xf]
      %v1591 = vshll.u32 %v1433, 16
      %v1593 = vrot.slane %v1591, 1
      %v1594 = vsel %vm532, %v563, %v1593
      %v1595 = vshrl.u32 %v1433, 16
      %v1597 = vor.u32 %v1595, %v1593
      %v1599 = vshll.u32 %v1572, 16
      %v1601 = vrot.slane %v1599, 1
      %v1602 = vsel %vm532, %v1597, %v1601
      %v1621 = vunpack.c.l.b16 %v1574
      %v1622 = vunpack.c.l.b16 %v1575
      %v1623 = vunpack.c.l.b16 %v1576
      %v1624 = vunpack.c.l.b16 %v1577
      %v1625 = vunpack.c.l.b16 %v1578
      %v1626 = vunpack.c.l.b16 %v1579
      %v1627 = vunpack.c.l.b16 %v1580
      %v1628 = vunpack.c.l.b16 %v1581
      %v1629 = vunpack.c.l.b16 %v1582
      %v1630 = vunpack.c.l.b16 %v1583
      %v1631 = vunpack.c.l.b16 %v1584
      %v1632 = vunpack.c.l.b16 %v1585
      %v1633 = vunpack.c.l.b16 %v1586
      %v1634 = vunpack.c.l.b16 %v1587
      %v1635 = vunpack.c.l.b16 %v1588
      %v1636 = vunpack.c.l.b16 %v1589
      %v1637 = vpack.c.b16 %v1622, %v1621
      %v1638 = vpack.c.b16 %v1624, %v1623
      %v1639 = vpack.c.b16 %v1626, %v1625
      %v1640 = vpack.c.b16 %v1628, %v1627
      %v1641 = vpack.c.b16 %v1630, %v1629
      %v1642 = vpack.c.b16 %v1632, %v1631
      %v1643 = vpack.c.b16 %v1634, %v1633
      %v1644 = vpack.c.b16 %v1636, %v1635
      %1653 = vmatprep.subr.bf16.mxu0 0
      %1654 = vmatpush1.bf16.msra.mxu0 %v1637
      %1655 = vmatprep.subr.bf16.mxu0 0
      %1656 = vmatpush1.bf16.msra.mxu0 %v1638
      %1657 = vmatprep.subr.bf16.mxu0 0
      %1658 = vmatpush1.bf16.msra.mxu0 %v1639
      %1659 = vmatprep.subr.bf16.mxu0 0
      %1660 = vmatpush1.bf16.msra.mxu0 %v1640
      %1661 = vmatprep.subr.bf16.mxu0 0
      %1662 = vmatpush1.bf16.msra.mxu0 %v1641
      %1663 = vmatprep.subr.bf16.mxu0 0
      %1664 = vmatpush1.bf16.msra.mxu0 %v1642
      %1665 = vmatprep.subr.bf16.mxu0 0
      %1666 = vmatpush1.bf16.msra.mxu0 %v1643
      %1667 = vmatprep.subr.bf16.mxu0 0
      %1668 = vmatpush1.bf16.msra.mxu0 %v1644
      %1669 = vmatprep.subr.bf16.mxu0 0
      %1670 = vmatpush1.bf16.msra.mxu0 0
      %1671 = vmatprep.subr.bf16.mxu0 0
      %1672 = vmatpush1.bf16.msra.mxu0 0
      %1673 = vmatprep.subr.bf16.mxu0 0
      %1674 = vmatpush1.bf16.msra.mxu0 0
      %1675 = vmatprep.subr.bf16.mxu0 0
      %1676 = vmatpush1.bf16.msra.mxu0 0
      %1677 = vmatprep.subr.bf16.mxu0 0
      %1678 = vmatpush1.bf16.msra.mxu0 0
      %1679 = vmatprep.subr.bf16.mxu0 0
      %1680 = vmatpush1.bf16.msra.mxu0 0
      %1681 = vmatprep.subr.bf16.mxu0 0
      %1682 = vmatpush1.bf16.msra.mxu0 0
      %1683 = vmatprep.subr.bf16.mxu0 0
      %1684 = vmatpush1.bf16.msra.mxu0 0
      %1685 = vmatprep.mubr.bf16.mxu0 0
      %1686 = vmatmul.mubr.bf16.gmra.mrb[0].mxu0 %v552
      %v1687 = vpop.f32.mrb[0].mxu0
      %v1688 = vadd.f32 0.0, %v1687
      %v1689 = vpop.f32.mrb[0].mxu0
      %v1690 = vpop.f32.mrb[0].mxu0
      %v1691 = vadd.f32 0.0, %v1690
      %v1692 = vpop.f32.mrb[0].mxu0
      %1693 = vmatprep.mubr.bf16.mxu0 0
      %1694 = vmatmul.mubr.bf16.gmra.mrb[0].mxu0 %v560
      %v1695 = vpop.f32.mrb[0].mxu0
      %v1696 = vadd.f32 0.0, %v1695
      %v1697 = vpop.f32.mrb[0].mxu0
      %v1698 = vpop.f32.mrb[0].mxu0
      %v1699 = vadd.f32 0.0, %v1698
      %v1700 = vpop.f32.mrb[0].mxu0
      %1701 = vmatprep.mubr.bf16.mxu0 0
      %1702 = vmatmul.mubr.bf16.gmra.mrb[0].mxu0 %v1594
      %v1703 = vpop.f32.mrb[0].mxu0
      %v1704 = vadd.f32 0.0, %v1703
      %v1705 = vpop.f32.mrb[0].mxu0
      %v1706 = vpop.f32.mrb[0].mxu0
      %v1707 = vadd.f32 0.0, %v1706
      %v1708 = vpop.f32.mrb[0].mxu0
      %1709 = vmatprep.mubr.bf16.mxu0 0
      %1710 = vmatmul.mubr.bf16.gmra.mrb[0].mxu0 %v1602
      %v1711 = vpop.f32.mrb[0].mxu0
      %v1712 = vadd.f32 0.0, %v1711
      %v1713 = vpop.f32.mrb[0].mxu0
      %v1714 = vpop.f32.mrb[0].mxu0
      %v1715 = vadd.f32 0.0, %v1714
      %v1716 = vpop.f32.mrb[0].mxu0
      %1717 = vdwg.mxu0
      %v1718 = vadd.f32 %v1564, %v1688
      %v1719 = vadd.f32 %v1565, %v1691
      %v1720 = vadd.f32 %v1566, %v1696
      %v1721 = vadd.f32 %v1567, %v1699
      %v1722 = vadd.f32 %v1568, %v1704
      %v1723 = vadd.f32 %v1569, %v1707
      %v1724 = vadd.f32 %v1570, %v1712
      %v1725 = vadd.f32 %v1571, %v1715
      %s1726 = scalar_lea.vmem %s4, 512
      %v1727 = vld [vmem:[%s1726] sm:$0xf]
      %v1728 = vld [vmem:[%s1726 + $0x4] sm:$0xf]
      %v1729 = vld [vmem:[%s1726 + $0x8] sm:$0xf]
      %v1730 = vld [vmem:[%s1726 + $0xc] sm:$0xf]
      %v1731 = vld [vmem:[%s1726 + $0x10] sm:$0xf]
      %v1732 = vld [vmem:[%s1726 + $0x14] sm:$0xf]
      %v1733 = vld [vmem:[%s1726 + $0x18] sm:$0xf]
      %v1734 = vld [vmem:[%s1726 + $0x1c] sm:$0xf]
      %v1735 = vld [vmem:[%s1726 + $0x20] sm:$0xf]
      %v1736 = vld [vmem:[%s1726 + $0x24] sm:$0xf]
      %v1737 = vld [vmem:[%s1726 + $0x28] sm:$0xf]
      %v1738 = vld [vmem:[%s1726 + $0x2c] sm:$0xf]
      %v1739 = vld [vmem:[%s1726 + $0x30] sm:$0xf]
      %v1740 = vld [vmem:[%s1726 + $0x34] sm:$0xf]
      %v1741 = vld [vmem:[%s1726 + $0x38] sm:$0xf]
      %v1742 = vld [vmem:[%s1726 + $0x3c] sm:$0xf]
      %v1745 = vrot.slane %v1433, 1
      %v1746 = vsel %vm821, %v827, %v1745
      %v1747 = vrot.slane %v1572, 1
      %v1748 = vsel %vm821, %v1745, %v1747
      %v1767 = vunpack.c.l.b16 %v1727
      %v1768 = vunpack.c.l.b16 %v1728
      %v1769 = vunpack.c.l.b16 %v1729
      %v1770 = vunpack.c.l.b16 %v1730
      %v1771 = vunpack.c.l.b16 %v1731
      %v1772 = vunpack.c.l.b16 %v1732
      %v1773 = vunpack.c.l.b16 %v1733
      %v1774 = vunpack.c.l.b16 %v1734
      %v1775 = vunpack.c.l.b16 %v1735
      %v1776 = vunpack.c.l.b16 %v1736
      %v1777 = vunpack.c.l.b16 %v1737
      %v1778 = vunpack.c.l.b16 %v1738
      %v1779 = vunpack.c.l.b16 %v1739
      %v1780 = vunpack.c.l.b16 %v1740
      %v1781 = vunpack.c.l.b16 %v1741
      %v1782 = vunpack.c.l.b16 %v1742
      %v1783 = vpack.c.b16 %v1768, %v1767
      %v1784 = vpack.c.b16 %v1770, %v1769
      %v1785 = vpack.c.b16 %v1772, %v1771
      %v1786 = vpack.c.b16 %v1774, %v1773
      %v1787 = vpack.c.b16 %v1776, %v1775
      %v1788 = vpack.c.b16 %v1778, %v1777
      %v1789 = vpack.c.b16 %v1780, %v1779
      %v1790 = vpack.c.b16 %v1782, %v1781
      %1799 = vmatprep.subr.bf16.mxu0 0
      %1800 = vmatpush1.bf16.msra.mxu0 %v1783
      %1801 = vmatprep.subr.bf16.mxu0 0
      %1802 = vmatpush1.bf16.msra.mxu0 %v1784
      %1803 = vmatprep.subr.bf16.mxu0 0
      %1804 = vmatpush1.bf16.msra.mxu0 %v1785
      %1805 = vmatprep.subr.bf16.mxu0 0
      %1806 = vmatpush1.bf16.msra.mxu0 %v1786
      %1807 = vmatprep.subr.bf16.mxu0 0
      %1808 = vmatpush1.bf16.msra.mxu0 %v1787
      %1809 = vmatprep.subr.bf16.mxu0 0
      %1810 = vmatpush1.bf16.msra.mxu0 %v1788
      %1811 = vmatprep.subr.bf16.mxu0 0
      %1812 = vmatpush1.bf16.msra.mxu0 %v1789
      %1813 = vmatprep.subr.bf16.mxu0 0
      %1814 = vmatpush1.bf16.msra.mxu0 %v1790
      %1815 = vmatprep.subr.bf16.mxu0 0
      %1816 = vmatpush1.bf16.msra.mxu0 0
      %1817 = vmatprep.subr.bf16.mxu0 0
      %1818 = vmatpush1.bf16.msra.mxu0 0
      %1819 = vmatprep.subr.bf16.mxu0 0
      %1820 = vmatpush1.bf16.msra.mxu0 0
      %1821 = vmatprep.subr.bf16.mxu0 0
      %1822 = vmatpush1.bf16.msra.mxu0 0
      %1823 = vmatprep.subr.bf16.mxu0 0
      %1824 = vmatpush1.bf16.msra.mxu0 0
      %1825 = vmatprep.subr.bf16.mxu0 0
      %1826 = vmatpush1.bf16.msra.mxu0 0
      %1827 = vmatprep.subr.bf16.mxu0 0
      %1828 = vmatpush1.bf16.msra.mxu0 0
      %1829 = vmatprep.subr.bf16.mxu0 0
      %1830 = vmatpush1.bf16.msra.mxu0 0
      %1831 = vmatprep.mubr.bf16.mxu0 0
      %1832 = vmatmul.mubr.bf16.gmra.mrb[0].mxu0 %v826
      %v1833 = vpop.f32.mrb[0].mxu0
      %v1834 = vadd.f32 0.0, %v1833
      %v1835 = vpop.f32.mrb[0].mxu0
      %v1836 = vpop.f32.mrb[0].mxu0
      %v1837 = vadd.f32 0.0, %v1836
      %v1838 = vpop.f32.mrb[0].mxu0
      %1839 = vmatprep.mubr.bf16.mxu0 0
      %1840 = vmatmul.mubr.bf16.gmra.mrb[0].mxu0 %v828
      %v1841 = vpop.f32.mrb[0].mxu0
      %v1842 = vadd.f32 0.0, %v1841
      %v1843 = vpop.f32.mrb[0].mxu0
      %v1844 = vpop.f32.mrb[0].mxu0
      %v1845 = vadd.f32 0.0, %v1844
      %v1846 = vpop.f32.mrb[0].mxu0
      %1847 = vmatprep.mubr.bf16.mxu0 0
      %1848 = vmatmul.mubr.bf16.gmra.mrb[0].mxu0 %v1746
      %v1849 = vpop.f32.mrb[0].mxu0
      %v1850 = vadd.f32 0.0, %v1849
      %v1851 = vpop.f32.mrb[0].mxu0
      %v1852 = vpop.f32.mrb[0].mxu0
      %v1853 = vadd.f32 0.0, %v1852
      %v1854 = vpop.f32.mrb[0].mxu0
      %1855 = vmatprep.mubr.bf16.mxu0 0
      %1856 = vmatmul.mubr.bf16.gmra.mrb[0].mxu0 %v1748
      %v1857 = vpop.f32.mrb[0].mxu0
      %v1858 = vadd.f32 0.0, %v1857
      %v1859 = vpop.f32.mrb[0].mxu0
      %v1860 = vpop.f32.mrb[0].mxu0
      %v1861 = vadd.f32 0.0, %v1860
      %v1862 = vpop.f32.mrb[0].mxu0
      %1863 = vdwg.mxu0
      %v1864 = vadd.f32 %v1718, %v1834
      %v1865 = vadd.f32 %v1719, %v1837
      %v1866 = vadd.f32 %v1720, %v1842
      %v1867 = vadd.f32 %v1721, %v1845
      %v1868 = vadd.f32 %v1722, %v1850
      %v1869 = vadd.f32 %v1723, %v1853
      %v1870 = vadd.f32 %v1724, %v1858
      %v1871 = vadd.f32 %v1725, %v1861
      %v1872 = vld [vmem:[%s5] sm:$0x1]
      %v1874 = vlaneseq
      %v1875 = vshrl.u32 %v1874, 7
      %v1876 = vsub.s32 0, %v1875
      %v1877 = vrot.slane %v1872, %v1876
      %v1879 = vadd.f32 %v1864, %v1877
      %v1880 = vadd.f32 %v1865, %v1877
      %v1881 = vadd.f32 %v1866, %v1877
      %v1882 = vadd.f32 %v1867, %v1877
      %v1883 = vadd.f32 %v1868, %v1877
      %v1884 = vadd.f32 %v1869, %v1877
      %v1885 = vadd.f32 %v1870, %v1877
      %v1886 = vadd.f32 %v1871, %v1877
      %1887 = vst [vmem:[%s429] sm:$0xff] %v1879
      %1888 = vst [vmem:[%s429 + $0x8] sm:$0xff] %v1880
      %1889 = vst [vmem:[%s429 + $0x10] sm:$0xff] %v1881
      %1890 = vst [vmem:[%s429 + $0x18] sm:$0xff] %v1882
      %1891 = vst [vmem:[%s429 + $0x20] sm:$0xff] %v1883
      %1892 = vst [vmem:[%s429 + $0x28] sm:$0xff] %v1884
      %1893 = vst [vmem:[%s429 + $0x30] sm:$0xff] %v1885
      %1894 = vst [vmem:[%s429 + $0x38] sm:$0xff] %v1886
      %v1895 = vld [vmem:[%s419] sm:$0xff]
      %v1896 = vld [vmem:[%s419 + $0x8] sm:$0xff]
      %v1897 = vld [vmem:[%s419 + $0x10] sm:$0xff]
      %v1898 = vld [vmem:[%s419 + $0x18] sm:$0xff]
      %v1899 = vld [vmem:[%s419 + $0x20] sm:$0xff]
      %v1900 = vld [vmem:[%s419 + $0x28] sm:$0xff]
      %v1901 = vld [vmem:[%s419 + $0x30] sm:$0xff]
      %v1902 = vld [vmem:[%s419 + $0x38] sm:$0xff]
      %1904 = vset.pattern.permute.xlu0 0
      %1905 = vperm.xlu0 %1904, %v1895
      %v1906 = vpop.permute.xlu0 %1905
      %1909 = vset.pattern.permute.xlu0 0
      %1910 = vperm.xlu0 %1909, %v1896
      %v1911 = vpop.permute.xlu0 %1910
      %1914 = vset.pattern.permute.xlu0 0
      %1915 = vperm.xlu0 %1914, %v1897
      %v1916 = vpop.permute.xlu0 %1915
      %1919 = vset.pattern.permute.xlu0 0
      %1920 = vperm.xlu0 %1919, %v1898
      %v1921 = vpop.permute.xlu0 %1920
      %1924 = vset.pattern.permute.xlu0 0
      %1925 = vperm.xlu0 %1924, %v1899
      %v1926 = vpop.permute.xlu0 %1925
      %1929 = vset.pattern.permute.xlu0 0
      %1930 = vperm.xlu0 %1929, %v1900
      %v1931 = vpop.permute.xlu0 %1930
      %1934 = vset.pattern.permute.xlu0 0
      %1935 = vperm.xlu0 %1934, %v1901
      %v1936 = vpop.permute.xlu0 %1935
      %1939 = vset.pattern.permute.xlu0 0
      %1940 = vperm.xlu0 %1939, %v1902
      %v1941 = vpop.permute.xlu0 %1940
      %v1943 = vmul.f32 %v1879, %v1906
      %v1944 = vmul.f32 %v1880, %v1911
      %v1945 = vmul.f32 %v1881, %v1916
      %v1946 = vmul.f32 %v1882, %v1921
      %v1947 = vmul.f32 %v1883, %v1926
      %v1948 = vmul.f32 %v1884, %v1931
      %v1949 = vmul.f32 %v1885, %v1936
      %v1950 = vmul.f32 %v1886, %v1941
      %v1951 = vadd.f32 %v1943, %v1944
      %v1952 = vadd.f32 %v1951, %v1945
      %v1953 = vadd.f32 %v1952, %v1946
      %v1954 = vadd.f32 %v1953, %v1947
      %v1955 = vadd.f32 %v1954, %v1948
      %v1956 = vadd.f32 %v1955, %v1949
      %v1957 = vadd.f32 %v1956, %v1950
      %v1958 = vrot.slane %v1957, 4
      %v1959 = vadd.f32 %v1957, %v1958
      %v1960 = vrot.slane %v1959, 2
      %v1961 = vadd.f32 %v1959, %v1960
      %v1962 = vrot.slane %v1961, 1
      %v1963 = vadd.f32 %v1961, %v1962
      %v1964 = vmul.f32 %v1943, %v1879
      %v1965 = vmul.f32 %v1944, %v1880
      %v1966 = vmul.f32 %v1945, %v1881
      %v1967 = vmul.f32 %v1946, %v1882
      %v1968 = vmul.f32 %v1947, %v1883
      %v1969 = vmul.f32 %v1948, %v1884
      %v1970 = vmul.f32 %v1949, %v1885
      %v1971 = vmul.f32 %v1950, %v1886
      %v1972 = vadd.f32 %v1964, %v1965
      %v1973 = vadd.f32 %v1972, %v1966
      %v1974 = vadd.f32 %v1973, %v1967
      %v1975 = vadd.f32 %v1974, %v1968
      %v1976 = vadd.f32 %v1975, %v1969
      %v1977 = vadd.f32 %v1976, %v1970
      %v1978 = vadd.f32 %v1977, %v1971
      %v1979 = vrot.slane %v1978, 4
      %v1980 = vadd.f32 %v1978, %v1979
      %v1981 = vrot.slane %v1980, 2
      %v1982 = vadd.f32 %v1980, %v1981
      %v1983 = vrot.slane %v1982, 1
      %v1984 = vadd.f32 %v1982, %v1983
      %vm1985 = vcmask 1040384
      %v1986 = vsel %vm1985, %v1963, %v1984
      %p1987 = scmp.eq.s32.totalorder %s25, 0
      // Predicated region
      $region49: #{unet_down_block.4} parent=47 // pred_check
        %p1988 = pneg %p1987
      $region50: #{unet_down_block.4} parent=47 // pred_check_branch
        %1990 = sbr.rel (%p1988) target = $region52
      $region51: #{unet_down_block.4} parent=47 // pred_region
        %1991 = vst [vmem:[%s434] sm:$0x3] %v1986
      $region52: #{unet_down_block.4} parent=47 // pred_fallthru
        _
      %p1992 = scmp.ne.s32.totalorder %s25, 0
      // Predicated region
      $region53: #{unet_down_block.4} parent=47 // pred_check
        %p1993 = pneg %p1992
      $region54: #{unet_down_block.4} parent=47 // pred_check_branch
        %1995 = sbr.rel (%p1993) target = $region56
      $region55: #{unet_down_block.4} parent=47 // pred_region
        %v1996 = vld [vmem:[%s434] sm:$0x3]
        %v1997 = vadd.f32 %v1996, %v1986
        %1998 = vst [vmem:[%s434] sm:$0x3] %v1997
      $region56: #{unet_down_block.4} parent=47 // pred_fallthru
        _
      %s1999 = smul.u32 8, %s25
      %p2000 = scmp.lt.s32.totalorder %s24, 1
      %s2001 = scalar_select %p2000, %s24, 1
      %p2002 = scmp.lt.s32.totalorder %s1999, 7
      %s2003 = scalar_select %p2002, %s1999, 7
      %s2004 = smul.addr %s2001, 8
      %s2005 = sadd.s32 %s2003, %s2004
      %s2006 = smul.addr %s2005, 8
      %s2007 = scalar_lea.vmem %s7, %s2006
      %p2008 = scmp.lt.s32.totalorder %s24, 1
      %s2009 = scalar_select %p2008, %s24, 1
      %s2010 = smul.addr %s2009, 2
      %s2011 = scalar_lea.vmem %s8, %s2010
      // Predicated region
      $region57: #{unet_down_block.4} parent=47 // pred_check
        %p2012 = pneg %p224
      $region58: #{unet_down_block.4} parent=47 // pred_check_branch
        %2014 = sbr.rel (%p2012) target = $region60
      $region59: #{unet_down_block.4} parent=47 // pred_region
        %s2015 = smul.u32 8, %s25
      $region60: #{unet_down_block.4} parent=47 // pred_fallthru
        _
      // Predicated region
      $region61: #{unet_down_block.4} parent=47 // pred_check
        %p2016 = pneg %p250
      $region62: #{unet_down_block.4} parent=47 // pred_check_branch
        %2018 = sbr.rel (%p2016) target = $region64
      $region63: #{unet_down_block.4} parent=47 // pred_region
        _
      $region64: #{unet_down_block.4} parent=47 // pred_fallthru
        _
    $region48: #{unet_down_block.4} parent=5 // pred_fallthru
      _
    %p2019 = scmp.le.s32.totalorder 2, %s15
    // Predicated region
    $region65: #{unet_down_block.4} parent=5 // pred_check
      %p2020 = pneg %p2019
    $region66: #{unet_down_block.4} parent=5 // pred_check_branch
      %2022 = sbr.rel (%p2020) target = $region68
    $region67: #{unet_down_block.4} parent=5 // pred_region
      %s2023 = ssub.s32 %s15, 2
      // Predicated region
      $region69: #{unet_down_block.4} parent=67 // pred_check
        %p2024 = pneg %p230
      $region70: #{unet_down_block.4} parent=67 // pred_check_branch
        %2026 = sbr.rel (%p2024) target = $region72
      $region71: #{unet_down_block.4} parent=67 // pred_region
        %s2027 = smul.u32 8, %s27
        %p2028 = scmp.lt.s32.totalorder %s26, 1
        %s2029 = scalar_select %p2028, %s26, 1
        %p2030 = scmp.lt.s32.totalorder %s2027, 7
        %s2031 = scalar_select %p2030, %s2027, 7
        %s2032 = smul.addr %s2029, 8
        %s2033 = sadd.s32 %s2031, %s2032
        %s2034 = smul.addr %s2033, 8
        %s2035 = scalar_lea.vmem %s7, %s2034
      $region72: #{unet_down_block.4} parent=67 // pred_fallthru
        _
      // Predicated region
      $region73: #{unet_down_block.4} parent=67 // pred_check
        %p2036 = pneg %p256
      $region74: #{unet_down_block.4} parent=67 // pred_check_branch
        %2038 = sbr.rel (%p2036) target = $region76
      $region75: #{unet_down_block.4} parent=67 // pred_region
        %p2039 = scmp.lt.s32.totalorder %s26, 1
        %s2040 = scalar_select %p2039, %s26, 1
        %s2041 = smul.addr %s2040, 2
        %s2042 = scalar_lea.vmem %s8, %s2041
      $region76: #{unet_down_block.4} parent=67 // pred_fallthru
        _
    $region68: #{unet_down_block.4} parent=5 // pred_fallthru
      _
  $region6: #{unet_down_block.4} parent=0 // loop_footer
    %s19 = sadd.s32 1, %s15
  $region7: #{unet_down_block.4} parent=0 // loop_footer_branch
    %14 = sbr.rel target = $region3
  $region8: #{unet_down_block.4} parent=0 // loop_exit
    _

</llo_original>
